<compile_context>
chip_gen: v5e
topology: v5e:2x2
jax: 0.10.0
libtpu: 0.0.40
codegen_flags: <defaults>
</compile_context>

<pallas_src>
import functools

import jax
import jax.numpy as jnp
from jax.experimental import pallas as pl
from jax.experimental.pallas import tpu as pltpu


def _field_evolution_kernel(field_ref, out_ref, *, g, dt, steps, unroll,
                            force_matmul_bf16):
    # field_ref block: (Bb, S, D); cast to f32 in-kernel (input may be bf16).
    f0 = field_ref[...].astype(jnp.float32)
    _, S, _ = f0.shape

    # Constants built once, reused by every grav_force call inside the loop.
    row = jax.lax.broadcasted_iota(jnp.int32, (S, S), 0)
    col = jax.lax.broadcasted_iota(jnp.int32, (S, S), 1)
    is_diag = row == col
    g_mask = jnp.where(is_diag, 0.0, jnp.float32(g))         # g * (1 - eye)
    eye_f = is_diag.astype(jnp.float32) if S < 256 else None  # only for small S

    half_dt = jnp.float32(0.5 * dt)
    dt_f = jnp.float32(dt)
    eps = jnp.float32(1e-8)
    one = jnp.float32(1.0)

    def grav_force(fld):                                      # (Bb, S, D) f32
        # Batched Gram matrix on the MXU, contracting the last dims
        # (no materialized transpose of fld).
        gram = jnp.einsum('bqd,bkd->bqk', fld, fld,
                          preferred_element_type=jnp.float32)    # (Bb, S, S)
        if eye_f is not None:
            # Small S: squared norms straight off the Gram diagonal
            # (no (S,1)->(1,S) relayout).
            diag = gram * eye_f
            sq_col = jnp.sum(diag, axis=-1, keepdims=True)       # (Bb, S, 1)
            sq_row = jnp.sum(diag, axis=-2, keepdims=True)       # (Bb, 1, S)
        else:
            # Large S: an S*D reduction + one tiny transpose instead of an
            # S^2 VPU multiply and two S^2 XLU reductions (x2 calls x steps).
            sq_col = jnp.sum(fld * fld, axis=-1, keepdims=True)  # (Bb, S, 1)
            sq_row = jnp.swapaxes(sq_col, -1, -2)                # (Bb, 1, S)
        # ||fi - fj||^2 = ||fi||^2 + ||fj||^2 - 2 fi.fj  (clamped for safety).
        d2 = jnp.maximum(sq_col + sq_row - 2.0 * gram, 0.0)
        # G = g / (||.|| + 1e-8): same eps placement as the reference, with
        # the divide moved onto the EUP (approx reciprocal) and the scalar g
        # plus the (1 - eye) mask folded into g_mask.
        G = g_mask * pl.reciprocal(jnp.sqrt(d2) + eps, approx=True)
        if force_matmul_bf16:
            return jnp.einsum('bqk,bkd->bqd', G.astype(jnp.bfloat16),
                              fld.astype(jnp.bfloat16),
                              preferred_element_type=jnp.float32)
        return jnp.einsum('bqk,bkd->bqd', G, fld,
                          preferred_element_type=jnp.float32)    # (Bb, S, D)

    def step_body(_, f):
        force = grav_force(f)
        f_half = f + half_dt * force
        force_half = grav_force(f_half)
        f_new = f + dt_f * force_half
        norm = jnp.sqrt(jnp.sum(f_new * f_new, axis=-1, keepdims=True))
        # Exact reciprocal on the tiny (Bb, S, 1) vector, then a broadcast
        # multiply: S divides instead of S*D, numerics ~= the reference.
        return f_new * (one / (norm + eps))

    f = jax.lax.fori_loop(0, steps, step_body, f0, unroll=unroll)
    out_ref[...] = f.astype(out_ref.dtype)


def _per_slab_bytes(S, D, in_itemsize):
    # Per batch-slab: double-buffered input block + output block, ~6 live
    # (S, D) f32 temporaries (f / f_half / force / force_half across the two
    # back-to-back grav_force calls and the unrolled iterations) and ~4 live
    # (S, S) f32 temporaries (gram, d2, G + one intermediate).
    return (2 * in_itemsize + 2 * 4 + 6 * 4) * S * D + 4 * 4 * S * S


def _fixed_bytes(S):
    # (S, S) f32 constants built once per kernel invocation (g_mask, eye_f).
    return 2 * 4 * S * S


def _vmem_budget_and_limit():
    """Generation-aware VMEM sizing: v7x has 64 MiB/TC, v5e/v6e have 128 MiB."""
    capacity = 64 * 1024 * 1024              # conservative default (v7x class)
    try:
        capacity = int(pltpu.get_tpu_info().vmem_capacity_bytes)
    except Exception:
        pass
    if capacity <= 80 * 1024 * 1024:         # v7x-class (64 MiB physical)
        return 24 * 1024 * 1024, 48 * 1024 * 1024
    return 64 * 1024 * 1024, 100 * 1024 * 1024   # v5e / v6e (128 MiB physical)


def _has_multiple_tensorcores():
    """True on megacore chips (v4 / v5p / v7x); False on v2/v3/v5e/v6e."""
    try:
        kind = jax.devices()[0].device_kind.lower()
    except Exception:
        return True                          # conservative: keep the grid >= 2
    single_tc = any(tag in kind for tag in ("v2", "v3", "v5 lite", "v5e", "v6"))
    return not single_tc


def _pick_block_batch(B, S, D, in_itemsize, vmem_budget_bytes, multi_tc):
    """Largest batch-slab fitting the VMEM budget (with ~20% headroom).

    On multi-TensorCore chips the grid is kept >= 2 (both cores get work) and
    an even grid is preferred for balance.  Bb need not divide B — the wrapper
    pads the batch to grid * Bb.
    """
    per_slab = max(_per_slab_bytes(S, D, in_itemsize), 1)
    usable = int(vmem_budget_bytes * 0.8) - _fixed_bytes(S)
    max_bb = max(1, min(B, usable // per_slab))
    if not (multi_tc and B >= 2):
        return max_bb                        # single TC: grid == 1 is fine
    max_bb = min(max_bb, (B + 1) // 2)       # keep at least two grid steps
    bb = max_bb
    for cand in range(max_bb, 0, -1):        # prefer an even (balanced) grid
        if pl.cdiv(B, cand) % 2 == 0:
            if cand * 2 >= max_bb:           # but don't shrink Bb below half
                bb = cand
            break
    return bb


def field_evolution(field, *, g=0.01, dt=0.1, steps=10, block_batch=None,
                    force_matmul_bf16=False):
    """field: (batch, seq_len, d_model) -> evolved field, float32, same shape.

    Input may be f32 or bf16; the cast to f32 happens inside the kernel so
    bf16 activations halve HBM->VMEM DMA bytes.  force_matmul_bf16=True runs
    the G @ field matmul in a single bf16 MXU pass (~1e-3 relative error); it
    defaults to False to keep the reference f32 numerics.
    """
    B, S, D = field.shape
    in_itemsize = jnp.dtype(field.dtype).itemsize
    budget, limit_cap = _vmem_budget_and_limit()
    multi_tc = _has_multiple_tensorcores()
    Bb = block_batch or _pick_block_batch(B, S, D, in_itemsize, budget, multi_tc)
    Bb = max(1, min(Bb, B))

    grid = pl.cdiv(B, Bb)
    B_pad = grid * Bb
    if B_pad != B:
        # Zero padding is inert under these dynamics (zero rows give zero
        # force and stay zero); padded outputs are sliced off below.
        field = jnp.pad(field, ((0, B_pad - B), (0, 0), (0, 0)))

    # TODO(synk): for very large S (>~1.2k on v7x's 64 MiB VMEM) the (S, S)
    # temporaries need a flash-style inner loop over MXU-aligned column tiles
    # of the pairwise dimension, accumulating force in a (Bb, S, D) scratch.
    # TODO(synk): when d_model < 128 the elementwise/store path wastes lanes;
    # a lane-dense (Bb, S*D) repack of the integrator/store phase is the next
    # layout lever (needs a Mosaic-supported in-kernel reshape).

    est_bytes = Bb * _per_slab_bytes(S, D, in_itemsize) + _fixed_bytes(S)
    vmem_limit = int(min(max(1.25 * est_bytes, 32 * 1024 * 1024), limit_cap))

    # Fully unroll the short fixed-trip integrator loop when the working set
    # is tiny (scheduler visibility across both grav_force calls per step);
    # unroll=2 otherwise to avoid vreg spills on larger shapes.
    small_body = (Bb * S * D <= 8192) and (S <= 128)
    unroll = max(1, steps if small_body else 2)

    kernel = functools.partial(_field_evolution_kernel, g=g, dt=dt, steps=steps,
                               unroll=unroll,
                               force_matmul_bf16=force_matmul_bf16)
    out = pl.pallas_call(
        kernel,
        out_shape=jax.ShapeDtypeStruct((B_pad, S, D), jnp.float32),
        grid_spec=pltpu.PrefetchScalarGridSpec(
            num_scalar_prefetch=0,
            grid=(grid,),
            in_specs=[pl.BlockSpec((Bb, S, D), lambda b: (b, 0, 0))],
            out_specs=pl.BlockSpec((Bb, S, D), lambda b: (b, 0, 0)),
        ),
        compiler_params=pltpu.CompilerParams(
            dimension_semantics=("parallel",),
            vmem_limit_bytes=vmem_limit),
    )(field)
    return out[:B] if B_pad != B else out


class FieldEvolutionPallas:
    """Mirror of the PyTorch FieldEvolution module (forward only)."""

    def __init__(self, d_model=32, g=0.01, dt=0.1, mass_scale=1.0):
        self.g = g
        self.dt = dt
        # nn.Parameter(torch.ones(d_model) * mass_scale) — deterministic init.
        # `mass` is never used in the PyTorch forward pass either.
        self.mass = jnp.ones((d_model,), jnp.float32) * mass_scale

    def __call__(self, field, steps=10):
        return field_evolution(field, g=self.g, dt=self.dt, steps=steps)


if __name__ == "__main__":
    # Small shapes consistent with the module: (batch, seq_len, d_model)
    B, S, D = 2, 8, 32
    key = jax.random.PRNGKey(0)
    field = jax.random.normal(key, (B, S, D), dtype=jnp.float32)

    module = FieldEvolutionPallas(d_model=D, g=0.01, dt=0.1, mass_scale=1.0)
    out = module(field, steps=10)
    jax.block_until_ready(out)
    assert out.shape == (B, S, D)
    print("KERNEL_OK")
</pallas_src>

<mosaic_0001>
module attributes {stable_mosaic.version = 11 : i64} {
  func.func @_field_evolution_kernel(%arg0: i32, %arg1: memref<1x8x32xf32, #tpu.memory_space<vmem>>, %arg2: memref<1x8x32xf32, #tpu.memory_space<vmem>>) attributes {dimension_semantics = [#tpu.dimension_semantics<parallel>], iteration_bounds = array<i64: 2>, scalar_prefetch = 0 : i64, scratch_operands = 0 : i64, tpu.core_type = #tpu.core_type<tc>, window_params = [{transform_indices = @transform_0, window_bounds = array<i64: 1, 8, 32>}, {transform_indices = @transform_1, window_bounds = array<i64: 1, 8, 32>}]} {
    %c0 = arith.constant 0 : index
    %c0_0 = arith.constant 0 : index
    %c0_1 = arith.constant 0 : index
    %0 = vector.load %arg1[%c0, %c0_0, %c0_1] : memref<1x8x32xf32, #tpu.memory_space<vmem>>, vector<1x8x32xf32>
    %1 = tpu.iota {dimensions = array<i32: 0>} : vector<8x8xi32>
    %2 = tpu.iota {dimensions = array<i32: 1>} : vector<8x8xi32>
    %3 = arith.cmpi eq, %1, %2 : vector<8x8xi32>
    %cst = arith.constant 0.000000e+00 : f32
    %cst_2 = arith.constant 0.00999999977 : f32
    %4 = vector.broadcast %cst : f32 to vector<8x8xf32>
    %5 = vector.broadcast %cst_2 : f32 to vector<8x8xf32>
    %6 = arith.select %3, %4, %5 : vector<8x8xi1>, vector<8x8xf32>
    %7 = arith.extui %3 : vector<8x8xi1> to vector<8x8xi32>
    %8 = arith.sitofp %7 : vector<8x8xi32> to vector<8x8xf32>
    %cst_3 = arith.constant 9.99999993E-9 : f32
    %cst_4 = arith.constant 5.000000e-02 : f32
    %cst_5 = arith.constant 1.000000e-01 : f32
    %cst_6 = arith.constant 1.000000e+00 : f32
    %c0_i32 = arith.constant 0 : i32
    "tpu.trace_start"() <{level = 10 : i32, message = "bqd,bkd->bqk"}> : () -> ()
    %cst_7 = arith.constant dense<0.000000e+00> : vector<1x8x8xf32>
    %9 = tpu.matmul %0, %0, %cst_7 {dimension_numbers = #tpu.dot_dimension_numbers<[2], [2], [1], [1], [0, 0, 0, 1, 1, 1], [0], [0]>} : vector<1x8x32xf32>, vector<1x8x32xf32>, vector<1x8x8xf32> -> vector<1x8x8xf32>
    "tpu.trace_stop"() : () -> ()
    %10 = vector.shape_cast %8 : vector<8x8xf32> to vector<1x8x8xf32>
    %11 = arith.mulf %9, %10 : vector<1x8x8xf32>
    %cst_8 = arith.constant dense<0.000000e+00> : vector<1x8xf32>
    %12 = vector.multi_reduction <add>, %11, %cst_8 [2] : vector<1x8x8xf32> to vector<1x8xf32>
    %13 = vector.shape_cast %12 : vector<1x8xf32> to vector<1x8x1xf32>
    %cst_9 = arith.constant dense<0.000000e+00> : vector<1x8xf32>
    %14 = vector.multi_reduction <add>, %11, %cst_9 [1] : vector<1x8x8xf32> to vector<1x8xf32>
    %15 = vector.shape_cast %14 : vector<1x8xf32> to vector<1x1x8xf32>
    %16 = vector.broadcast %13 : vector<1x8x1xf32> to vector<1x8x8xf32>
    %17 = vector.broadcast %15 : vector<1x1x8xf32> to vector<1x8x8xf32>
    %18 = arith.addf %16, %17 : vector<1x8x8xf32>
    %cst_10 = arith.constant 2.000000e+00 : f32
    %19 = vector.broadcast %cst_10 : f32 to vector<1x8x8xf32>
    %20 = arith.mulf %19, %9 : vector<1x8x8xf32>
    %21 = arith.subf %18, %20 : vector<1x8x8xf32>
    %cst_11 = arith.constant 0.000000e+00 : f32
    %22 = vector.broadcast %cst_11 : f32 to vector<1x8x8xf32>
    %23 = arith.maximumf %21, %22 : vector<1x8x8xf32>
    %24 = math.sqrt %23 : vector<1x8x8xf32>
    %25 = vector.broadcast %cst_3 : f32 to vector<1x8x8xf32>
    %26 = arith.addf %24, %25 : vector<1x8x8xf32>
    %27 = tpu.reciprocal %26 {approx = true} : vector<1x8x8xf32> -> vector<1x8x8xf32>
    %28 = vector.shape_cast %6 : vector<8x8xf32> to vector<1x8x8xf32>
    %29 = arith.mulf %28, %27 : vector<1x8x8xf32>
    "tpu.trace_start"() <{level = 10 : i32, message = "bqk,bkd->bqd"}> : () -> ()
    %cst_12 = arith.constant dense<0.000000e+00> : vector<1x8x32xf32>
    %30 = tpu.matmul %29, %0, %cst_12 {dimension_numbers = #tpu.dot_dimension_numbers<[2], [1], [1], [2], [0, 0, 0, 1, 1, 2], [0], [0]>} : vector<1x8x8xf32>, vector<1x8x32xf32>, vector<1x8x32xf32> -> vector<1x8x32xf32>
    "tpu.trace_stop"() : () -> ()
    %31 = vector.broadcast %cst_4 : f32 to vector<1x8x32xf32>
    %32 = arith.mulf %31, %30 : vector<1x8x32xf32>
    %33 = arith.addf %0, %32 : vector<1x8x32xf32>
    "tpu.trace_start"() <{level = 10 : i32, message = "bqd,bkd->bqk"}> : () -> ()
    %cst_13 = arith.constant dense<0.000000e+00> : vector<1x8x8xf32>
    %34 = tpu.matmul %33, %33, %cst_13 {dimension_numbers = #tpu.dot_dimension_numbers<[2], [2], [1], [1], [0, 0, 0, 1, 1, 1], [0], [0]>} : vector<1x8x32xf32>, vector<1x8x32xf32>, vector<1x8x8xf32> -> vector<1x8x8xf32>
    "tpu.trace_stop"() : () -> ()
    %35 = vector.shape_cast %8 : vector<8x8xf32> to vector<1x8x8xf32>
    %36 = arith.mulf %34, %35 : vector<1x8x8xf32>
    %cst_14 = arith.constant dense<0.000000e+00> : vector<1x8xf32>
    %37 = vector.multi_reduction <add>, %36, %cst_14 [2] : vector<1x8x8xf32> to vector<1x8xf32>
    %38 = vector.shape_cast %37 : vector<1x8xf32> to vector<1x8x1xf32>
    %cst_15 = arith.constant dense<0.000000e+00> : vector<1x8xf32>
    %39 = vector.multi_reduction <add>, %36, %cst_15 [1] : vector<1x8x8xf32> to vector<1x8xf32>
    %40 = vector.shape_cast %39 : vector<1x8xf32> to vector<1x1x8xf32>
    %41 = vector.broadcast %38 : vector<1x8x1xf32> to vector<1x8x8xf32>
    %42 = vector.broadcast %40 : vector<1x1x8xf32> to vector<1x8x8xf32>
    %43 = arith.addf %41, %42 : vector<1x8x8xf32>
    %cst_16 = arith.constant 2.000000e+00 : f32
    %44 = vector.broadcast %cst_16 : f32 to vector<1x8x8xf32>
    %45 = arith.mulf %44, %34 : vector<1x8x8xf32>
    %46 = arith.subf %43, %45 : vector<1x8x8xf32>
    %cst_17 = arith.constant 0.000000e+00 : f32
    %47 = vector.broadcast %cst_17 : f32 to vector<1x8x8xf32>
    %48 = arith.maximumf %46, %47 : vector<1x8x8xf32>
    %49 = math.sqrt %48 : vector<1x8x8xf32>
    %50 = vector.broadcast %cst_3 : f32 to vector<1x8x8xf32>
    %51 = arith.addf %49, %50 : vector<1x8x8xf32>
    %52 = tpu.reciprocal %51 {approx = true} : vector<1x8x8xf32> -> vector<1x8x8xf32>
    %53 = vector.shape_cast %6 : vector<8x8xf32> to vector<1x8x8xf32>
    %54 = arith.mulf %53, %52 : vector<1x8x8xf32>
    "tpu.trace_start"() <{level = 10 : i32, message = "bqk,bkd->bqd"}> : () -> ()
    %cst_18 = arith.constant dense<0.000000e+00> : vector<1x8x32xf32>
    %55 = tpu.matmul %54, %33, %cst_18 {dimension_numbers = #tpu.dot_dimension_numbers<[2], [1], [1], [2], [0, 0, 0, 1, 1, 2], [0], [0]>} : vector<1x8x8xf32>, vector<1x8x32xf32>, vector<1x8x32xf32> -> vector<1x8x32xf32>
    "tpu.trace_stop"() : () -> ()
    %56 = vector.broadcast %cst_5 : f32 to vector<1x8x32xf32>
    %57 = arith.mulf %56, %55 : vector<1x8x32xf32>
    %58 = arith.addf %0, %57 : vector<1x8x32xf32>
    %59 = arith.mulf %58, %58 : vector<1x8x32xf32>
    %cst_19 = arith.constant dense<0.000000e+00> : vector<1x8xf32>
    %60 = vector.multi_reduction <add>, %59, %cst_19 [2] : vector<1x8x32xf32> to vector<1x8xf32>
    %61 = vector.shape_cast %60 : vector<1x8xf32> to vector<1x8x1xf32>
    %62 = math.sqrt %61 : vector<1x8x1xf32>
    %63 = vector.broadcast %cst_3 : f32 to vector<1x8x1xf32>
    %64 = arith.addf %62, %63 : vector<1x8x1xf32>
    %65 = vector.broadcast %cst_6 : f32 to vector<1x8x1xf32>
    %66 = arith.divf %65, %64 : vector<1x8x1xf32>
    %67 = vector.broadcast %66 : vector<1x8x1xf32> to vector<1x8x32xf32>
    %68 = arith.mulf %58, %67 : vector<1x8x32xf32>
    %c1_i32 = arith.constant 1 : i32
    "tpu.trace_start"() <{level = 10 : i32, message = "bqd,bkd->bqk"}> : () -> ()
    %cst_20 = arith.constant dense<0.000000e+00> : vector<1x8x8xf32>
    %69 = tpu.matmul %68, %68, %cst_20 {dimension_numbers = #tpu.dot_dimension_numbers<[2], [2], [1], [1], [0, 0, 0, 1, 1, 1], [0], [0]>} : vector<1x8x32xf32>, vector<1x8x32xf32>, vector<1x8x8xf32> -> vector<1x8x8xf32>
    "tpu.trace_stop"() : () -> ()
    %70 = vector.shape_cast %8 : vector<8x8xf32> to vector<1x8x8xf32>
    %71 = arith.mulf %69, %70 : vector<1x8x8xf32>
    %cst_21 = arith.constant dense<0.000000e+00> : vector<1x8xf32>
    %72 = vector.multi_reduction <add>, %71, %cst_21 [2] : vector<1x8x8xf32> to vector<1x8xf32>
    %73 = vector.shape_cast %72 : vector<1x8xf32> to vector<1x8x1xf32>
    %cst_22 = arith.constant dense<0.000000e+00> : vector<1x8xf32>
    %74 = vector.multi_reduction <add>, %71, %cst_22 [1] : vector<1x8x8xf32> to vector<1x8xf32>
    %75 = vector.shape_cast %74 : vector<1x8xf32> to vector<1x1x8xf32>
    %76 = vector.broadcast %73 : vector<1x8x1xf32> to vector<1x8x8xf32>
    %77 = vector.broadcast %75 : vector<1x1x8xf32> to vector<1x8x8xf32>
    %78 = arith.addf %76, %77 : vector<1x8x8xf32>
    %cst_23 = arith.constant 2.000000e+00 : f32
    %79 = vector.broadcast %cst_23 : f32 to vector<1x8x8xf32>
    %80 = arith.mulf %79, %69 : vector<1x8x8xf32>
    %81 = arith.subf %78, %80 : vector<1x8x8xf32>
    %cst_24 = arith.constant 0.000000e+00 : f32
    %82 = vector.broadcast %cst_24 : f32 to vector<1x8x8xf32>
    %83 = arith.maximumf %81, %82 : vector<1x8x8xf32>
    %84 = math.sqrt %83 : vector<1x8x8xf32>
    %85 = vector.broadcast %cst_3 : f32 to vector<1x8x8xf32>
    %86 = arith.addf %84, %85 : vector<1x8x8xf32>
    %87 = tpu.reciprocal %86 {approx = true} : vector<1x8x8xf32> -> vector<1x8x8xf32>
    %88 = vector.shape_cast %6 : vector<8x8xf32> to vector<1x8x8xf32>
    %89 = arith.mulf %88, %87 : vector<1x8x8xf32>
    "tpu.trace_start"() <{level = 10 : i32, message = "bqk,bkd->bqd"}> : () -> ()
    %cst_25 = arith.constant dense<0.000000e+00> : vector<1x8x32xf32>
    %90 = tpu.matmul %89, %68, %cst_25 {dimension_numbers = #tpu.dot_dimension_numbers<[2], [1], [1], [2], [0, 0, 0, 1, 1, 2], [0], [0]>} : vector<1x8x8xf32>, vector<1x8x32xf32>, vector<1x8x32xf32> -> vector<1x8x32xf32>
    "tpu.trace_stop"() : () -> ()
    %91 = vector.broadcast %cst_4 : f32 to vector<1x8x32xf32>
    %92 = arith.mulf %91, %90 : vector<1x8x32xf32>
    %93 = arith.addf %68, %92 : vector<1x8x32xf32>
    "tpu.trace_start"() <{level = 10 : i32, message = "bqd,bkd->bqk"}> : () -> ()
    %cst_26 = arith.constant dense<0.000000e+00> : vector<1x8x8xf32>
    %94 = tpu.matmul %93, %93, %cst_26 {dimension_numbers = #tpu.dot_dimension_numbers<[2], [2], [1], [1], [0, 0, 0, 1, 1, 1], [0], [0]>} : vector<1x8x32xf32>, vector<1x8x32xf32>, vector<1x8x8xf32> -> vector<1x8x8xf32>
    "tpu.trace_stop"() : () -> ()
    %95 = vector.shape_cast %8 : vector<8x8xf32> to vector<1x8x8xf32>
    %96 = arith.mulf %94, %95 : vector<1x8x8xf32>
    %cst_27 = arith.constant dense<0.000000e+00> : vector<1x8xf32>
    %97 = vector.multi_reduction <add>, %96, %cst_27 [2] : vector<1x8x8xf32> to vector<1x8xf32>
    %98 = vector.shape_cast %97 : vector<1x8xf32> to vector<1x8x1xf32>
    %cst_28 = arith.constant dense<0.000000e+00> : vector<1x8xf32>
    %99 = vector.multi_reduction <add>, %96, %cst_28 [1] : vector<1x8x8xf32> to vector<1x8xf32>
    %100 = vector.shape_cast %99 : vector<1x8xf32> to vector<1x1x8xf32>
    %101 = vector.broadcast %98 : vector<1x8x1xf32> to vector<1x8x8xf32>
    %102 = vector.broadcast %100 : vector<1x1x8xf32> to vector<1x8x8xf32>
    %103 = arith.addf %101, %102 : vector<1x8x8xf32>
    %cst_29 = arith.constant 2.000000e+00 : f32
    %104 = vector.broadcast %cst_29 : f32 to vector<1x8x8xf32>
    %105 = arith.mulf %104, %94 : vector<1x8x8xf32>
    %106 = arith.subf %103, %105 : vector<1x8x8xf32>
    %cst_30 = arith.constant 0.000000e+00 : f32
    %107 = vector.broadcast %cst_30 : f32 to vector<1x8x8xf32>
    %108 = arith.maximumf %106, %107 : vector<1x8x8xf32>
    %109 = math.sqrt %108 : vector<1x8x8xf32>
    %110 = vector.broadcast %cst_3 : f32 to vector<1x8x8xf32>
    %111 = arith.addf %109, %110 : vector<1x8x8xf32>
    %112 = tpu.reciprocal %111 {approx = true} : vector<1x8x8xf32> -> vector<1x8x8xf32>
    %113 = vector.shape_cast %6 : vector<8x8xf32> to vector<1x8x8xf32>
    %114 = arith.mulf %113, %112 : vector<1x8x8xf32>
    "tpu.trace_start"() <{level = 10 : i32, message = "bqk,bkd->bqd"}> : () -> ()
    %cst_31 = arith.constant dense<0.000000e+00> : vector<1x8x32xf32>
    %115 = tpu.matmul %114, %93, %cst_31 {dimension_numbers = #tpu.dot_dimension_numbers<[2], [1], [1], [2], [0, 0, 0, 1, 1, 2], [0], [0]>} : vector<1x8x8xf32>, vector<1x8x32xf32>, vector<1x8x32xf32> -> vector<1x8x32xf32>
    "tpu.trace_stop"() : () -> ()
    %116 = vector.broadcast %cst_5 : f32 to vector<1x8x32xf32>
    %117 = arith.mulf %116, %115 : vector<1x8x32xf32>
    %118 = arith.addf %68, %117 : vector<1x8x32xf32>
    %119 = arith.mulf %118, %118 : vector<1x8x32xf32>
    %cst_32 = arith.constant dense<0.000000e+00> : vector<1x8xf32>
    %120 = vector.multi_reduction <add>, %119, %cst_32 [2] : vector<1x8x32xf32> to vector<1x8xf32>
    %121 = vector.shape_cast %120 : vector<1x8xf32> to vector<1x8x1xf32>
    %122 = math.sqrt %121 : vector<1x8x1xf32>
    %123 = vector.broadcast %cst_3 : f32 to vector<1x8x1xf32>
    %124 = arith.addf %122, %123 : vector<1x8x1xf32>
    %125 = vector.broadcast %cst_6 : f32 to vector<1x8x1xf32>
    %126 = arith.divf %125, %124 : vector<1x8x1xf32>
    %127 = vector.broadcast %126 : vector<1x8x1xf32> to vector<1x8x32xf32>
    %128 = arith.mulf %118, %127 : vector<1x8x32xf32>
    %c2_i32 = arith.constant 2 : i32
    "tpu.trace_start"() <{level = 10 : i32, message = "bqd,bkd->bqk"}> : () -> ()
    %cst_33 = arith.constant dense<0.000000e+00> : vector<1x8x8xf32>
    %129 = tpu.matmul %128, %128, %cst_33 {dimension_numbers = #tpu.dot_dimension_numbers<[2], [2], [1], [1], [0, 0, 0, 1, 1, 1], [0], [0]>} : vector<1x8x32xf32>, vector<1x8x32xf32>, vector<1x8x8xf32> -> vector<1x8x8xf32>
    "tpu.trace_stop"() : () -> ()
    %130 = vector.shape_cast %8 : vector<8x8xf32> to vector<1x8x8xf32>
    %131 = arith.mulf %129, %130 : vector<1x8x8xf32>
    %cst_34 = arith.constant dense<0.000000e+00> : vector<1x8xf32>
    %132 = vector.multi_reduction <add>, %131, %cst_34 [2] : vector<1x8x8xf32> to vector<1x8xf32>
    %133 = vector.shape_cast %132 : vector<1x8xf32> to vector<1x8x1xf32>
    %cst_35 = arith.constant dense<0.000000e+00> : vector<1x8xf32>
    %134 = vector.multi_reduction <add>, %131, %cst_35 [1] : vector<1x8x8xf32> to vector<1x8xf32>
    %135 = vector.shape_cast %134 : vector<1x8xf32> to vector<1x1x8xf32>
    %136 = vector.broadcast %133 : vector<1x8x1xf32> to vector<1x8x8xf32>
    %137 = vector.broadcast %135 : vector<1x1x8xf32> to vector<1x8x8xf32>
    %138 = arith.addf %136, %137 : vector<1x8x8xf32>
    %cst_36 = arith.constant 2.000000e+00 : f32
    %139 = vector.broadcast %cst_36 : f32 to vector<1x8x8xf32>
    %140 = arith.mulf %139, %129 : vector<1x8x8xf32>
    %141 = arith.subf %138, %140 : vector<1x8x8xf32>
    %cst_37 = arith.constant 0.000000e+00 : f32
    %142 = vector.broadcast %cst_37 : f32 to vector<1x8x8xf32>
    %143 = arith.maximumf %141, %142 : vector<1x8x8xf32>
    %144 = math.sqrt %143 : vector<1x8x8xf32>
    %145 = vector.broadcast %cst_3 : f32 to vector<1x8x8xf32>
    %146 = arith.addf %144, %145 : vector<1x8x8xf32>
    %147 = tpu.reciprocal %146 {approx = true} : vector<1x8x8xf32> -> vector<1x8x8xf32>
    %148 = vector.shape_cast %6 : vector<8x8xf32> to vector<1x8x8xf32>
    %149 = arith.mulf %148, %147 : vector<1x8x8xf32>
    "tpu.trace_start"() <{level = 10 : i32, message = "bqk,bkd->bqd"}> : () -> ()
    %cst_38 = arith.constant dense<0.000000e+00> : vector<1x8x32xf32>
    %150 = tpu.matmul %149, %128, %cst_38 {dimension_numbers = #tpu.dot_dimension_numbers<[2], [1], [1], [2], [0, 0, 0, 1, 1, 2], [0], [0]>} : vector<1x8x8xf32>, vector<1x8x32xf32>, vector<1x8x32xf32> -> vector<1x8x32xf32>
    "tpu.trace_stop"() : () -> ()
    %151 = vector.broadcast %cst_4 : f32 to vector<1x8x32xf32>
    %152 = arith.mulf %151, %150 : vector<1x8x32xf32>
    %153 = arith.addf %128, %152 : vector<1x8x32xf32>
    "tpu.trace_start"() <{level = 10 : i32, message = "bqd,bkd->bqk"}> : () -> ()
    %cst_39 = arith.constant dense<0.000000e+00> : vector<1x8x8xf32>
    %154 = tpu.matmul %153, %153, %cst_39 {dimension_numbers = #tpu.dot_dimension_numbers<[2], [2], [1], [1], [0, 0, 0, 1, 1, 1], [0], [0]>} : vector<1x8x32xf32>, vector<1x8x32xf32>, vector<1x8x8xf32> -> vector<1x8x8xf32>
    "tpu.trace_stop"() : () -> ()
    %155 = vector.shape_cast %8 : vector<8x8xf32> to vector<1x8x8xf32>
    %156 = arith.mulf %154, %155 : vector<1x8x8xf32>
    %cst_40 = arith.constant dense<0.000000e+00> : vector<1x8xf32>
    %157 = vector.multi_reduction <add>, %156, %cst_40 [2] : vector<1x8x8xf32> to vector<1x8xf32>
    %158 = vector.shape_cast %157 : vector<1x8xf32> to vector<1x8x1xf32>
    %cst_41 = arith.constant dense<0.000000e+00> : vector<1x8xf32>
    %159 = vector.multi_reduction <add>, %156, %cst_41 [1] : vector<1x8x8xf32> to vector<1x8xf32>
    %160 = vector.shape_cast %159 : vector<1x8xf32> to vector<1x1x8xf32>
    %161 = vector.broadcast %158 : vector<1x8x1xf32> to vector<1x8x8xf32>
    %162 = vector.broadcast %160 : vector<1x1x8xf32> to vector<1x8x8xf32>
    %163 = arith.addf %161, %162 : vector<1x8x8xf32>
    %cst_42 = arith.constant 2.000000e+00 : f32
    %164 = vector.broadcast %cst_42 : f32 to vector<1x8x8xf32>
    %165 = arith.mulf %164, %154 : vector<1x8x8xf32>
    %166 = arith.subf %163, %165 : vector<1x8x8xf32>
    %cst_43 = arith.constant 0.000000e+00 : f32
    %167 = vector.broadcast %cst_43 : f32 to vector<1x8x8xf32>
    %168 = arith.maximumf %166, %167 : vector<1x8x8xf32>
    %169 = math.sqrt %168 : vector<1x8x8xf32>
    %170 = vector.broadcast %cst_3 : f32 to vector<1x8x8xf32>
    %171 = arith.addf %169, %170 : vector<1x8x8xf32>
    %172 = tpu.reciprocal %171 {approx = true} : vector<1x8x8xf32> -> vector<1x8x8xf32>
    %173 = vector.shape_cast %6 : vector<8x8xf32> to vector<1x8x8xf32>
    %174 = arith.mulf %173, %172 : vector<1x8x8xf32>
    "tpu.trace_start"() <{level = 10 : i32, message = "bqk,bkd->bqd"}> : () -> ()
    %cst_44 = arith.constant dense<0.000000e+00> : vector<1x8x32xf32>
    %175 = tpu.matmul %174, %153, %cst_44 {dimension_numbers = #tpu.dot_dimension_numbers<[2], [1], [1], [2], [0, 0, 0, 1, 1, 2], [0], [0]>} : vector<1x8x8xf32>, vector<1x8x32xf32>, vector<1x8x32xf32> -> vector<1x8x32xf32>
    "tpu.trace_stop"() : () -> ()
    %176 = vector.broadcast %cst_5 : f32 to vector<1x8x32xf32>
    %177 = arith.mulf %176, %175 : vector<1x8x32xf32>
    %178 = arith.addf %128, %177 : vector<1x8x32xf32>
    %179 = arith.mulf %178, %178 : vector<1x8x32xf32>
    %cst_45 = arith.constant dense<0.000000e+00> : vector<1x8xf32>
    %180 = vector.multi_reduction <add>, %179, %cst_45 [2] : vector<1x8x32xf32> to vector<1x8xf32>
    %181 = vector.shape_cast %180 : vector<1x8xf32> to vector<1x8x1xf32>
    %182 = math.sqrt %181 : vector<1x8x1xf32>
    %183 = vector.broadcast %cst_3 : f32 to vector<1x8x1xf32>
    %184 = arith.addf %182, %183 : vector<1x8x1xf32>
    %185 = vector.broadcast %cst_6 : f32 to vector<1x8x1xf32>
    %186 = arith.divf %185, %184 : vector<1x8x1xf32>
    %187 = vector.broadcast %186 : vector<1x8x1xf32> to vector<1x8x32xf32>
    %188 = arith.mulf %178, %187 : vector<1x8x32xf32>
    %c3_i32 = arith.constant 3 : i32
    "tpu.trace_start"() <{level = 10 : i32, message = "bqd,bkd->bqk"}> : () -> ()
    %cst_46 = arith.constant dense<0.000000e+00> : vector<1x8x8xf32>
    %189 = tpu.matmul %188, %188, %cst_46 {dimension_numbers = #tpu.dot_dimension_numbers<[2], [2], [1], [1], [0, 0, 0, 1, 1, 1], [0], [0]>} : vector<1x8x32xf32>, vector<1x8x32xf32>, vector<1x8x8xf32> -> vector<1x8x8xf32>
    "tpu.trace_stop"() : () -> ()
    %190 = vector.shape_cast %8 : vector<8x8xf32> to vector<1x8x8xf32>
    %191 = arith.mulf %189, %190 : vector<1x8x8xf32>
    %cst_47 = arith.constant dense<0.000000e+00> : vector<1x8xf32>
    %192 = vector.multi_reduction <add>, %191, %cst_47 [2] : vector<1x8x8xf32> to vector<1x8xf32>
    %193 = vector.shape_cast %192 : vector<1x8xf32> to vector<1x8x1xf32>
    %cst_48 = arith.constant dense<0.000000e+00> : vector<1x8xf32>
    %194 = vector.multi_reduction <add>, %191, %cst_48 [1] : vector<1x8x8xf32> to vector<1x8xf32>
    %195 = vector.shape_cast %194 : vector<1x8xf32> to vector<1x1x8xf32>
    %196 = vector.broadcast %193 : vector<1x8x1xf32> to vector<1x8x8xf32>
    %197 = vector.broadcast %195 : vector<1x1x8xf32> to vector<1x8x8xf32>
    %198 = arith.addf %196, %197 : vector<1x8x8xf32>
    %cst_49 = arith.constant 2.000000e+00 : f32
    %199 = vector.broadcast %cst_49 : f32 to vector<1x8x8xf32>
    %200 = arith.mulf %199, %189 : vector<1x8x8xf32>
    %201 = arith.subf %198, %200 : vector<1x8x8xf32>
    %cst_50 = arith.constant 0.000000e+00 : f32
    %202 = vector.broadcast %cst_50 : f32 to vector<1x8x8xf32>
    %203 = arith.maximumf %201, %202 : vector<1x8x8xf32>
    %204 = math.sqrt %203 : vector<1x8x8xf32>
    %205 = vector.broadcast %cst_3 : f32 to vector<1x8x8xf32>
    %206 = arith.addf %204, %205 : vector<1x8x8xf32>
    %207 = tpu.reciprocal %206 {approx = true} : vector<1x8x8xf32> -> vector<1x8x8xf32>
    %208 = vector.shape_cast %6 : vector<8x8xf32> to vector<1x8x8xf32>
    %209 = arith.mulf %208, %207 : vector<1x8x8xf32>
    "tpu.trace_start"() <{level = 10 : i32, message = "bqk,bkd->bqd"}> : () -> ()
    %cst_51 = arith.constant dense<0.000000e+00> : vector<1x8x32xf32>
    %210 = tpu.matmul %209, %188, %cst_51 {dimension_numbers = #tpu.dot_dimension_numbers<[2], [1], [1], [2], [0, 0, 0, 1, 1, 2], [0], [0]>} : vector<1x8x8xf32>, vector<1x8x32xf32>, vector<1x8x32xf32> -> vector<1x8x32xf32>
    "tpu.trace_stop"() : () -> ()
    %211 = vector.broadcast %cst_4 : f32 to vector<1x8x32xf32>
    %212 = arith.mulf %211, %210 : vector<1x8x32xf32>
    %213 = arith.addf %188, %212 : vector<1x8x32xf32>
    "tpu.trace_start"() <{level = 10 : i32, message = "bqd,bkd->bqk"}> : () -> ()
    %cst_52 = arith.constant dense<0.000000e+00> : vector<1x8x8xf32>
    %214 = tpu.matmul %213, %213, %cst_52 {dimension_numbers = #tpu.dot_dimension_numbers<[2], [2], [1], [1], [0, 0, 0, 1, 1, 1], [0], [0]>} : vector<1x8x32xf32>, vector<1x8x32xf32>, vector<1x8x8xf32> -> vector<1x8x8xf32>
    "tpu.trace_stop"() : () -> ()
    %215 = vector.shape_cast %8 : vector<8x8xf32> to vector<1x8x8xf32>
    %216 = arith.mulf %214, %215 : vector<1x8x8xf32>
    %cst_53 = arith.constant dense<0.000000e+00> : vector<1x8xf32>
    %217 = vector.multi_reduction <add>, %216, %cst_53 [2] : vector<1x8x8xf32> to vector<1x8xf32>
    %218 = vector.shape_cast %217 : vector<1x8xf32> to vector<1x8x1xf32>
    %cst_54 = arith.constant dense<0.000000e+00> : vector<1x8xf32>
    %219 = vector.multi_reduction <add>, %216, %cst_54 [1] : vector<1x8x8xf32> to vector<1x8xf32>
    %220 = vector.shape_cast %219 : vector<1x8xf32> to vector<1x1x8xf32>
    %221 = vector.broadcast %218 : vector<1x8x1xf32> to vector<1x8x8xf32>
    %222 = vector.broadcast %220 : vector<1x1x8xf32> to vector<1x8x8xf32>
    %223 = arith.addf %221, %222 : vector<1x8x8xf32>
    %cst_55 = arith.constant 2.000000e+00 : f32
    %224 = vector.broadcast %cst_55 : f32 to vector<1x8x8xf32>
    %225 = arith.mulf %224, %214 : vector<1x8x8xf32>
    %226 = arith.subf %223, %225 : vector<1x8x8xf32>
    %cst_56 = arith.constant 0.000000e+00 : f32
    %227 = vector.broadcast %cst_56 : f32 to vector<1x8x8xf32>
    %228 = arith.maximumf %226, %227 : vector<1x8x8xf32>
    %229 = math.sqrt %228 : vector<1x8x8xf32>
    %230 = vector.broadcast %cst_3 : f32 to vector<1x8x8xf32>
    %231 = arith.addf %229, %230 : vector<1x8x8xf32>
    %232 = tpu.reciprocal %231 {approx = true} : vector<1x8x8xf32> -> vector<1x8x8xf32>
    %233 = vector.shape_cast %6 : vector<8x8xf32> to vector<1x8x8xf32>
    %234 = arith.mulf %233, %232 : vector<1x8x8xf32>
    "tpu.trace_start"() <{level = 10 : i32, message = "bqk,bkd->bqd"}> : () -> ()
    %cst_57 = arith.constant dense<0.000000e+00> : vector<1x8x32xf32>
    %235 = tpu.matmul %234, %213, %cst_57 {dimension_numbers = #tpu.dot_dimension_numbers<[2], [1], [1], [2], [0, 0, 0, 1, 1, 2], [0], [0]>} : vector<1x8x8xf32>, vector<1x8x32xf32>, vector<1x8x32xf32> -> vector<1x8x32xf32>
    "tpu.trace_stop"() : () -> ()
    %236 = vector.broadcast %cst_5 : f32 to vector<1x8x32xf32>
    %237 = arith.mulf %236, %235 : vector<1x8x32xf32>
    %238 = arith.addf %188, %237 : vector<1x8x32xf32>
    %239 = arith.mulf %238, %238 : vector<1x8x32xf32>
    %cst_58 = arith.constant dense<0.000000e+00> : vector<1x8xf32>
    %240 = vector.multi_reduction <add>, %239, %cst_58 [2] : vector<1x8x32xf32> to vector<1x8xf32>
    %241 = vector.shape_cast %240 : vector<1x8xf32> to vector<1x8x1xf32>
    %242 = math.sqrt %241 : vector<1x8x1xf32>
    %243 = vector.broadcast %cst_3 : f32 to vector<1x8x1xf32>
    %244 = arith.addf %242, %243 : vector<1x8x1xf32>
    %245 = vector.broadcast %cst_6 : f32 to vector<1x8x1xf32>
    %246 = arith.divf %245, %244 : vector<1x8x1xf32>
    %247 = vector.broadcast %246 : vector<1x8x1xf32> to vector<1x8x32xf32>
    %248 = arith.mulf %238, %247 : vector<1x8x32xf32>
    %c4_i32 = arith.constant 4 : i32
    "tpu.trace_start"() <{level = 10 : i32, message = "bqd,bkd->bqk"}> : () -> ()
    %cst_59 = arith.constant dense<0.000000e+00> : vector<1x8x8xf32>
    %249 = tpu.matmul %248, %248, %cst_59 {dimension_numbers = #tpu.dot_dimension_numbers<[2], [2], [1], [1], [0, 0, 0, 1, 1, 1], [0], [0]>} : vector<1x8x32xf32>, vector<1x8x32xf32>, vector<1x8x8xf32> -> vector<1x8x8xf32>
    "tpu.trace_stop"() : () -> ()
    %250 = vector.shape_cast %8 : vector<8x8xf32> to vector<1x8x8xf32>
    %251 = arith.mulf %249, %250 : vector<1x8x8xf32>
    %cst_60 = arith.constant dense<0.000000e+00> : vector<1x8xf32>
    %252 = vector.multi_reduction <add>, %251, %cst_60 [2] : vector<1x8x8xf32> to vector<1x8xf32>
    %253 = vector.shape_cast %252 : vector<1x8xf32> to vector<1x8x1xf32>
    %cst_61 = arith.constant dense<0.000000e+00> : vector<1x8xf32>
    %254 = vector.multi_reduction <add>, %251, %cst_61 [1] : vector<1x8x8xf32> to vector<1x8xf32>
    %255 = vector.shape_cast %254 : vector<1x8xf32> to vector<1x1x8xf32>
    %256 = vector.broadcast %253 : vector<1x8x1xf32> to vector<1x8x8xf32>
    %257 = vector.broadcast %255 : vector<1x1x8xf32> to vector<1x8x8xf32>
    %258 = arith.addf %256, %257 : vector<1x8x8xf32>
    %cst_62 = arith.constant 2.000000e+00 : f32
    %259 = vector.broadcast %cst_62 : f32 to vector<1x8x8xf32>
    %260 = arith.mulf %259, %249 : vector<1x8x8xf32>
    %261 = arith.subf %258, %260 : vector<1x8x8xf32>
    %cst_63 = arith.constant 0.000000e+00 : f32
    %262 = vector.broadcast %cst_63 : f32 to vector<1x8x8xf32>
    %263 = arith.maximumf %261, %262 : vector<1x8x8xf32>
    %264 = math.sqrt %263 : vector<1x8x8xf32>
    %265 = vector.broadcast %cst_3 : f32 to vector<1x8x8xf32>
    %266 = arith.addf %264, %265 : vector<1x8x8xf32>
    %267 = tpu.reciprocal %266 {approx = true} : vector<1x8x8xf32> -> vector<1x8x8xf32>
    %268 = vector.shape_cast %6 : vector<8x8xf32> to vector<1x8x8xf32>
    %269 = arith.mulf %268, %267 : vector<1x8x8xf32>
    "tpu.trace_start"() <{level = 10 : i32, message = "bqk,bkd->bqd"}> : () -> ()
    %cst_64 = arith.constant dense<0.000000e+00> : vector<1x8x32xf32>
    %270 = tpu.matmul %269, %248, %cst_64 {dimension_numbers = #tpu.dot_dimension_numbers<[2], [1], [1], [2], [0, 0, 0, 1, 1, 2], [0], [0]>} : vector<1x8x8xf32>, vector<1x8x32xf32>, vector<1x8x32xf32> -> vector<1x8x32xf32>
    "tpu.trace_stop"() : () -> ()
    %271 = vector.broadcast %cst_4 : f32 to vector<1x8x32xf32>
    %272 = arith.mulf %271, %270 : vector<1x8x32xf32>
    %273 = arith.addf %248, %272 : vector<1x8x32xf32>
    "tpu.trace_start"() <{level = 10 : i32, message = "bqd,bkd->bqk"}> : () -> ()
    %cst_65 = arith.constant dense<0.000000e+00> : vector<1x8x8xf32>
    %274 = tpu.matmul %273, %273, %cst_65 {dimension_numbers = #tpu.dot_dimension_numbers<[2], [2], [1], [1], [0, 0, 0, 1, 1, 1], [0], [0]>} : vector<1x8x32xf32>, vector<1x8x32xf32>, vector<1x8x8xf32> -> vector<1x8x8xf32>
    "tpu.trace_stop"() : () -> ()
    %275 = vector.shape_cast %8 : vector<8x8xf32> to vector<1x8x8xf32>
    %276 = arith.mulf %274, %275 : vector<1x8x8xf32>
    %cst_66 = arith.constant dense<0.000000e+00> : vector<1x8xf32>
    %277 = vector.multi_reduction <add>, %276, %cst_66 [2] : vector<1x8x8xf32> to vector<1x8xf32>
    %278 = vector.shape_cast %277 : vector<1x8xf32> to vector<1x8x1xf32>
    %cst_67 = arith.constant dense<0.000000e+00> : vector<1x8xf32>
    %279 = vector.multi_reduction <add>, %276, %cst_67 [1] : vector<1x8x8xf32> to vector<1x8xf32>
    %280 = vector.shape_cast %279 : vector<1x8xf32> to vector<1x1x8xf32>
    %281 = vector.broadcast %278 : vector<1x8x1xf32> to vector<1x8x8xf32>
    %282 = vector.broadcast %280 : vector<1x1x8xf32> to vector<1x8x8xf32>
    %283 = arith.addf %281, %282 : vector<1x8x8xf32>
    %cst_68 = arith.constant 2.000000e+00 : f32
    %284 = vector.broadcast %cst_68 : f32 to vector<1x8x8xf32>
    %285 = arith.mulf %284, %274 : vector<1x8x8xf32>
    %286 = arith.subf %283, %285 : vector<1x8x8xf32>
    %cst_69 = arith.constant 0.000000e+00 : f32
    %287 = vector.broadcast %cst_69 : f32 to vector<1x8x8xf32>
    %288 = arith.maximumf %286, %287 : vector<1x8x8xf32>
    %289 = math.sqrt %288 : vector<1x8x8xf32>
    %290 = vector.broadcast %cst_3 : f32 to vector<1x8x8xf32>
    %291 = arith.addf %289, %290 : vector<1x8x8xf32>
    %292 = tpu.reciprocal %291 {approx = true} : vector<1x8x8xf32> -> vector<1x8x8xf32>
    %293 = vector.shape_cast %6 : vector<8x8xf32> to vector<1x8x8xf32>
    %294 = arith.mulf %293, %292 : vector<1x8x8xf32>
    "tpu.trace_start"() <{level = 10 : i32, message = "bqk,bkd->bqd"}> : () -> ()
    %cst_70 = arith.constant dense<0.000000e+00> : vector<1x8x32xf32>
    %295 = tpu.matmul %294, %273, %cst_70 {dimension_numbers = #tpu.dot_dimension_numbers<[2], [1], [1], [2], [0, 0, 0, 1, 1, 2], [0], [0]>} : vector<1x8x8xf32>, vector<1x8x32xf32>, vector<1x8x32xf32> -> vector<1x8x32xf32>
    "tpu.trace_stop"() : () -> ()
    %296 = vector.broadcast %cst_5 : f32 to vector<1x8x32xf32>
    %297 = arith.mulf %296, %295 : vector<1x8x32xf32>
    %298 = arith.addf %248, %297 : vector<1x8x32xf32>
    %299 = arith.mulf %298, %298 : vector<1x8x32xf32>
    %cst_71 = arith.constant dense<0.000000e+00> : vector<1x8xf32>
    %300 = vector.multi_reduction <add>, %299, %cst_71 [2] : vector<1x8x32xf32> to vector<1x8xf32>
    %301 = vector.shape_cast %300 : vector<1x8xf32> to vector<1x8x1xf32>
    %302 = math.sqrt %301 : vector<1x8x1xf32>
    %303 = vector.broadcast %cst_3 : f32 to vector<1x8x1xf32>
    %304 = arith.addf %302, %303 : vector<1x8x1xf32>
    %305 = vector.broadcast %cst_6 : f32 to vector<1x8x1xf32>
    %306 = arith.divf %305, %304 : vector<1x8x1xf32>
    %307 = vector.broadcast %306 : vector<1x8x1xf32> to vector<1x8x32xf32>
    %308 = arith.mulf %298, %307 : vector<1x8x32xf32>
    %c5_i32 = arith.constant 5 : i32
    "tpu.trace_start"() <{level = 10 : i32, message = "bqd,bkd->bqk"}> : () -> ()
    %cst_72 = arith.constant dense<0.000000e+00> : vector<1x8x8xf32>
    %309 = tpu.matmul %308, %308, %cst_72 {dimension_numbers = #tpu.dot_dimension_numbers<[2], [2], [1], [1], [0, 0, 0, 1, 1, 1], [0], [0]>} : vector<1x8x32xf32>, vector<1x8x32xf32>, vector<1x8x8xf32> -> vector<1x8x8xf32>
    "tpu.trace_stop"() : () -> ()
    %310 = vector.shape_cast %8 : vector<8x8xf32> to vector<1x8x8xf32>
    %311 = arith.mulf %309, %310 : vector<1x8x8xf32>
    %cst_73 = arith.constant dense<0.000000e+00> : vector<1x8xf32>
    %312 = vector.multi_reduction <add>, %311, %cst_73 [2] : vector<1x8x8xf32> to vector<1x8xf32>
    %313 = vector.shape_cast %312 : vector<1x8xf32> to vector<1x8x1xf32>
    %cst_74 = arith.constant dense<0.000000e+00> : vector<1x8xf32>
    %314 = vector.multi_reduction <add>, %311, %cst_74 [1] : vector<1x8x8xf32> to vector<1x8xf32>
    %315 = vector.shape_cast %314 : vector<1x8xf32> to vector<1x1x8xf32>
    %316 = vector.broadcast %313 : vector<1x8x1xf32> to vector<1x8x8xf32>
    %317 = vector.broadcast %315 : vector<1x1x8xf32> to vector<1x8x8xf32>
    %318 = arith.addf %316, %317 : vector<1x8x8xf32>
    %cst_75 = arith.constant 2.000000e+00 : f32
    %319 = vector.broadcast %cst_75 : f32 to vector<1x8x8xf32>
    %320 = arith.mulf %319, %309 : vector<1x8x8xf32>
    %321 = arith.subf %318, %320 : vector<1x8x8xf32>
    %cst_76 = arith.constant 0.000000e+00 : f32
    %322 = vector.broadcast %cst_76 : f32 to vector<1x8x8xf32>
    %323 = arith.maximumf %321, %322 : vector<1x8x8xf32>
    %324 = math.sqrt %323 : vector<1x8x8xf32>
    %325 = vector.broadcast %cst_3 : f32 to vector<1x8x8xf32>
    %326 = arith.addf %324, %325 : vector<1x8x8xf32>
    %327 = tpu.reciprocal %326 {approx = true} : vector<1x8x8xf32> -> vector<1x8x8xf32>
    %328 = vector.shape_cast %6 : vector<8x8xf32> to vector<1x8x8xf32>
    %329 = arith.mulf %328, %327 : vector<1x8x8xf32>
    "tpu.trace_start"() <{level = 10 : i32, message = "bqk,bkd->bqd"}> : () -> ()
    %cst_77 = arith.constant dense<0.000000e+00> : vector<1x8x32xf32>
    %330 = tpu.matmul %329, %308, %cst_77 {dimension_numbers = #tpu.dot_dimension_numbers<[2], [1], [1], [2], [0, 0, 0, 1, 1, 2], [0], [0]>} : vector<1x8x8xf32>, vector<1x8x32xf32>, vector<1x8x32xf32> -> vector<1x8x32xf32>
    "tpu.trace_stop"() : () -> ()
    %331 = vector.broadcast %cst_4 : f32 to vector<1x8x32xf32>
    %332 = arith.mulf %331, %330 : vector<1x8x32xf32>
    %333 = arith.addf %308, %332 : vector<1x8x32xf32>
    "tpu.trace_start"() <{level = 10 : i32, message = "bqd,bkd->bqk"}> : () -> ()
    %cst_78 = arith.constant dense<0.000000e+00> : vector<1x8x8xf32>
    %334 = tpu.matmul %333, %333, %cst_78 {dimension_numbers = #tpu.dot_dimension_numbers<[2], [2], [1], [1], [0, 0, 0, 1, 1, 1], [0], [0]>} : vector<1x8x32xf32>, vector<1x8x32xf32>, vector<1x8x8xf32> -> vector<1x8x8xf32>
    "tpu.trace_stop"() : () -> ()
    %335 = vector.shape_cast %8 : vector<8x8xf32> to vector<1x8x8xf32>
    %336 = arith.mulf %334, %335 : vector<1x8x8xf32>
    %cst_79 = arith.constant dense<0.000000e+00> : vector<1x8xf32>
    %337 = vector.multi_reduction <add>, %336, %cst_79 [2] : vector<1x8x8xf32> to vector<1x8xf32>
    %338 = vector.shape_cast %337 : vector<1x8xf32> to vector<1x8x1xf32>
    %cst_80 = arith.constant dense<0.000000e+00> : vector<1x8xf32>
    %339 = vector.multi_reduction <add>, %336, %cst_80 [1] : vector<1x8x8xf32> to vector<1x8xf32>
    %340 = vector.shape_cast %339 : vector<1x8xf32> to vector<1x1x8xf32>
    %341 = vector.broadcast %338 : vector<1x8x1xf32> to vector<1x8x8xf32>
    %342 = vector.broadcast %340 : vector<1x1x8xf32> to vector<1x8x8xf32>
    %343 = arith.addf %341, %342 : vector<1x8x8xf32>
    %cst_81 = arith.constant 2.000000e+00 : f32
    %344 = vector.broadcast %cst_81 : f32 to vector<1x8x8xf32>
    %345 = arith.mulf %344, %334 : vector<1x8x8xf32>
    %346 = arith.subf %343, %345 : vector<1x8x8xf32>
    %cst_82 = arith.constant 0.000000e+00 : f32
    %347 = vector.broadcast %cst_82 : f32 to vector<1x8x8xf32>
    %348 = arith.maximumf %346, %347 : vector<1x8x8xf32>
    %349 = math.sqrt %348 : vector<1x8x8xf32>
    %350 = vector.broadcast %cst_3 : f32 to vector<1x8x8xf32>
    %351 = arith.addf %349, %350 : vector<1x8x8xf32>
    %352 = tpu.reciprocal %351 {approx = true} : vector<1x8x8xf32> -> vector<1x8x8xf32>
    %353 = vector.shape_cast %6 : vector<8x8xf32> to vector<1x8x8xf32>
    %354 = arith.mulf %353, %352 : vector<1x8x8xf32>
    "tpu.trace_start"() <{level = 10 : i32, message = "bqk,bkd->bqd"}> : () -> ()
    %cst_83 = arith.constant dense<0.000000e+00> : vector<1x8x32xf32>
    %355 = tpu.matmul %354, %333, %cst_83 {dimension_numbers = #tpu.dot_dimension_numbers<[2], [1], [1], [2], [0, 0, 0, 1, 1, 2], [0], [0]>} : vector<1x8x8xf32>, vector<1x8x32xf32>, vector<1x8x32xf32> -> vector<1x8x32xf32>
    "tpu.trace_stop"() : () -> ()
    %356 = vector.broadcast %cst_5 : f32 to vector<1x8x32xf32>
    %357 = arith.mulf %356, %355 : vector<1x8x32xf32>
    %358 = arith.addf %308, %357 : vector<1x8x32xf32>
    %359 = arith.mulf %358, %358 : vector<1x8x32xf32>
    %cst_84 = arith.constant dense<0.000000e+00> : vector<1x8xf32>
    %360 = vector.multi_reduction <add>, %359, %cst_84 [2] : vector<1x8x32xf32> to vector<1x8xf32>
    %361 = vector.shape_cast %360 : vector<1x8xf32> to vector<1x8x1xf32>
    %362 = math.sqrt %361 : vector<1x8x1xf32>
    %363 = vector.broadcast %cst_3 : f32 to vector<1x8x1xf32>
    %364 = arith.addf %362, %363 : vector<1x8x1xf32>
    %365 = vector.broadcast %cst_6 : f32 to vector<1x8x1xf32>
    %366 = arith.divf %365, %364 : vector<1x8x1xf32>
    %367 = vector.broadcast %366 : vector<1x8x1xf32> to vector<1x8x32xf32>
    %368 = arith.mulf %358, %367 : vector<1x8x32xf32>
    %c6_i32 = arith.constant 6 : i32
    "tpu.trace_start"() <{level = 10 : i32, message = "bqd,bkd->bqk"}> : () -> ()
    %cst_85 = arith.constant dense<0.000000e+00> : vector<1x8x8xf32>
    %369 = tpu.matmul %368, %368, %cst_85 {dimension_numbers = #tpu.dot_dimension_numbers<[2], [2], [1], [1], [0, 0, 0, 1, 1, 1], [0], [0]>} : vector<1x8x32xf32>, vector<1x8x32xf32>, vector<1x8x8xf32> -> vector<1x8x8xf32>
    "tpu.trace_stop"() : () -> ()
    %370 = vector.shape_cast %8 : vector<8x8xf32> to vector<1x8x8xf32>
    %371 = arith.mulf %369, %370 : vector<1x8x8xf32>
    %cst_86 = arith.constant dense<0.000000e+00> : vector<1x8xf32>
    %372 = vector.multi_reduction <add>, %371, %cst_86 [2] : vector<1x8x8xf32> to vector<1x8xf32>
    %373 = vector.shape_cast %372 : vector<1x8xf32> to vector<1x8x1xf32>
    %cst_87 = arith.constant dense<0.000000e+00> : vector<1x8xf32>
    %374 = vector.multi_reduction <add>, %371, %cst_87 [1] : vector<1x8x8xf32> to vector<1x8xf32>
    %375 = vector.shape_cast %374 : vector<1x8xf32> to vector<1x1x8xf32>
    %376 = vector.broadcast %373 : vector<1x8x1xf32> to vector<1x8x8xf32>
    %377 = vector.broadcast %375 : vector<1x1x8xf32> to vector<1x8x8xf32>
    %378 = arith.addf %376, %377 : vector<1x8x8xf32>
    %cst_88 = arith.constant 2.000000e+00 : f32
    %379 = vector.broadcast %cst_88 : f32 to vector<1x8x8xf32>
    %380 = arith.mulf %379, %369 : vector<1x8x8xf32>
    %381 = arith.subf %378, %380 : vector<1x8x8xf32>
    %cst_89 = arith.constant 0.000000e+00 : f32
    %382 = vector.broadcast %cst_89 : f32 to vector<1x8x8xf32>
    %383 = arith.maximumf %381, %382 : vector<1x8x8xf32>
    %384 = math.sqrt %383 : vector<1x8x8xf32>
    %385 = vector.broadcast %cst_3 : f32 to vector<1x8x8xf32>
    %386 = arith.addf %384, %385 : vector<1x8x8xf32>
    %387 = tpu.reciprocal %386 {approx = true} : vector<1x8x8xf32> -> vector<1x8x8xf32>
    %388 = vector.shape_cast %6 : vector<8x8xf32> to vector<1x8x8xf32>
    %389 = arith.mulf %388, %387 : vector<1x8x8xf32>
    "tpu.trace_start"() <{level = 10 : i32, message = "bqk,bkd->bqd"}> : () -> ()
    %cst_90 = arith.constant dense<0.000000e+00> : vector<1x8x32xf32>
    %390 = tpu.matmul %389, %368, %cst_90 {dimension_numbers = #tpu.dot_dimension_numbers<[2], [1], [1], [2], [0, 0, 0, 1, 1, 2], [0], [0]>} : vector<1x8x8xf32>, vector<1x8x32xf32>, vector<1x8x32xf32> -> vector<1x8x32xf32>
    "tpu.trace_stop"() : () -> ()
    %391 = vector.broadcast %cst_4 : f32 to vector<1x8x32xf32>
    %392 = arith.mulf %391, %390 : vector<1x8x32xf32>
    %393 = arith.addf %368, %392 : vector<1x8x32xf32>
    "tpu.trace_start"() <{level = 10 : i32, message = "bqd,bkd->bqk"}> : () -> ()
    %cst_91 = arith.constant dense<0.000000e+00> : vector<1x8x8xf32>
    %394 = tpu.matmul %393, %393, %cst_91 {dimension_numbers = #tpu.dot_dimension_numbers<[2], [2], [1], [1], [0, 0, 0, 1, 1, 1], [0], [0]>} : vector<1x8x32xf32>, vector<1x8x32xf32>, vector<1x8x8xf32> -> vector<1x8x8xf32>
    "tpu.trace_stop"() : () -> ()
    %395 = vector.shape_cast %8 : vector<8x8xf32> to vector<1x8x8xf32>
    %396 = arith.mulf %394, %395 : vector<1x8x8xf32>
    %cst_92 = arith.constant dense<0.000000e+00> : vector<1x8xf32>
    %397 = vector.multi_reduction <add>, %396, %cst_92 [2] : vector<1x8x8xf32> to vector<1x8xf32>
    %398 = vector.shape_cast %397 : vector<1x8xf32> to vector<1x8x1xf32>
    %cst_93 = arith.constant dense<0.000000e+00> : vector<1x8xf32>
    %399 = vector.multi_reduction <add>, %396, %cst_93 [1] : vector<1x8x8xf32> to vector<1x8xf32>
    %400 = vector.shape_cast %399 : vector<1x8xf32> to vector<1x1x8xf32>
    %401 = vector.broadcast %398 : vector<1x8x1xf32> to vector<1x8x8xf32>
    %402 = vector.broadcast %400 : vector<1x1x8xf32> to vector<1x8x8xf32>
    %403 = arith.addf %401, %402 : vector<1x8x8xf32>
    %cst_94 = arith.constant 2.000000e+00 : f32
    %404 = vector.broadcast %cst_94 : f32 to vector<1x8x8xf32>
    %405 = arith.mulf %404, %394 : vector<1x8x8xf32>
    %406 = arith.subf %403, %405 : vector<1x8x8xf32>
    %cst_95 = arith.constant 0.000000e+00 : f32
    %407 = vector.broadcast %cst_95 : f32 to vector<1x8x8xf32>
    %408 = arith.maximumf %406, %407 : vector<1x8x8xf32>
    %409 = math.sqrt %408 : vector<1x8x8xf32>
    %410 = vector.broadcast %cst_3 : f32 to vector<1x8x8xf32>
    %411 = arith.addf %409, %410 : vector<1x8x8xf32>
    %412 = tpu.reciprocal %411 {approx = true} : vector<1x8x8xf32> -> vector<1x8x8xf32>
    %413 = vector.shape_cast %6 : vector<8x8xf32> to vector<1x8x8xf32>
    %414 = arith.mulf %413, %412 : vector<1x8x8xf32>
    "tpu.trace_start"() <{level = 10 : i32, message = "bqk,bkd->bqd"}> : () -> ()
    %cst_96 = arith.constant dense<0.000000e+00> : vector<1x8x32xf32>
    %415 = tpu.matmul %414, %393, %cst_96 {dimension_numbers = #tpu.dot_dimension_numbers<[2], [1], [1], [2], [0, 0, 0, 1, 1, 2], [0], [0]>} : vector<1x8x8xf32>, vector<1x8x32xf32>, vector<1x8x32xf32> -> vector<1x8x32xf32>
    "tpu.trace_stop"() : () -> ()
    %416 = vector.broadcast %cst_5 : f32 to vector<1x8x32xf32>
    %417 = arith.mulf %416, %415 : vector<1x8x32xf32>
    %418 = arith.addf %368, %417 : vector<1x8x32xf32>
    %419 = arith.mulf %418, %418 : vector<1x8x32xf32>
    %cst_97 = arith.constant dense<0.000000e+00> : vector<1x8xf32>
    %420 = vector.multi_reduction <add>, %419, %cst_97 [2] : vector<1x8x32xf32> to vector<1x8xf32>
    %421 = vector.shape_cast %420 : vector<1x8xf32> to vector<1x8x1xf32>
    %422 = math.sqrt %421 : vector<1x8x1xf32>
    %423 = vector.broadcast %cst_3 : f32 to vector<1x8x1xf32>
    %424 = arith.addf %422, %423 : vector<1x8x1xf32>
    %425 = vector.broadcast %cst_6 : f32 to vector<1x8x1xf32>
    %426 = arith.divf %425, %424 : vector<1x8x1xf32>
    %427 = vector.broadcast %426 : vector<1x8x1xf32> to vector<1x8x32xf32>
    %428 = arith.mulf %418, %427 : vector<1x8x32xf32>
    %c7_i32 = arith.constant 7 : i32
    "tpu.trace_start"() <{level = 10 : i32, message = "bqd,bkd->bqk"}> : () -> ()
    %cst_98 = arith.constant dense<0.000000e+00> : vector<1x8x8xf32>
    %429 = tpu.matmul %428, %428, %cst_98 {dimension_numbers = #tpu.dot_dimension_numbers<[2], [2], [1], [1], [0, 0, 0, 1, 1, 1], [0], [0]>} : vector<1x8x32xf32>, vector<1x8x32xf32>, vector<1x8x8xf32> -> vector<1x8x8xf32>
    "tpu.trace_stop"() : () -> ()
    %430 = vector.shape_cast %8 : vector<8x8xf32> to vector<1x8x8xf32>
    %431 = arith.mulf %429, %430 : vector<1x8x8xf32>
    %cst_99 = arith.constant dense<0.000000e+00> : vector<1x8xf32>
    %432 = vector.multi_reduction <add>, %431, %cst_99 [2] : vector<1x8x8xf32> to vector<1x8xf32>
    %433 = vector.shape_cast %432 : vector<1x8xf32> to vector<1x8x1xf32>
    %cst_100 = arith.constant dense<0.000000e+00> : vector<1x8xf32>
    %434 = vector.multi_reduction <add>, %431, %cst_100 [1] : vector<1x8x8xf32> to vector<1x8xf32>
    %435 = vector.shape_cast %434 : vector<1x8xf32> to vector<1x1x8xf32>
    %436 = vector.broadcast %433 : vector<1x8x1xf32> to vector<1x8x8xf32>
    %437 = vector.broadcast %435 : vector<1x1x8xf32> to vector<1x8x8xf32>
    %438 = arith.addf %436, %437 : vector<1x8x8xf32>
    %cst_101 = arith.constant 2.000000e+00 : f32
    %439 = vector.broadcast %cst_101 : f32 to vector<1x8x8xf32>
    %440 = arith.mulf %439, %429 : vector<1x8x8xf32>
    %441 = arith.subf %438, %440 : vector<1x8x8xf32>
    %cst_102 = arith.constant 0.000000e+00 : f32
    %442 = vector.broadcast %cst_102 : f32 to vector<1x8x8xf32>
    %443 = arith.maximumf %441, %442 : vector<1x8x8xf32>
    %444 = math.sqrt %443 : vector<1x8x8xf32>
    %445 = vector.broadcast %cst_3 : f32 to vector<1x8x8xf32>
    %446 = arith.addf %444, %445 : vector<1x8x8xf32>
    %447 = tpu.reciprocal %446 {approx = true} : vector<1x8x8xf32> -> vector<1x8x8xf32>
    %448 = vector.shape_cast %6 : vector<8x8xf32> to vector<1x8x8xf32>
    %449 = arith.mulf %448, %447 : vector<1x8x8xf32>
    "tpu.trace_start"() <{level = 10 : i32, message = "bqk,bkd->bqd"}> : () -> ()
    %cst_103 = arith.constant dense<0.000000e+00> : vector<1x8x32xf32>
    %450 = tpu.matmul %449, %428, %cst_103 {dimension_numbers = #tpu.dot_dimension_numbers<[2], [1], [1], [2], [0, 0, 0, 1, 1, 2], [0], [0]>} : vector<1x8x8xf32>, vector<1x8x32xf32>, vector<1x8x32xf32> -> vector<1x8x32xf32>
    "tpu.trace_stop"() : () -> ()
    %451 = vector.broadcast %cst_4 : f32 to vector<1x8x32xf32>
    %452 = arith.mulf %451, %450 : vector<1x8x32xf32>
    %453 = arith.addf %428, %452 : vector<1x8x32xf32>
    "tpu.trace_start"() <{level = 10 : i32, message = "bqd,bkd->bqk"}> : () -> ()
    %cst_104 = arith.constant dense<0.000000e+00> : vector<1x8x8xf32>
    %454 = tpu.matmul %453, %453, %cst_104 {dimension_numbers = #tpu.dot_dimension_numbers<[2], [2], [1], [1], [0, 0, 0, 1, 1, 1], [0], [0]>} : vector<1x8x32xf32>, vector<1x8x32xf32>, vector<1x8x8xf32> -> vector<1x8x8xf32>
    "tpu.trace_stop"() : () -> ()
    %455 = vector.shape_cast %8 : vector<8x8xf32> to vector<1x8x8xf32>
    %456 = arith.mulf %454, %455 : vector<1x8x8xf32>
    %cst_105 = arith.constant dense<0.000000e+00> : vector<1x8xf32>
    %457 = vector.multi_reduction <add>, %456, %cst_105 [2] : vector<1x8x8xf32> to vector<1x8xf32>
    %458 = vector.shape_cast %457 : vector<1x8xf32> to vector<1x8x1xf32>
    %cst_106 = arith.constant dense<0.000000e+00> : vector<1x8xf32>
    %459 = vector.multi_reduction <add>, %456, %cst_106 [1] : vector<1x8x8xf32> to vector<1x8xf32>
    %460 = vector.shape_cast %459 : vector<1x8xf32> to vector<1x1x8xf32>
    %461 = vector.broadcast %458 : vector<1x8x1xf32> to vector<1x8x8xf32>
    %462 = vector.broadcast %460 : vector<1x1x8xf32> to vector<1x8x8xf32>
    %463 = arith.addf %461, %462 : vector<1x8x8xf32>
    %cst_107 = arith.constant 2.000000e+00 : f32
    %464 = vector.broadcast %cst_107 : f32 to vector<1x8x8xf32>
    %465 = arith.mulf %464, %454 : vector<1x8x8xf32>
    %466 = arith.subf %463, %465 : vector<1x8x8xf32>
    %cst_108 = arith.constant 0.000000e+00 : f32
    %467 = vector.broadcast %cst_108 : f32 to vector<1x8x8xf32>
    %468 = arith.maximumf %466, %467 : vector<1x8x8xf32>
    %469 = math.sqrt %468 : vector<1x8x8xf32>
    %470 = vector.broadcast %cst_3 : f32 to vector<1x8x8xf32>
    %471 = arith.addf %469, %470 : vector<1x8x8xf32>
    %472 = tpu.reciprocal %471 {approx = true} : vector<1x8x8xf32> -> vector<1x8x8xf32>
    %473 = vector.shape_cast %6 : vector<8x8xf32> to vector<1x8x8xf32>
    %474 = arith.mulf %473, %472 : vector<1x8x8xf32>
    "tpu.trace_start"() <{level = 10 : i32, message = "bqk,bkd->bqd"}> : () -> ()
    %cst_109 = arith.constant dense<0.000000e+00> : vector<1x8x32xf32>
    %475 = tpu.matmul %474, %453, %cst_109 {dimension_numbers = #tpu.dot_dimension_numbers<[2], [1], [1], [2], [0, 0, 0, 1, 1, 2], [0], [0]>} : vector<1x8x8xf32>, vector<1x8x32xf32>, vector<1x8x32xf32> -> vector<1x8x32xf32>
    "tpu.trace_stop"() : () -> ()
    %476 = vector.broadcast %cst_5 : f32 to vector<1x8x32xf32>
    %477 = arith.mulf %476, %475 : vector<1x8x32xf32>
    %478 = arith.addf %428, %477 : vector<1x8x32xf32>
    %479 = arith.mulf %478, %478 : vector<1x8x32xf32>
    %cst_110 = arith.constant dense<0.000000e+00> : vector<1x8xf32>
    %480 = vector.multi_reduction <add>, %479, %cst_110 [2] : vector<1x8x32xf32> to vector<1x8xf32>
    %481 = vector.shape_cast %480 : vector<1x8xf32> to vector<1x8x1xf32>
    %482 = math.sqrt %481 : vector<1x8x1xf32>
    %483 = vector.broadcast %cst_3 : f32 to vector<1x8x1xf32>
    %484 = arith.addf %482, %483 : vector<1x8x1xf32>
    %485 = vector.broadcast %cst_6 : f32 to vector<1x8x1xf32>
    %486 = arith.divf %485, %484 : vector<1x8x1xf32>
    %487 = vector.broadcast %486 : vector<1x8x1xf32> to vector<1x8x32xf32>
    %488 = arith.mulf %478, %487 : vector<1x8x32xf32>
    %c8_i32 = arith.constant 8 : i32
    "tpu.trace_start"() <{level = 10 : i32, message = "bqd,bkd->bqk"}> : () -> ()
    %cst_111 = arith.constant dense<0.000000e+00> : vector<1x8x8xf32>
    %489 = tpu.matmul %488, %488, %cst_111 {dimension_numbers = #tpu.dot_dimension_numbers<[2], [2], [1], [1], [0, 0, 0, 1, 1, 1], [0], [0]>} : vector<1x8x32xf32>, vector<1x8x32xf32>, vector<1x8x8xf32> -> vector<1x8x8xf32>
    "tpu.trace_stop"() : () -> ()
    %490 = vector.shape_cast %8 : vector<8x8xf32> to vector<1x8x8xf32>
    %491 = arith.mulf %489, %490 : vector<1x8x8xf32>
    %cst_112 = arith.constant dense<0.000000e+00> : vector<1x8xf32>
    %492 = vector.multi_reduction <add>, %491, %cst_112 [2] : vector<1x8x8xf32> to vector<1x8xf32>
    %493 = vector.shape_cast %492 : vector<1x8xf32> to vector<1x8x1xf32>
    %cst_113 = arith.constant dense<0.000000e+00> : vector<1x8xf32>
    %494 = vector.multi_reduction <add>, %491, %cst_113 [1] : vector<1x8x8xf32> to vector<1x8xf32>
    %495 = vector.shape_cast %494 : vector<1x8xf32> to vector<1x1x8xf32>
    %496 = vector.broadcast %493 : vector<1x8x1xf32> to vector<1x8x8xf32>
    %497 = vector.broadcast %495 : vector<1x1x8xf32> to vector<1x8x8xf32>
    %498 = arith.addf %496, %497 : vector<1x8x8xf32>
    %cst_114 = arith.constant 2.000000e+00 : f32
    %499 = vector.broadcast %cst_114 : f32 to vector<1x8x8xf32>
    %500 = arith.mulf %499, %489 : vector<1x8x8xf32>
    %501 = arith.subf %498, %500 : vector<1x8x8xf32>
    %cst_115 = arith.constant 0.000000e+00 : f32
    %502 = vector.broadcast %cst_115 : f32 to vector<1x8x8xf32>
    %503 = arith.maximumf %501, %502 : vector<1x8x8xf32>
    %504 = math.sqrt %503 : vector<1x8x8xf32>
    %505 = vector.broadcast %cst_3 : f32 to vector<1x8x8xf32>
    %506 = arith.addf %504, %505 : vector<1x8x8xf32>
    %507 = tpu.reciprocal %506 {approx = true} : vector<1x8x8xf32> -> vector<1x8x8xf32>
    %508 = vector.shape_cast %6 : vector<8x8xf32> to vector<1x8x8xf32>
    %509 = arith.mulf %508, %507 : vector<1x8x8xf32>
    "tpu.trace_start"() <{level = 10 : i32, message = "bqk,bkd->bqd"}> : () -> ()
    %cst_116 = arith.constant dense<0.000000e+00> : vector<1x8x32xf32>
    %510 = tpu.matmul %509, %488, %cst_116 {dimension_numbers = #tpu.dot_dimension_numbers<[2], [1], [1], [2], [0, 0, 0, 1, 1, 2], [0], [0]>} : vector<1x8x8xf32>, vector<1x8x32xf32>, vector<1x8x32xf32> -> vector<1x8x32xf32>
    "tpu.trace_stop"() : () -> ()
    %511 = vector.broadcast %cst_4 : f32 to vector<1x8x32xf32>
    %512 = arith.mulf %511, %510 : vector<1x8x32xf32>
    %513 = arith.addf %488, %512 : vector<1x8x32xf32>
    "tpu.trace_start"() <{level = 10 : i32, message = "bqd,bkd->bqk"}> : () -> ()
    %cst_117 = arith.constant dense<0.000000e+00> : vector<1x8x8xf32>
    %514 = tpu.matmul %513, %513, %cst_117 {dimension_numbers = #tpu.dot_dimension_numbers<[2], [2], [1], [1], [0, 0, 0, 1, 1, 1], [0], [0]>} : vector<1x8x32xf32>, vector<1x8x32xf32>, vector<1x8x8xf32> -> vector<1x8x8xf32>
    "tpu.trace_stop"() : () -> ()
    %515 = vector.shape_cast %8 : vector<8x8xf32> to vector<1x8x8xf32>
    %516 = arith.mulf %514, %515 : vector<1x8x8xf32>
    %cst_118 = arith.constant dense<0.000000e+00> : vector<1x8xf32>
    %517 = vector.multi_reduction <add>, %516, %cst_118 [2] : vector<1x8x8xf32> to vector<1x8xf32>
    %518 = vector.shape_cast %517 : vector<1x8xf32> to vector<1x8x1xf32>
    %cst_119 = arith.constant dense<0.000000e+00> : vector<1x8xf32>
    %519 = vector.multi_reduction <add>, %516, %cst_119 [1] : vector<1x8x8xf32> to vector<1x8xf32>
    %520 = vector.shape_cast %519 : vector<1x8xf32> to vector<1x1x8xf32>
    %521 = vector.broadcast %518 : vector<1x8x1xf32> to vector<1x8x8xf32>
    %522 = vector.broadcast %520 : vector<1x1x8xf32> to vector<1x8x8xf32>
    %523 = arith.addf %521, %522 : vector<1x8x8xf32>
    %cst_120 = arith.constant 2.000000e+00 : f32
    %524 = vector.broadcast %cst_120 : f32 to vector<1x8x8xf32>
    %525 = arith.mulf %524, %514 : vector<1x8x8xf32>
    %526 = arith.subf %523, %525 : vector<1x8x8xf32>
    %cst_121 = arith.constant 0.000000e+00 : f32
    %527 = vector.broadcast %cst_121 : f32 to vector<1x8x8xf32>
    %528 = arith.maximumf %526, %527 : vector<1x8x8xf32>
    %529 = math.sqrt %528 : vector<1x8x8xf32>
    %530 = vector.broadcast %cst_3 : f32 to vector<1x8x8xf32>
    %531 = arith.addf %529, %530 : vector<1x8x8xf32>
    %532 = tpu.reciprocal %531 {approx = true} : vector<1x8x8xf32> -> vector<1x8x8xf32>
    %533 = vector.shape_cast %6 : vector<8x8xf32> to vector<1x8x8xf32>
    %534 = arith.mulf %533, %532 : vector<1x8x8xf32>
    "tpu.trace_start"() <{level = 10 : i32, message = "bqk,bkd->bqd"}> : () -> ()
    %cst_122 = arith.constant dense<0.000000e+00> : vector<1x8x32xf32>
    %535 = tpu.matmul %534, %513, %cst_122 {dimension_numbers = #tpu.dot_dimension_numbers<[2], [1], [1], [2], [0, 0, 0, 1, 1, 2], [0], [0]>} : vector<1x8x8xf32>, vector<1x8x32xf32>, vector<1x8x32xf32> -> vector<1x8x32xf32>
    "tpu.trace_stop"() : () -> ()
    %536 = vector.broadcast %cst_5 : f32 to vector<1x8x32xf32>
    %537 = arith.mulf %536, %535 : vector<1x8x32xf32>
    %538 = arith.addf %488, %537 : vector<1x8x32xf32>
    %539 = arith.mulf %538, %538 : vector<1x8x32xf32>
    %cst_123 = arith.constant dense<0.000000e+00> : vector<1x8xf32>
    %540 = vector.multi_reduction <add>, %539, %cst_123 [2] : vector<1x8x32xf32> to vector<1x8xf32>
    %541 = vector.shape_cast %540 : vector<1x8xf32> to vector<1x8x1xf32>
    %542 = math.sqrt %541 : vector<1x8x1xf32>
    %543 = vector.broadcast %cst_3 : f32 to vector<1x8x1xf32>
    %544 = arith.addf %542, %543 : vector<1x8x1xf32>
    %545 = vector.broadcast %cst_6 : f32 to vector<1x8x1xf32>
    %546 = arith.divf %545, %544 : vector<1x8x1xf32>
    %547 = vector.broadcast %546 : vector<1x8x1xf32> to vector<1x8x32xf32>
    %548 = arith.mulf %538, %547 : vector<1x8x32xf32>
    %c9_i32 = arith.constant 9 : i32
    "tpu.trace_start"() <{level = 10 : i32, message = "bqd,bkd->bqk"}> : () -> ()
    %cst_124 = arith.constant dense<0.000000e+00> : vector<1x8x8xf32>
    %549 = tpu.matmul %548, %548, %cst_124 {dimension_numbers = #tpu.dot_dimension_numbers<[2], [2], [1], [1], [0, 0, 0, 1, 1, 1], [0], [0]>} : vector<1x8x32xf32>, vector<1x8x32xf32>, vector<1x8x8xf32> -> vector<1x8x8xf32>
    "tpu.trace_stop"() : () -> ()
    %550 = vector.shape_cast %8 : vector<8x8xf32> to vector<1x8x8xf32>
    %551 = arith.mulf %549, %550 : vector<1x8x8xf32>
    %cst_125 = arith.constant dense<0.000000e+00> : vector<1x8xf32>
    %552 = vector.multi_reduction <add>, %551, %cst_125 [2] : vector<1x8x8xf32> to vector<1x8xf32>
    %553 = vector.shape_cast %552 : vector<1x8xf32> to vector<1x8x1xf32>
    %cst_126 = arith.constant dense<0.000000e+00> : vector<1x8xf32>
    %554 = vector.multi_reduction <add>, %551, %cst_126 [1] : vector<1x8x8xf32> to vector<1x8xf32>
    %555 = vector.shape_cast %554 : vector<1x8xf32> to vector<1x1x8xf32>
    %556 = vector.broadcast %553 : vector<1x8x1xf32> to vector<1x8x8xf32>
    %557 = vector.broadcast %555 : vector<1x1x8xf32> to vector<1x8x8xf32>
    %558 = arith.addf %556, %557 : vector<1x8x8xf32>
    %cst_127 = arith.constant 2.000000e+00 : f32
    %559 = vector.broadcast %cst_127 : f32 to vector<1x8x8xf32>
    %560 = arith.mulf %559, %549 : vector<1x8x8xf32>
    %561 = arith.subf %558, %560 : vector<1x8x8xf32>
    %cst_128 = arith.constant 0.000000e+00 : f32
    %562 = vector.broadcast %cst_128 : f32 to vector<1x8x8xf32>
    %563 = arith.maximumf %561, %562 : vector<1x8x8xf32>
    %564 = math.sqrt %563 : vector<1x8x8xf32>
    %565 = vector.broadcast %cst_3 : f32 to vector<1x8x8xf32>
    %566 = arith.addf %564, %565 : vector<1x8x8xf32>
    %567 = tpu.reciprocal %566 {approx = true} : vector<1x8x8xf32> -> vector<1x8x8xf32>
    %568 = vector.shape_cast %6 : vector<8x8xf32> to vector<1x8x8xf32>
    %569 = arith.mulf %568, %567 : vector<1x8x8xf32>
    "tpu.trace_start"() <{level = 10 : i32, message = "bqk,bkd->bqd"}> : () -> ()
    %cst_129 = arith.constant dense<0.000000e+00> : vector<1x8x32xf32>
    %570 = tpu.matmul %569, %548, %cst_129 {dimension_numbers = #tpu.dot_dimension_numbers<[2], [1], [1], [2], [0, 0, 0, 1, 1, 2], [0], [0]>} : vector<1x8x8xf32>, vector<1x8x32xf32>, vector<1x8x32xf32> -> vector<1x8x32xf32>
    "tpu.trace_stop"() : () -> ()
    %571 = vector.broadcast %cst_4 : f32 to vector<1x8x32xf32>
    %572 = arith.mulf %571, %570 : vector<1x8x32xf32>
    %573 = arith.addf %548, %572 : vector<1x8x32xf32>
    "tpu.trace_start"() <{level = 10 : i32, message = "bqd,bkd->bqk"}> : () -> ()
    %cst_130 = arith.constant dense<0.000000e+00> : vector<1x8x8xf32>
    %574 = tpu.matmul %573, %573, %cst_130 {dimension_numbers = #tpu.dot_dimension_numbers<[2], [2], [1], [1], [0, 0, 0, 1, 1, 1], [0], [0]>} : vector<1x8x32xf32>, vector<1x8x32xf32>, vector<1x8x8xf32> -> vector<1x8x8xf32>
    "tpu.trace_stop"() : () -> ()
    %575 = vector.shape_cast %8 : vector<8x8xf32> to vector<1x8x8xf32>
    %576 = arith.mulf %574, %575 : vector<1x8x8xf32>
    %cst_131 = arith.constant dense<0.000000e+00> : vector<1x8xf32>
    %577 = vector.multi_reduction <add>, %576, %cst_131 [2] : vector<1x8x8xf32> to vector<1x8xf32>
    %578 = vector.shape_cast %577 : vector<1x8xf32> to vector<1x8x1xf32>
    %cst_132 = arith.constant dense<0.000000e+00> : vector<1x8xf32>
    %579 = vector.multi_reduction <add>, %576, %cst_132 [1] : vector<1x8x8xf32> to vector<1x8xf32>
    %580 = vector.shape_cast %579 : vector<1x8xf32> to vector<1x1x8xf32>
    %581 = vector.broadcast %578 : vector<1x8x1xf32> to vector<1x8x8xf32>
    %582 = vector.broadcast %580 : vector<1x1x8xf32> to vector<1x8x8xf32>
    %583 = arith.addf %581, %582 : vector<1x8x8xf32>
    %cst_133 = arith.constant 2.000000e+00 : f32
    %584 = vector.broadcast %cst_133 : f32 to vector<1x8x8xf32>
    %585 = arith.mulf %584, %574 : vector<1x8x8xf32>
    %586 = arith.subf %583, %585 : vector<1x8x8xf32>
    %cst_134 = arith.constant 0.000000e+00 : f32
    %587 = vector.broadcast %cst_134 : f32 to vector<1x8x8xf32>
    %588 = arith.maximumf %586, %587 : vector<1x8x8xf32>
    %589 = math.sqrt %588 : vector<1x8x8xf32>
    %590 = vector.broadcast %cst_3 : f32 to vector<1x8x8xf32>
    %591 = arith.addf %589, %590 : vector<1x8x8xf32>
    %592 = tpu.reciprocal %591 {approx = true} : vector<1x8x8xf32> -> vector<1x8x8xf32>
    %593 = vector.shape_cast %6 : vector<8x8xf32> to vector<1x8x8xf32>
    %594 = arith.mulf %593, %592 : vector<1x8x8xf32>
    "tpu.trace_start"() <{level = 10 : i32, message = "bqk,bkd->bqd"}> : () -> ()
    %cst_135 = arith.constant dense<0.000000e+00> : vector<1x8x32xf32>
    %595 = tpu.matmul %594, %573, %cst_135 {dimension_numbers = #tpu.dot_dimension_numbers<[2], [1], [1], [2], [0, 0, 0, 1, 1, 2], [0], [0]>} : vector<1x8x8xf32>, vector<1x8x32xf32>, vector<1x8x32xf32> -> vector<1x8x32xf32>
    "tpu.trace_stop"() : () -> ()
    %596 = vector.broadcast %cst_5 : f32 to vector<1x8x32xf32>
    %597 = arith.mulf %596, %595 : vector<1x8x32xf32>
    %598 = arith.addf %548, %597 : vector<1x8x32xf32>
    %599 = arith.mulf %598, %598 : vector<1x8x32xf32>
    %cst_136 = arith.constant dense<0.000000e+00> : vector<1x8xf32>
    %600 = vector.multi_reduction <add>, %599, %cst_136 [2] : vector<1x8x32xf32> to vector<1x8xf32>
    %601 = vector.shape_cast %600 : vector<1x8xf32> to vector<1x8x1xf32>
    %602 = math.sqrt %601 : vector<1x8x1xf32>
    %603 = vector.broadcast %cst_3 : f32 to vector<1x8x1xf32>
    %604 = arith.addf %602, %603 : vector<1x8x1xf32>
    %605 = vector.broadcast %cst_6 : f32 to vector<1x8x1xf32>
    %606 = arith.divf %605, %604 : vector<1x8x1xf32>
    %607 = vector.broadcast %606 : vector<1x8x1xf32> to vector<1x8x32xf32>
    %608 = arith.mulf %598, %607 : vector<1x8x32xf32>
    %c0_137 = arith.constant 0 : index
    %c0_138 = arith.constant 0 : index
    %c0_139 = arith.constant 0 : index
    %609 = vector.load %arg2[%c0_137, %c0_138, %c0_139] : memref<1x8x32xf32, #tpu.memory_space<vmem>>, vector<1x8x32xf32>
    tpu.vector_store %arg2[%c0_137, %c0_138, %c0_139], %608 {strides = array<i32>} : memref<1x8x32xf32, #tpu.memory_space<vmem>>, vector<1x8x32xf32>,
    return
  }
  func.func @transform_0(%arg0: i32) -> (i32, i32, i32) {
    %c0_i32 = arith.constant 0 : i32
    %c0_i32_0 = arith.constant 0 : i32
    %c0_i32_1 = arith.constant 0 : i32
    return %arg0, %c0_i32, %c0_i32_0 : i32, i32, i32
  }
  func.func @transform_1(%arg0: i32) -> (i32, i32, i32) {
    %c0_i32 = arith.constant 0 : i32
    %c0_i32_0 = arith.constant 0 : i32
    %c0_i32_1 = arith.constant 0 : i32
    return %arg0, %c0_i32, %c0_i32_0 : i32, i32, i32
  }
}

</mosaic_0001>

<llo_original>
// kernel: tpu_custom_call.1
$region0: #{tpu_custom_call.1}
  #allocation0 [shape = 'u32[]', space=smem, size = 0x4, offset = 0x4, fixed_abs, tag = 'smem constant byte address 0x4 - core index']
  #allocation1 [shape = 'u32[72,128]{1,0:T(1,128)}', space=vmem, size = 0x9000, scoped, tag = 'internal scratch']
  %s0 = inlined_call_operand.hbm [shape: f32[2,8,32], index: 0, kind: input, shape index: {}]
  %s1 = inlined_call_operand.hbm [shape: f32[2,8,32], index: 1, kind: output, shape index: {}]
  %s2 = sld [smem:[#allocation0]]
  $region41: #{tpu_custom_call.1} parent=0
    _
  %s4 = ssub.s32 1, %s2
  %s5 = scalar_select 0, %s4, %s2
  $region1: #{tpu_custom_call.1} parent=0
    #allocation2 [shape = 'u8[8192]{0}', space=vmem, size = 0x2000, scoped, tag = 'input window, operand 0']
    #allocation3 [shape = 's32[2]{0}', space=sflag, size = 0x8, scoped, tag = 'scoped memory for tpu_custom_call.1']
    #allocation4 [shape = 's32[2]{0}', space=sflag, size = 0x8, scoped, tag = 'scoped memory for tpu_custom_call.1']
    #allocation5 [shape = 'u8[8192]{0}', space=vmem, size = 0x2000, scoped, tag = 'output window, operand 0']
    %6 = vsyncpa [#allocation3], 0
    %s7 = scalar_lea.sflag [#allocation3], 1
    %8 = vsyncpa %s7, 0
    %9 = vsyncpa [#allocation4], 0
    %s10 = scalar_lea.sflag [#allocation4], 1
    %11 = vsyncpa %s10, 0
    loop: start=0, step=1, limit=4
    $region2: #{tpu_custom_call.1} parent=1 // loop_pre_header
      _
    $region3: #{tpu_custom_call.1} parent=1 // loop_header
      %s13 = sphi 0, %s17
      %p14 = scmp.ge.s32.totalorder %s13, 4
      %s23 = sphi 0, %s25
      %s26 = sphi 0, %s23
      %s27 = sphi 0, %s26
      %s43 = sphi 0, %s27
      %s49 = sphi 0, %s51
      %s52 = sphi 0, %s49
      %s53 = sphi 0, %s52
      %s69 = sphi 0, %s53
    $region4: #{tpu_custom_call.1} parent=1 // loop_header_branch
      %16 = sbr.rel (%p14) target = $region8
    $region5: #{tpu_custom_call.1} parent=1 // loop_body
      %s18 = ssub.s32 %s13, 1
      %s19 = ssub.s32 %s13, 2
      %s20 = sadd.s32 %s13, 1
      %s21 = ssub.s32 %s13, %s20
      %p22 = scmp.eq.s32.totalorder %s21, 0
      %s24 = sadd.s32 %s23, 1
      %s25 = scalar_select %p22, %s23, %s24
      %p28 = pneg %p22
      %p29 = scmp.eq.s32.totalorder %s13, 1
      %p30 = por %p28, %p29
      %p31 = scmp.ne.s32.totalorder %s23, %s26
      %p32 = scmp.eq.s32.totalorder %s13, 0
      %p33 = por %p31, %p32
      %p34 = scmp.ne.s32.totalorder %s23, %s26
      %p35 = scmp.eq.s32.totalorder %s18, 1
      %p36 = por %p34, %p35
      %p37 = scmp.ne.s32.totalorder %s26, %s27
      %p38 = scmp.eq.s32.totalorder %s18, 0
      %p39 = por %p37, %p38
      %p40 = scmp.ne.s32.totalorder %s26, %s27
      %p41 = scmp.eq.s32.totalorder %s19, 1
      %p42 = por %p40, %p41
      %p44 = scmp.ne.s32.totalorder %s27, %s43
      %p45 = scmp.eq.s32.totalorder %s19, 0
      %p46 = por %p44, %p45
      %s47 = ssub.s32 %s13, %s20
      %p48 = scmp.eq.s32.totalorder %s47, 0
      %s50 = sadd.s32 %s49, 1
      %s51 = scalar_select %p48, %s49, %s50
      %p54 = pneg %p48
      %p55 = scmp.eq.s32.totalorder %s13, 1
      %p56 = por %p54, %p55
      %p57 = scmp.ne.s32.totalorder %s49, %s52
      %p58 = scmp.eq.s32.totalorder %s13, 0
      %p59 = por %p57, %p58
      %p60 = scmp.ne.s32.totalorder %s49, %s52
      %p61 = scmp.eq.s32.totalorder %s18, 1
      %p62 = por %p60, %p61
      %p63 = scmp.ne.s32.totalorder %s52, %s53
      %p64 = scmp.eq.s32.totalorder %s18, 0
      %p65 = por %p63, %p64
      %p66 = scmp.ne.s32.totalorder %s52, %s53
      %p67 = scmp.eq.s32.totalorder %s19, 1
      %p68 = por %p66, %p67
      %p70 = scmp.ne.s32.totalorder %s53, %s69
      %p71 = scmp.eq.s32.totalorder %s19, 0
      %p72 = por %p70, %p71
      %p73 = scmp.le.s32.totalorder 1, %s13
      %p74 = scmp.lt.s32.totalorder %s13, 3
      %p75 = pnand %p73, %p74
      %p76 = pneg %p75
      // Predicated region
      $region9: #{tpu_custom_call.1} parent=5 // pred_check
        _
      $region10: #{tpu_custom_call.1} parent=5 // pred_check_branch
        %78 = sbr.rel (%p75) target = $region12
      $region11: #{tpu_custom_call.1} parent=5 // pred_region
        %s79 = ssub.s32 %s13, 1
      $region12: #{tpu_custom_call.1} parent=5 // pred_fallthru
        _
      %p80 = scmp.lt.s32.totalorder %s13, 2
      // Predicated region
      $region13: #{tpu_custom_call.1} parent=5 // pred_check
        %p81 = pneg %p80
      $region14: #{tpu_custom_call.1} parent=5 // pred_check_branch
        %83 = sbr.rel (%p81) target = $region16
      $region15: #{tpu_custom_call.1} parent=5 // pred_region
        // Predicated region
        $region17: #{tpu_custom_call.1} parent=15 // pred_check
          %p84 = pneg %p33
        $region18: #{tpu_custom_call.1} parent=15 // pred_check_branch
          %86 = sbr.rel (%p84) target = $region20
        $region19: #{tpu_custom_call.1} parent=15 // pred_region
          %s87 = sand.u32 %s23, 1
          %s88 = scalar_lea.sflag [#allocation3], %s87
          %s89 = sand.u32 %s23, 1
          %s90 = smul.addr %s89, 8
          %s91 = scalar_lea.vmem [#allocation2], %s90
          %93 = vsyncadd %s88, 0
          %s94 = smul.addr %s13, 8
          %s95 = scalar_lea.hbm %s0, %s94
          %s97 = sshll.u32 %s95, 4
          %s98 = int_to_ptr.hbm [resolvable:$true] %s97
          %s99 = sshll.u32 %s91, 4
          %s100 = int_to_ptr.vmem [resolvable:$true] %s99
          %102 = dma.hbm_to_vmem [thread:$0]  %s98, 128, %s100, %s88
        $region20: #{tpu_custom_call.1} parent=15 // pred_fallthru
          _
      $region16: #{tpu_custom_call.1} parent=5 // pred_fallthru
        _
      %p103 = scmp.le.s32.totalorder 1, %s13
      %p104 = scmp.lt.s32.totalorder %s13, 3
      %p105 = pnand %p103, %p104
      %p106 = pneg %p105
      // Predicated region
      $region21: #{tpu_custom_call.1} parent=5 // pred_check
        _
      $region22: #{tpu_custom_call.1} parent=5 // pred_check_branch
        %108 = sbr.rel (%p105) target = $region24
      $region23: #{tpu_custom_call.1} parent=5 // pred_region
        %s109 = ssub.s32 %s13, 1
        %s110 = sand.u32 %s26, 1
        %s111 = scalar_lea.sflag [#allocation3], %s110
        %s112 = sand.u32 %s26, 1
        %s113 = smul.addr %s112, 8
        %s114 = scalar_lea.vmem [#allocation2], %s113
        // Predicated region
        $region25: #{tpu_custom_call.1} parent=23 // pred_check
          %p115 = pneg %p39
        $region26: #{tpu_custom_call.1} parent=23 // pred_check_branch
          %117 = sbr.rel (%p115) target = $region28
        $region27: #{tpu_custom_call.1} parent=23 // pred_region
          %119 = dma.done %s111, 128
        $region28: #{tpu_custom_call.1} parent=23 // pred_fallthru
          _
        %s120 = sand.u32 %s26, 1
        %s121 = scalar_lea.sflag [#allocation3], %s120
        %s122 = sand.u32 %s26, 1
        %s123 = smul.addr %s122, 8
        %s124 = scalar_lea.vmem [#allocation2], %s123
        %p125 = pneg %p39
        %p126 = pneg %p36
        %p127 = pneg %p65
        %p128 = pneg %p62
        %s129 = sand.u32 %s52, 1
        %s130 = scalar_lea.sflag [#allocation4], %s129
        %s131 = sand.u32 %s52, 1
        %s132 = smul.addr %s131, 8
        %s133 = scalar_lea.vmem [#allocation5], %s132
        %v134 = vld [vmem:[%s114] sm:$0xff]
        %v135 = vlaneseq
        %v136 = vshrl.u32 %v135, 7
        %v137 = vlaneseq
        %v138 = vand.u32 %v137, 127
        %vm139 = vcmp.eq.s32.totalorder %v136, %v138
        %v140 = vsel %vm139, 0.0, 0.01
        %v141 = vsel %vm139, 1, 0
        %v142 = vcvt.s32.f32 %v141
        %vm143 = vcmask 261120
        %v145 = vsel %vm143, %v134, 0
        %147 = vmatpush.xpose.msra.mxu0 0.0
        %148 = vmatpush.xpose.msra.mxu0 0.0
        %149 = vmatpush.xpose.msra.mxu0 0.0
        %150 = vmatpush.xpose.msra.mxu0 0.0
        %151 = vmatpush.xpose.msra.mxu0 0.0
        %152 = vmatpush.xpose.msra.mxu0 0.0
        %153 = vmatpush.xpose.msra.mxu0 0.0
        %154 = vmatpush.xpose.msra.mxu0 0.0
        %155 = vmatpush.xpose.msra.mxu0 0.0
        %156 = vmatpush.xpose.msra.mxu0 0.0
        %157 = vmatpush.xpose.msra.mxu0 0.0
        %158 = vmatpush.xpose.msra.mxu0 0.0
        %159 = vmatpush.xpose.msra.mxu0 0.0
        %160 = vmatpush.xpose.msra.mxu0 0.0
        %161 = vmatpush.xpose.msra.mxu0 0.0
        %162 = vmatpush.xpose.msra.mxu0 %v145
        %163 = vmatmul.f32.gmra.mxu0 %v145
        %v164 = vpop.f32.mrf.mxu0
        %v165 = vadd.f32 0.0, %v164
        %166 = vdwg.mxu0
        %v167 = vmul.f32 %v165, %v142
        %vm168 = vcmask 64512
        %v169 = vsel %vm168, %v167, 0.0
        %170 = vadd.xlane.f32.xlu0 %v169
        %v171 = vpop.xlane.xlu0 %170
        %v172 = vrot.slane %v169, 4
        %v173 = vadd.f32 %v169, %v172
        %v174 = vrot.slane %v173, 2
        %v175 = vadd.f32 %v173, %v174
        %v176 = vrot.slane %v175, 1
        %v177 = vadd.f32 %v175, %v176
        %v178 = vadd.f32 %v171, %v177
        %v179 = vmul.f32 %v165, 2.0
        %v180 = vsub.f32 %v178, %v179
        %v181 = vmax.f32 %v180, 0.0
        %v182 = vrsqrt.pop %v181
        %v183 = vmul.f32 %v182, %v181
        %v184 = vmul.f32 %v183, %v182
        %v185 = vmul.f32 0.5, %v184
        %v186 = vsub.f32 1.5, %v185
        %v187 = vmul.f32 %v182, %v186
        %v188 = vmul.f32 %v181, %v187
        %vm189 = vcmp.eq.f32.partialorder %v181, inf
        %v190 = vsel %vm189, %v181, %v188
        %vm191 = vcmp.eq.f32.partialorder %v181, 0.0
        %v192 = vand.u32 %v181, 2147483648
        %v193 = vsel %vm191, %v192, %v190
        %v194 = vadd.f32 %v193, 1e-08
        %v195 = vrcp.pop %v194
        %v196 = vmul.f32 %v140, %v195
        %v198 = vsel %vm168, %v196, 0
        %200 = vmatpush.msra.mxu0 0.0
        %201 = vmatpush.msra.mxu0 0.0
        %202 = vmatpush.msra.mxu0 0.0
        %203 = vmatpush.msra.mxu0 0.0
        %204 = vmatpush.msra.mxu0 0.0
        %205 = vmatpush.msra.mxu0 0.0
        %206 = vmatpush.msra.mxu0 0.0
        %207 = vmatpush.msra.mxu0 0.0
        %208 = vmatpush.msra.mxu0 0.0
        %209 = vmatpush.msra.mxu0 0.0
        %210 = vmatpush.msra.mxu0 0.0
        %211 = vmatpush.msra.mxu0 0.0
        %212 = vmatpush.msra.mxu0 0.0
        %213 = vmatpush.msra.mxu0 0.0
        %214 = vmatpush.msra.mxu0 0.0
        %215 = vmatpush.msra.mxu0 %v134
        %216 = vmatmul.f32.gmra.mxu0 %v198
        %v217 = vpop.f32.mrf.mxu0
        %v218 = vadd.f32 0.0, %v217
        %219 = vdwg.mxu0
        %v220 = vmul.f32 %v218, 0.05
        %v221 = vadd.f32 %v134, %v220
        %v223 = vsel %vm143, %v221, 0
        %225 = vmatpush.xpose.msra.mxu0 0.0
        %226 = vmatpush.xpose.msra.mxu0 0.0
        %227 = vmatpush.xpose.msra.mxu0 0.0
        %228 = vmatpush.xpose.msra.mxu0 0.0
        %229 = vmatpush.xpose.msra.mxu0 0.0
        %230 = vmatpush.xpose.msra.mxu0 0.0
        %231 = vmatpush.xpose.msra.mxu0 0.0
        %232 = vmatpush.xpose.msra.mxu0 0.0
        %233 = vmatpush.xpose.msra.mxu0 0.0
        %234 = vmatpush.xpose.msra.mxu0 0.0
        %235 = vmatpush.xpose.msra.mxu0 0.0
        %236 = vmatpush.xpose.msra.mxu0 0.0
        %237 = vmatpush.xpose.msra.mxu0 0.0
        %238 = vmatpush.xpose.msra.mxu0 0.0
        %239 = vmatpush.xpose.msra.mxu0 0.0
        %240 = vmatpush.xpose.msra.mxu0 %v223
        %241 = vmatmul.f32.gmra.mxu0 %v223
        %v242 = vpop.f32.mrf.mxu0
        %v243 = vadd.f32 0.0, %v242
        %244 = vdwg.mxu0
        %v245 = vmul.f32 %v243, %v142
        %v246 = vsel %vm168, %v245, 0.0
        %247 = vadd.xlane.f32.xlu0 %v246
        %v248 = vpop.xlane.xlu0 %247
        %v249 = vrot.slane %v246, 4
        %v250 = vadd.f32 %v246, %v249
        %v251 = vrot.slane %v250, 2
        %v252 = vadd.f32 %v250, %v251
        %v253 = vrot.slane %v252, 1
        %v254 = vadd.f32 %v252, %v253
        %v255 = vadd.f32 %v248, %v254
        %v256 = vmul.f32 %v243, 2.0
        %v257 = vsub.f32 %v255, %v256
        %v258 = vmax.f32 %v257, 0.0
        %v259 = vrsqrt.pop %v258
        %v260 = vmul.f32 %v259, %v258
        %v261 = vmul.f32 %v260, %v259
        %v262 = vmul.f32 0.5, %v261
        %v263 = vsub.f32 1.5, %v262
        %v264 = vmul.f32 %v259, %v263
        %v265 = vmul.f32 %v258, %v264
        %vm266 = vcmp.eq.f32.partialorder %v258, inf
        %v267 = vsel %vm266, %v258, %v265
        %vm268 = vcmp.eq.f32.partialorder %v258, 0.0
        %v269 = vand.u32 %v258, 2147483648
        %v270 = vsel %vm268, %v269, %v267
        %v271 = vadd.f32 %v270, 1e-08
        %v272 = vrcp.pop %v271
        %v273 = vmul.f32 %v140, %v272
        %v275 = vsel %vm168, %v273, 0
        %277 = vmatpush.msra.mxu0 0.0
        %278 = vmatpush.msra.mxu0 0.0
        %279 = vmatpush.msra.mxu0 0.0
        %280 = vmatpush.msra.mxu0 0.0
        %281 = vmatpush.msra.mxu0 0.0
        %282 = vmatpush.msra.mxu0 0.0
        %283 = vmatpush.msra.mxu0 0.0
        %284 = vmatpush.msra.mxu0 0.0
        %285 = vmatpush.msra.mxu0 0.0
        %286 = vmatpush.msra.mxu0 0.0
        %287 = vmatpush.msra.mxu0 0.0
        %288 = vmatpush.msra.mxu0 0.0
        %289 = vmatpush.msra.mxu0 0.0
        %290 = vmatpush.msra.mxu0 0.0
        %291 = vmatpush.msra.mxu0 0.0
        %292 = vmatpush.msra.mxu0 %v221
        %293 = vmatmul.f32.gmra.mxu0 %v275
        %v294 = vpop.f32.mrf.mxu0
        %v295 = vadd.f32 0.0, %v294
        %296 = vdwg.mxu0
        %v297 = vmul.f32 %v295, 0.1
        %v298 = vadd.f32 %v134, %v297
        %v299 = vmul.f32 %v298, %v298
        %v300 = vsel %vm143, %v299, 0.0
        %301 = vadd.xlane.f32.xlu0 %v300
        %v302 = vpop.xlane.xlu0 %301
        %v303 = vrsqrt.pop %v302
        %v304 = vmul.f32 %v303, %v302
        %v305 = vmul.f32 %v304, %v303
        %v306 = vmul.f32 0.5, %v305
        %v307 = vsub.f32 1.5, %v306
        %v308 = vmul.f32 %v303, %v307
        %v309 = vmul.f32 %v302, %v308
        %vm310 = vcmp.eq.f32.partialorder %v302, inf
        %v311 = vsel %vm310, %v302, %v309
        %vm312 = vcmp.eq.f32.partialorder %v302, 0.0
        %v313 = vand.u32 %v302, 2147483648
        %v314 = vsel %vm312, %v313, %v311
        %v315 = vadd.f32 %v314, 1e-08
        %v316 = vrcp.pop %v315
        %v317 = vmul.f32 %v315, %v316
        %v318 = vsub.f32 1.0, %v317
        %v319 = vmul.f32 %v316, %v318
        %v320 = vadd.f32 %v316, %v319
        %vm321 = vweird.f32 %v315
        %vm322 = vweird.f32 %v316
        %vm323 = vmor %vm321, %vm322
        %v324 = vsel %vm323, %v316, %v320
        %v325 = vand.u32 2147483647, %v315
        %vm326 = vcmp.eq.f32.partialorder %v325, 8.507059e+37
        %v327 = vand.u32 %v315, 2147483648
        %v328 = vor.u32 1.1754944e-38, %v327
        %v329 = vsel %vm326, %v328, %v324
        %v330 = vmul.f32 1.0, %v329
        %v331 = vmul.f32 %v298, %v330
        %v333 = vsel %vm143, %v331, 0
        %335 = vmatpush.xpose.msra.mxu0 0.0
        %336 = vmatpush.xpose.msra.mxu0 0.0
        %337 = vmatpush.xpose.msra.mxu0 0.0
        %338 = vmatpush.xpose.msra.mxu0 0.0
        %339 = vmatpush.xpose.msra.mxu0 0.0
        %340 = vmatpush.xpose.msra.mxu0 0.0
        %341 = vmatpush.xpose.msra.mxu0 0.0
        %342 = vmatpush.xpose.msra.mxu0 0.0
        %343 = vmatpush.xpose.msra.mxu0 0.0
        %344 = vmatpush.xpose.msra.mxu0 0.0
        %345 = vmatpush.xpose.msra.mxu0 0.0
        %346 = vmatpush.xpose.msra.mxu0 0.0
        %347 = vmatpush.xpose.msra.mxu0 0.0
        %348 = vmatpush.xpose.msra.mxu0 0.0
        %349 = vmatpush.xpose.msra.mxu0 0.0
        %350 = vmatpush.xpose.msra.mxu0 %v333
        %351 = vmatmul.f32.gmra.mxu0 %v333
        %v352 = vpop.f32.mrf.mxu0
        %v353 = vadd.f32 0.0, %v352
        %354 = vdwg.mxu0
        %v355 = vmul.f32 %v353, %v142
        %v356 = vsel %vm168, %v355, 0.0
        %357 = vadd.xlane.f32.xlu0 %v356
        %v358 = vpop.xlane.xlu0 %357
        %v359 = vrot.slane %v356, 4
        %v360 = vadd.f32 %v356, %v359
        %v361 = vrot.slane %v360, 2
        %v362 = vadd.f32 %v360, %v361
        %v363 = vrot.slane %v362, 1
        %v364 = vadd.f32 %v362, %v363
        %v365 = vadd.f32 %v358, %v364
        %v366 = vmul.f32 %v353, 2.0
        %v367 = vsub.f32 %v365, %v366
        %v368 = vmax.f32 %v367, 0.0
        %v369 = vrsqrt.pop %v368
        %v370 = vmul.f32 %v369, %v368
        %v371 = vmul.f32 %v370, %v369
        %v372 = vmul.f32 0.5, %v371
        %v373 = vsub.f32 1.5, %v372
        %v374 = vmul.f32 %v369, %v373
        %v375 = vmul.f32 %v368, %v374
        %vm376 = vcmp.eq.f32.partialorder %v368, inf
        %v377 = vsel %vm376, %v368, %v375
        %vm378 = vcmp.eq.f32.partialorder %v368, 0.0
        %v379 = vand.u32 %v368, 2147483648
        %v380 = vsel %vm378, %v379, %v377
        %v381 = vadd.f32 %v380, 1e-08
        %v382 = vrcp.pop %v381
        %v383 = vmul.f32 %v140, %v382
        %v385 = vsel %vm168, %v383, 0
        %387 = vmatpush.msra.mxu0 0.0
        %388 = vmatpush.msra.mxu0 0.0
        %389 = vmatpush.msra.mxu0 0.0
        %390 = vmatpush.msra.mxu0 0.0
        %391 = vmatpush.msra.mxu0 0.0
        %392 = vmatpush.msra.mxu0 0.0
        %393 = vmatpush.msra.mxu0 0.0
        %394 = vmatpush.msra.mxu0 0.0
        %395 = vmatpush.msra.mxu0 0.0
        %396 = vmatpush.msra.mxu0 0.0
        %397 = vmatpush.msra.mxu0 0.0
        %398 = vmatpush.msra.mxu0 0.0
        %399 = vmatpush.msra.mxu0 0.0
        %400 = vmatpush.msra.mxu0 0.0
        %401 = vmatpush.msra.mxu0 0.0
        %402 = vmatpush.msra.mxu0 %v331
        %403 = vmatmul.f32.gmra.mxu0 %v385
        %v404 = vpop.f32.mrf.mxu0
        %v405 = vadd.f32 0.0, %v404
        %406 = vdwg.mxu0
        %v407 = vmul.f32 %v405, 0.05
        %v408 = vadd.f32 %v331, %v407
        %v410 = vsel %vm143, %v408, 0
        %412 = vmatpush.xpose.msra.mxu0 0.0
        %413 = vmatpush.xpose.msra.mxu0 0.0
        %414 = vmatpush.xpose.msra.mxu0 0.0
        %415 = vmatpush.xpose.msra.mxu0 0.0
        %416 = vmatpush.xpose.msra.mxu0 0.0
        %417 = vmatpush.xpose.msra.mxu0 0.0
        %418 = vmatpush.xpose.msra.mxu0 0.0
        %419 = vmatpush.xpose.msra.mxu0 0.0
        %420 = vmatpush.xpose.msra.mxu0 0.0
        %421 = vmatpush.xpose.msra.mxu0 0.0
        %422 = vmatpush.xpose.msra.mxu0 0.0
        %423 = vmatpush.xpose.msra.mxu0 0.0
        %424 = vmatpush.xpose.msra.mxu0 0.0
        %425 = vmatpush.xpose.msra.mxu0 0.0
        %426 = vmatpush.xpose.msra.mxu0 0.0
        %427 = vmatpush.xpose.msra.mxu0 %v410
        %428 = vmatmul.f32.gmra.mxu0 %v410
        %v429 = vpop.f32.mrf.mxu0
        %v430 = vadd.f32 0.0, %v429
        %431 = vdwg.mxu0
        %v432 = vmul.f32 %v430, %v142
        %v433 = vsel %vm168, %v432, 0.0
        %434 = vadd.xlane.f32.xlu0 %v433
        %v435 = vpop.xlane.xlu0 %434
        %v436 = vrot.slane %v433, 4
        %v437 = vadd.f32 %v433, %v436
        %v438 = vrot.slane %v437, 2
        %v439 = vadd.f32 %v437, %v438
        %v440 = vrot.slane %v439, 1
        %v441 = vadd.f32 %v439, %v440
        %v442 = vadd.f32 %v435, %v441
        %v443 = vmul.f32 %v430, 2.0
        %v444 = vsub.f32 %v442, %v443
        %v445 = vmax.f32 %v444, 0.0
        %v446 = vrsqrt.pop %v445
        %v447 = vmul.f32 %v446, %v445
        %v448 = vmul.f32 %v447, %v446
        %v449 = vmul.f32 0.5, %v448
        %v450 = vsub.f32 1.5, %v449
        %v451 = vmul.f32 %v446, %v450
        %v452 = vmul.f32 %v445, %v451
        %vm453 = vcmp.eq.f32.partialorder %v445, inf
        %v454 = vsel %vm453, %v445, %v452
        %vm455 = vcmp.eq.f32.partialorder %v445, 0.0
        %v456 = vand.u32 %v445, 2147483648
        %v457 = vsel %vm455, %v456, %v454
        %v458 = vadd.f32 %v457, 1e-08
        %v459 = vrcp.pop %v458
        %v460 = vmul.f32 %v140, %v459
        %v462 = vsel %vm168, %v460, 0
        %464 = vmatpush.msra.mxu0 0.0
        %465 = vmatpush.msra.mxu0 0.0
        %466 = vmatpush.msra.mxu0 0.0
        %467 = vmatpush.msra.mxu0 0.0
        %468 = vmatpush.msra.mxu0 0.0
        %469 = vmatpush.msra.mxu0 0.0
        %470 = vmatpush.msra.mxu0 0.0
        %471 = vmatpush.msra.mxu0 0.0
        %472 = vmatpush.msra.mxu0 0.0
        %473 = vmatpush.msra.mxu0 0.0
        %474 = vmatpush.msra.mxu0 0.0
        %475 = vmatpush.msra.mxu0 0.0
        %476 = vmatpush.msra.mxu0 0.0
        %477 = vmatpush.msra.mxu0 0.0
        %478 = vmatpush.msra.mxu0 0.0
        %479 = vmatpush.msra.mxu0 %v408
        %480 = vmatmul.f32.gmra.mxu0 %v462
        %v481 = vpop.f32.mrf.mxu0
        %v482 = vadd.f32 0.0, %v481
        %483 = vdwg.mxu0
        %v484 = vmul.f32 %v482, 0.1
        %v485 = vadd.f32 %v331, %v484
        %v486 = vmul.f32 %v485, %v485
        %v487 = vsel %vm143, %v486, 0.0
        %488 = vadd.xlane.f32.xlu0 %v487
        %v489 = vpop.xlane.xlu0 %488
        %v490 = vrsqrt.pop %v489
        %v491 = vmul.f32 %v490, %v489
        %v492 = vmul.f32 %v491, %v490
        %v493 = vmul.f32 0.5, %v492
        %v494 = vsub.f32 1.5, %v493
        %v495 = vmul.f32 %v490, %v494
        %v496 = vmul.f32 %v489, %v495
        %vm497 = vcmp.eq.f32.partialorder %v489, inf
        %v498 = vsel %vm497, %v489, %v496
        %vm499 = vcmp.eq.f32.partialorder %v489, 0.0
        %v500 = vand.u32 %v489, 2147483648
        %v501 = vsel %vm499, %v500, %v498
        %v502 = vadd.f32 %v501, 1e-08
        %v503 = vrcp.pop %v502
        %v504 = vmul.f32 %v502, %v503
        %v505 = vsub.f32 1.0, %v504
        %v506 = vmul.f32 %v503, %v505
        %v507 = vadd.f32 %v503, %v506
        %vm508 = vweird.f32 %v502
        %vm509 = vweird.f32 %v503
        %vm510 = vmor %vm508, %vm509
        %v511 = vsel %vm510, %v503, %v507
        %v512 = vand.u32 2147483647, %v502
        %vm513 = vcmp.eq.f32.partialorder %v512, 8.507059e+37
        %v514 = vand.u32 %v502, 2147483648
        %v515 = vor.u32 1.1754944e-38, %v514
        %v516 = vsel %vm513, %v515, %v511
        %v517 = vmul.f32 1.0, %v516
        %v518 = vmul.f32 %v485, %v517
        %v520 = vsel %vm143, %v518, 0
        %522 = vmatpush.xpose.msra.mxu0 0.0
        %523 = vmatpush.xpose.msra.mxu0 0.0
        %524 = vmatpush.xpose.msra.mxu0 0.0
        %525 = vmatpush.xpose.msra.mxu0 0.0
        %526 = vmatpush.xpose.msra.mxu0 0.0
        %527 = vmatpush.xpose.msra.mxu0 0.0
        %528 = vmatpush.xpose.msra.mxu0 0.0
        %529 = vmatpush.xpose.msra.mxu0 0.0
        %530 = vmatpush.xpose.msra.mxu0 0.0
        %531 = vmatpush.xpose.msra.mxu0 0.0
        %532 = vmatpush.xpose.msra.mxu0 0.0
        %533 = vmatpush.xpose.msra.mxu0 0.0
        %534 = vmatpush.xpose.msra.mxu0 0.0
        %535 = vmatpush.xpose.msra.mxu0 0.0
        %536 = vmatpush.xpose.msra.mxu0 0.0
        %537 = vmatpush.xpose.msra.mxu0 %v520
        %538 = vmatmul.f32.gmra.mxu0 %v520
        %v539 = vpop.f32.mrf.mxu0
        %v540 = vadd.f32 0.0, %v539
        %541 = vdwg.mxu0
        %v542 = vmul.f32 %v540, %v142
        %v543 = vsel %vm168, %v542, 0.0
        %544 = vadd.xlane.f32.xlu0 %v543
        %v545 = vpop.xlane.xlu0 %544
        %v546 = vrot.slane %v543, 4
        %v547 = vadd.f32 %v543, %v546
        %v548 = vrot.slane %v547, 2
        %v549 = vadd.f32 %v547, %v548
        %v550 = vrot.slane %v549, 1
        %v551 = vadd.f32 %v549, %v550
        %v552 = vadd.f32 %v545, %v551
        %v553 = vmul.f32 %v540, 2.0
        %v554 = vsub.f32 %v552, %v553
        %v555 = vmax.f32 %v554, 0.0
        %v556 = vrsqrt.pop %v555
        %v557 = vmul.f32 %v556, %v555
        %v558 = vmul.f32 %v557, %v556
        %v559 = vmul.f32 0.5, %v558
        %v560 = vsub.f32 1.5, %v559
        %v561 = vmul.f32 %v556, %v560
        %v562 = vmul.f32 %v555, %v561
        %vm563 = vcmp.eq.f32.partialorder %v555, inf
        %v564 = vsel %vm563, %v555, %v562
        %vm565 = vcmp.eq.f32.partialorder %v555, 0.0
        %v566 = vand.u32 %v555, 2147483648
        %v567 = vsel %vm565, %v566, %v564
        %v568 = vadd.f32 %v567, 1e-08
        %v569 = vrcp.pop %v568
        %v570 = vmul.f32 %v140, %v569
        %v572 = vsel %vm168, %v570, 0
        %574 = vmatpush.msra.mxu0 0.0
        %575 = vmatpush.msra.mxu0 0.0
        %576 = vmatpush.msra.mxu0 0.0
        %577 = vmatpush.msra.mxu0 0.0
        %578 = vmatpush.msra.mxu0 0.0
        %579 = vmatpush.msra.mxu0 0.0
        %580 = vmatpush.msra.mxu0 0.0
        %581 = vmatpush.msra.mxu0 0.0
        %582 = vmatpush.msra.mxu0 0.0
        %583 = vmatpush.msra.mxu0 0.0
        %584 = vmatpush.msra.mxu0 0.0
        %585 = vmatpush.msra.mxu0 0.0
        %586 = vmatpush.msra.mxu0 0.0
        %587 = vmatpush.msra.mxu0 0.0
        %588 = vmatpush.msra.mxu0 0.0
        %589 = vmatpush.msra.mxu0 %v518
        %590 = vmatmul.f32.gmra.mxu0 %v572
        %v591 = vpop.f32.mrf.mxu0
        %v592 = vadd.f32 0.0, %v591
        %593 = vdwg.mxu0
        %v594 = vmul.f32 %v592, 0.05
        %v595 = vadd.f32 %v518, %v594
        %v597 = vsel %vm143, %v595, 0
        %599 = vmatpush.xpose.msra.mxu0 0.0
        %600 = vmatpush.xpose.msra.mxu0 0.0
        %601 = vmatpush.xpose.msra.mxu0 0.0
        %602 = vmatpush.xpose.msra.mxu0 0.0
        %603 = vmatpush.xpose.msra.mxu0 0.0
        %604 = vmatpush.xpose.msra.mxu0 0.0
        %605 = vmatpush.xpose.msra.mxu0 0.0
        %606 = vmatpush.xpose.msra.mxu0 0.0
        %607 = vmatpush.xpose.msra.mxu0 0.0
        %608 = vmatpush.xpose.msra.mxu0 0.0
        %609 = vmatpush.xpose.msra.mxu0 0.0
        %610 = vmatpush.xpose.msra.mxu0 0.0
        %611 = vmatpush.xpose.msra.mxu0 0.0
        %612 = vmatpush.xpose.msra.mxu0 0.0
        %613 = vmatpush.xpose.msra.mxu0 0.0
        %614 = vmatpush.xpose.msra.mxu0 %v597
        %615 = vmatmul.f32.gmra.mxu0 %v597
        %v616 = vpop.f32.mrf.mxu0
        %v617 = vadd.f32 0.0, %v616
        %618 = vdwg.mxu0
        %v619 = vmul.f32 %v617, %v142
        %v620 = vsel %vm168, %v619, 0.0
        %621 = vadd.xlane.f32.xlu0 %v620
        %v622 = vpop.xlane.xlu0 %621
        %v623 = vrot.slane %v620, 4
        %v624 = vadd.f32 %v620, %v623
        %v625 = vrot.slane %v624, 2
        %v626 = vadd.f32 %v624, %v625
        %v627 = vrot.slane %v626, 1
        %v628 = vadd.f32 %v626, %v627
        %v629 = vadd.f32 %v622, %v628
        %v630 = vmul.f32 %v617, 2.0
        %v631 = vsub.f32 %v629, %v630
        %v632 = vmax.f32 %v631, 0.0
        %v633 = vrsqrt.pop %v632
        %v634 = vmul.f32 %v633, %v632
        %v635 = vmul.f32 %v634, %v633
        %v636 = vmul.f32 0.5, %v635
        %v637 = vsub.f32 1.5, %v636
        %v638 = vmul.f32 %v633, %v637
        %v639 = vmul.f32 %v632, %v638
        %vm640 = vcmp.eq.f32.partialorder %v632, inf
        %v641 = vsel %vm640, %v632, %v639
        %vm642 = vcmp.eq.f32.partialorder %v632, 0.0
        %v643 = vand.u32 %v632, 2147483648
        %v644 = vsel %vm642, %v643, %v641
        %v645 = vadd.f32 %v644, 1e-08
        %v646 = vrcp.pop %v645
        %v647 = vmul.f32 %v140, %v646
        %v649 = vsel %vm168, %v647, 0
        %651 = vmatpush.msra.mxu0 0.0
        %652 = vmatpush.msra.mxu0 0.0
        %653 = vmatpush.msra.mxu0 0.0
        %654 = vmatpush.msra.mxu0 0.0
        %655 = vmatpush.msra.mxu0 0.0
        %656 = vmatpush.msra.mxu0 0.0
        %657 = vmatpush.msra.mxu0 0.0
        %658 = vmatpush.msra.mxu0 0.0
        %659 = vmatpush.msra.mxu0 0.0
        %660 = vmatpush.msra.mxu0 0.0
        %661 = vmatpush.msra.mxu0 0.0
        %662 = vmatpush.msra.mxu0 0.0
        %663 = vmatpush.msra.mxu0 0.0
        %664 = vmatpush.msra.mxu0 0.0
        %665 = vmatpush.msra.mxu0 0.0
        %666 = vmatpush.msra.mxu0 %v595
        %667 = vmatmul.f32.gmra.mxu0 %v649
        %v668 = vpop.f32.mrf.mxu0
        %v669 = vadd.f32 0.0, %v668
        %670 = vdwg.mxu0
        %v671 = vmul.f32 %v669, 0.1
        %v672 = vadd.f32 %v518, %v671
        %v673 = vmul.f32 %v672, %v672
        %v674 = vsel %vm143, %v673, 0.0
        %675 = vadd.xlane.f32.xlu0 %v674
        %v676 = vpop.xlane.xlu0 %675
        %v677 = vrsqrt.pop %v676
        %v678 = vmul.f32 %v677, %v676
        %v679 = vmul.f32 %v678, %v677
        %v680 = vmul.f32 0.5, %v679
        %v681 = vsub.f32 1.5, %v680
        %v682 = vmul.f32 %v677, %v681
        %v683 = vmul.f32 %v676, %v682
        %vm684 = vcmp.eq.f32.partialorder %v676, inf
        %v685 = vsel %vm684, %v676, %v683
        %vm686 = vcmp.eq.f32.partialorder %v676, 0.0
        %v687 = vand.u32 %v676, 2147483648
        %v688 = vsel %vm686, %v687, %v685
        %v689 = vadd.f32 %v688, 1e-08
        %v690 = vrcp.pop %v689
        %v691 = vmul.f32 %v689, %v690
        %v692 = vsub.f32 1.0, %v691
        %v693 = vmul.f32 %v690, %v692
        %v694 = vadd.f32 %v690, %v693
        %vm695 = vweird.f32 %v689
        %vm696 = vweird.f32 %v690
        %vm697 = vmor %vm695, %vm696
        %v698 = vsel %vm697, %v690, %v694
        %v699 = vand.u32 2147483647, %v689
        %vm700 = vcmp.eq.f32.partialorder %v699, 8.507059e+37
        %v701 = vand.u32 %v689, 2147483648
        %v702 = vor.u32 1.1754944e-38, %v701
        %v703 = vsel %vm700, %v702, %v698
        %v704 = vmul.f32 1.0, %v703
        %v705 = vmul.f32 %v672, %v704
        %v707 = vsel %vm143, %v705, 0
        %709 = vmatpush.xpose.msra.mxu0 0.0
        %710 = vmatpush.xpose.msra.mxu0 0.0
        %711 = vmatpush.xpose.msra.mxu0 0.0
        %712 = vmatpush.xpose.msra.mxu0 0.0
        %713 = vmatpush.xpose.msra.mxu0 0.0
        %714 = vmatpush.xpose.msra.mxu0 0.0
        %715 = vmatpush.xpose.msra.mxu0 0.0
        %716 = vmatpush.xpose.msra.mxu0 0.0
        %717 = vmatpush.xpose.msra.mxu0 0.0
        %718 = vmatpush.xpose.msra.mxu0 0.0
        %719 = vmatpush.xpose.msra.mxu0 0.0
        %720 = vmatpush.xpose.msra.mxu0 0.0
        %721 = vmatpush.xpose.msra.mxu0 0.0
        %722 = vmatpush.xpose.msra.mxu0 0.0
        %723 = vmatpush.xpose.msra.mxu0 0.0
        %724 = vmatpush.xpose.msra.mxu0 %v707
        %725 = vmatmul.f32.gmra.mxu0 %v707
        %v726 = vpop.f32.mrf.mxu0
        %v727 = vadd.f32 0.0, %v726
        %728 = vdwg.mxu0
        %v729 = vmul.f32 %v727, %v142
        %v730 = vsel %vm168, %v729, 0.0
        %731 = vadd.xlane.f32.xlu0 %v730
        %v732 = vpop.xlane.xlu0 %731
        %v733 = vrot.slane %v730, 4
        %v734 = vadd.f32 %v730, %v733
        %v735 = vrot.slane %v734, 2
        %v736 = vadd.f32 %v734, %v735
        %v737 = vrot.slane %v736, 1
        %v738 = vadd.f32 %v736, %v737
        %v739 = vadd.f32 %v732, %v738
        %v740 = vmul.f32 %v727, 2.0
        %v741 = vsub.f32 %v739, %v740
        %v742 = vmax.f32 %v741, 0.0
        %v743 = vrsqrt.pop %v742
        %v744 = vmul.f32 %v743, %v742
        %v745 = vmul.f32 %v744, %v743
        %v746 = vmul.f32 0.5, %v745
        %v747 = vsub.f32 1.5, %v746
        %v748 = vmul.f32 %v743, %v747
        %v749 = vmul.f32 %v742, %v748
        %vm750 = vcmp.eq.f32.partialorder %v742, inf
        %v751 = vsel %vm750, %v742, %v749
        %vm752 = vcmp.eq.f32.partialorder %v742, 0.0
        %v753 = vand.u32 %v742, 2147483648
        %v754 = vsel %vm752, %v753, %v751
        %v755 = vadd.f32 %v754, 1e-08
        %v756 = vrcp.pop %v755
        %v757 = vmul.f32 %v140, %v756
        %v759 = vsel %vm168, %v757, 0
        %761 = vmatpush.msra.mxu0 0.0
        %762 = vmatpush.msra.mxu0 0.0
        %763 = vmatpush.msra.mxu0 0.0
        %764 = vmatpush.msra.mxu0 0.0
        %765 = vmatpush.msra.mxu0 0.0
        %766 = vmatpush.msra.mxu0 0.0
        %767 = vmatpush.msra.mxu0 0.0
        %768 = vmatpush.msra.mxu0 0.0
        %769 = vmatpush.msra.mxu0 0.0
        %770 = vmatpush.msra.mxu0 0.0
        %771 = vmatpush.msra.mxu0 0.0
        %772 = vmatpush.msra.mxu0 0.0
        %773 = vmatpush.msra.mxu0 0.0
        %774 = vmatpush.msra.mxu0 0.0
        %775 = vmatpush.msra.mxu0 0.0
        %776 = vmatpush.msra.mxu0 %v705
        %777 = vmatmul.f32.gmra.mxu0 %v759
        %v778 = vpop.f32.mrf.mxu0
        %v779 = vadd.f32 0.0, %v778
        %780 = vdwg.mxu0
        %v781 = vmul.f32 %v779, 0.05
        %v782 = vadd.f32 %v705, %v781
        %v784 = vsel %vm143, %v782, 0
        %786 = vmatpush.xpose.msra.mxu0 0.0
        %787 = vmatpush.xpose.msra.mxu0 0.0
        %788 = vmatpush.xpose.msra.mxu0 0.0
        %789 = vmatpush.xpose.msra.mxu0 0.0
        %790 = vmatpush.xpose.msra.mxu0 0.0
        %791 = vmatpush.xpose.msra.mxu0 0.0
        %792 = vmatpush.xpose.msra.mxu0 0.0
        %793 = vmatpush.xpose.msra.mxu0 0.0
        %794 = vmatpush.xpose.msra.mxu0 0.0
        %795 = vmatpush.xpose.msra.mxu0 0.0
        %796 = vmatpush.xpose.msra.mxu0 0.0
        %797 = vmatpush.xpose.msra.mxu0 0.0
        %798 = vmatpush.xpose.msra.mxu0 0.0
        %799 = vmatpush.xpose.msra.mxu0 0.0
        %800 = vmatpush.xpose.msra.mxu0 0.0
        %801 = vmatpush.xpose.msra.mxu0 %v784
        %802 = vmatmul.f32.gmra.mxu0 %v784
        %v803 = vpop.f32.mrf.mxu0
        %v804 = vadd.f32 0.0, %v803
        %805 = vdwg.mxu0
        %v806 = vmul.f32 %v804, %v142
        %v807 = vsel %vm168, %v806, 0.0
        %808 = vadd.xlane.f32.xlu0 %v807
        %v809 = vpop.xlane.xlu0 %808
        %v810 = vrot.slane %v807, 4
        %v811 = vadd.f32 %v807, %v810
        %v812 = vrot.slane %v811, 2
        %v813 = vadd.f32 %v811, %v812
        %v814 = vrot.slane %v813, 1
        %v815 = vadd.f32 %v813, %v814
        %v816 = vadd.f32 %v809, %v815
        %v817 = vmul.f32 %v804, 2.0
        %v818 = vsub.f32 %v816, %v817
        %v819 = vmax.f32 %v818, 0.0
        %v820 = vrsqrt.pop %v819
        %v821 = vmul.f32 %v820, %v819
        %v822 = vmul.f32 %v821, %v820
        %v823 = vmul.f32 0.5, %v822
        %v824 = vsub.f32 1.5, %v823
        %v825 = vmul.f32 %v820, %v824
        %v826 = vmul.f32 %v819, %v825
        %vm827 = vcmp.eq.f32.partialorder %v819, inf
        %v828 = vsel %vm827, %v819, %v826
        %vm829 = vcmp.eq.f32.partialorder %v819, 0.0
        %v830 = vand.u32 %v819, 2147483648
        %v831 = vsel %vm829, %v830, %v828
        %v832 = vadd.f32 %v831, 1e-08
        %v833 = vrcp.pop %v832
        %v834 = vmul.f32 %v140, %v833
        %v836 = vsel %vm168, %v834, 0
        %838 = vmatpush.msra.mxu0 0.0
        %839 = vmatpush.msra.mxu0 0.0
        %840 = vmatpush.msra.mxu0 0.0
        %841 = vmatpush.msra.mxu0 0.0
        %842 = vmatpush.msra.mxu0 0.0
        %843 = vmatpush.msra.mxu0 0.0
        %844 = vmatpush.msra.mxu0 0.0
        %845 = vmatpush.msra.mxu0 0.0
        %846 = vmatpush.msra.mxu0 0.0
        %847 = vmatpush.msra.mxu0 0.0
        %848 = vmatpush.msra.mxu0 0.0
        %849 = vmatpush.msra.mxu0 0.0
        %850 = vmatpush.msra.mxu0 0.0
        %851 = vmatpush.msra.mxu0 0.0
        %852 = vmatpush.msra.mxu0 0.0
        %853 = vmatpush.msra.mxu0 %v782
        %854 = vmatmul.f32.gmra.mxu0 %v836
        %v855 = vpop.f32.mrf.mxu0
        %v856 = vadd.f32 0.0, %v855
        %857 = vdwg.mxu0
        %v858 = vmul.f32 %v856, 0.1
        %v859 = vadd.f32 %v705, %v858
        %v860 = vmul.f32 %v859, %v859
        %v861 = vsel %vm143, %v860, 0.0
        %862 = vadd.xlane.f32.xlu0 %v861
        %v863 = vpop.xlane.xlu0 %862
        %v864 = vrsqrt.pop %v863
        %v865 = vmul.f32 %v864, %v863
        %v866 = vmul.f32 %v865, %v864
        %v867 = vmul.f32 0.5, %v866
        %v868 = vsub.f32 1.5, %v867
        %v869 = vmul.f32 %v864, %v868
        %v870 = vmul.f32 %v863, %v869
        %vm871 = vcmp.eq.f32.partialorder %v863, inf
        %v872 = vsel %vm871, %v863, %v870
        %vm873 = vcmp.eq.f32.partialorder %v863, 0.0
        %v874 = vand.u32 %v863, 2147483648
        %v875 = vsel %vm873, %v874, %v872
        %v876 = vadd.f32 %v875, 1e-08
        %v877 = vrcp.pop %v876
        %v878 = vmul.f32 %v876, %v877
        %v879 = vsub.f32 1.0, %v878
        %v880 = vmul.f32 %v877, %v879
        %v881 = vadd.f32 %v877, %v880
        %vm882 = vweird.f32 %v876
        %vm883 = vweird.f32 %v877
        %vm884 = vmor %vm882, %vm883
        %v885 = vsel %vm884, %v877, %v881
        %v886 = vand.u32 2147483647, %v876
        %vm887 = vcmp.eq.f32.partialorder %v886, 8.507059e+37
        %v888 = vand.u32 %v876, 2147483648
        %v889 = vor.u32 1.1754944e-38, %v888
        %v890 = vsel %vm887, %v889, %v885
        %v891 = vmul.f32 1.0, %v890
        %v892 = vmul.f32 %v859, %v891
        %v894 = vsel %vm143, %v892, 0
        %896 = vmatpush.xpose.msra.mxu0 0.0
        %897 = vmatpush.xpose.msra.mxu0 0.0
        %898 = vmatpush.xpose.msra.mxu0 0.0
        %899 = vmatpush.xpose.msra.mxu0 0.0
        %900 = vmatpush.xpose.msra.mxu0 0.0
        %901 = vmatpush.xpose.msra.mxu0 0.0
        %902 = vmatpush.xpose.msra.mxu0 0.0
        %903 = vmatpush.xpose.msra.mxu0 0.0
        %904 = vmatpush.xpose.msra.mxu0 0.0
        %905 = vmatpush.xpose.msra.mxu0 0.0
        %906 = vmatpush.xpose.msra.mxu0 0.0
        %907 = vmatpush.xpose.msra.mxu0 0.0
        %908 = vmatpush.xpose.msra.mxu0 0.0
        %909 = vmatpush.xpose.msra.mxu0 0.0
        %910 = vmatpush.xpose.msra.mxu0 0.0
        %911 = vmatpush.xpose.msra.mxu0 %v894
        %912 = vmatmul.f32.gmra.mxu0 %v894
        %v913 = vpop.f32.mrf.mxu0
        %v914 = vadd.f32 0.0, %v913
        %915 = vdwg.mxu0
        %v916 = vmul.f32 %v914, %v142
        %v917 = vsel %vm168, %v916, 0.0
        %918 = vadd.xlane.f32.xlu0 %v917
        %v919 = vpop.xlane.xlu0 %918
        %v920 = vrot.slane %v917, 4
        %v921 = vadd.f32 %v917, %v920
        %v922 = vrot.slane %v921, 2
        %v923 = vadd.f32 %v921, %v922
        %v924 = vrot.slane %v923, 1
        %v925 = vadd.f32 %v923, %v924
        %v926 = vadd.f32 %v919, %v925
        %v927 = vmul.f32 %v914, 2.0
        %v928 = vsub.f32 %v926, %v927
        %v929 = vmax.f32 %v928, 0.0
        %v930 = vrsqrt.pop %v929
        %v931 = vmul.f32 %v930, %v929
        %v932 = vmul.f32 %v931, %v930
        %v933 = vmul.f32 0.5, %v932
        %v934 = vsub.f32 1.5, %v933
        %v935 = vmul.f32 %v930, %v934
        %v936 = vmul.f32 %v929, %v935
        %vm937 = vcmp.eq.f32.partialorder %v929, inf
        %v938 = vsel %vm937, %v929, %v936
        %vm939 = vcmp.eq.f32.partialorder %v929, 0.0
        %v940 = vand.u32 %v929, 2147483648
        %v941 = vsel %vm939, %v940, %v938
        %v942 = vadd.f32 %v941, 1e-08
        %v943 = vrcp.pop %v942
        %v944 = vmul.f32 %v140, %v943
        %v946 = vsel %vm168, %v944, 0
        %948 = vmatpush.msra.mxu0 0.0
        %949 = vmatpush.msra.mxu0 0.0
        %950 = vmatpush.msra.mxu0 0.0
        %951 = vmatpush.msra.mxu0 0.0
        %952 = vmatpush.msra.mxu0 0.0
        %953 = vmatpush.msra.mxu0 0.0
        %954 = vmatpush.msra.mxu0 0.0
        %955 = vmatpush.msra.mxu0 0.0
        %956 = vmatpush.msra.mxu0 0.0
        %957 = vmatpush.msra.mxu0 0.0
        %958 = vmatpush.msra.mxu0 0.0
        %959 = vmatpush.msra.mxu0 0.0
        %960 = vmatpush.msra.mxu0 0.0
        %961 = vmatpush.msra.mxu0 0.0
        %962 = vmatpush.msra.mxu0 0.0
        %963 = vmatpush.msra.mxu0 %v892
        %964 = vmatmul.f32.gmra.mxu0 %v946
        %v965 = vpop.f32.mrf.mxu0
        %v966 = vadd.f32 0.0, %v965
        %967 = vdwg.mxu0
        %v968 = vmul.f32 %v966, 0.05
        %v969 = vadd.f32 %v892, %v968
        %v971 = vsel %vm143, %v969, 0
        %973 = vmatpush.xpose.msra.mxu0 0.0
        %974 = vmatpush.xpose.msra.mxu0 0.0
        %975 = vmatpush.xpose.msra.mxu0 0.0
        %976 = vmatpush.xpose.msra.mxu0 0.0
        %977 = vmatpush.xpose.msra.mxu0 0.0
        %978 = vmatpush.xpose.msra.mxu0 0.0
        %979 = vmatpush.xpose.msra.mxu0 0.0
        %980 = vmatpush.xpose.msra.mxu0 0.0
        %981 = vmatpush.xpose.msra.mxu0 0.0
        %982 = vmatpush.xpose.msra.mxu0 0.0
        %983 = vmatpush.xpose.msra.mxu0 0.0
        %984 = vmatpush.xpose.msra.mxu0 0.0
        %985 = vmatpush.xpose.msra.mxu0 0.0
        %986 = vmatpush.xpose.msra.mxu0 0.0
        %987 = vmatpush.xpose.msra.mxu0 0.0
        %988 = vmatpush.xpose.msra.mxu0 %v971
        %989 = vmatmul.f32.gmra.mxu0 %v971
        %v990 = vpop.f32.mrf.mxu0
        %v991 = vadd.f32 0.0, %v990
        %992 = vdwg.mxu0
        %v993 = vmul.f32 %v991, %v142
        %v994 = vsel %vm168, %v993, 0.0
        %995 = vadd.xlane.f32.xlu0 %v994
        %v996 = vpop.xlane.xlu0 %995
        %v997 = vrot.slane %v994, 4
        %v998 = vadd.f32 %v994, %v997
        %v999 = vrot.slane %v998, 2
        %v1000 = vadd.f32 %v998, %v999
        %v1001 = vrot.slane %v1000, 1
        %v1002 = vadd.f32 %v1000, %v1001
        %v1003 = vadd.f32 %v996, %v1002
        %v1004 = vmul.f32 %v991, 2.0
        %v1005 = vsub.f32 %v1003, %v1004
        %v1006 = vmax.f32 %v1005, 0.0
        %v1007 = vrsqrt.pop %v1006
        %v1008 = vmul.f32 %v1007, %v1006
        %v1009 = vmul.f32 %v1008, %v1007
        %v1010 = vmul.f32 0.5, %v1009
        %v1011 = vsub.f32 1.5, %v1010
        %v1012 = vmul.f32 %v1007, %v1011
        %v1013 = vmul.f32 %v1006, %v1012
        %vm1014 = vcmp.eq.f32.partialorder %v1006, inf
        %v1015 = vsel %vm1014, %v1006, %v1013
        %vm1016 = vcmp.eq.f32.partialorder %v1006, 0.0
        %v1017 = vand.u32 %v1006, 2147483648
        %v1018 = vsel %vm1016, %v1017, %v1015
        %v1019 = vadd.f32 %v1018, 1e-08
        %v1020 = vrcp.pop %v1019
        %v1021 = vmul.f32 %v140, %v1020
        %v1023 = vsel %vm168, %v1021, 0
        %1025 = vmatpush.msra.mxu0 0.0
        %1026 = vmatpush.msra.mxu0 0.0
        %1027 = vmatpush.msra.mxu0 0.0
        %1028 = vmatpush.msra.mxu0 0.0
        %1029 = vmatpush.msra.mxu0 0.0
        %1030 = vmatpush.msra.mxu0 0.0
        %1031 = vmatpush.msra.mxu0 0.0
        %1032 = vmatpush.msra.mxu0 0.0
        %1033 = vmatpush.msra.mxu0 0.0
        %1034 = vmatpush.msra.mxu0 0.0
        %1035 = vmatpush.msra.mxu0 0.0
        %1036 = vmatpush.msra.mxu0 0.0
        %1037 = vmatpush.msra.mxu0 0.0
        %1038 = vmatpush.msra.mxu0 0.0
        %1039 = vmatpush.msra.mxu0 0.0
        %1040 = vmatpush.msra.mxu0 %v969
        %1041 = vmatmul.f32.gmra.mxu0 %v1023
        %v1042 = vpop.f32.mrf.mxu0
        %v1043 = vadd.f32 0.0, %v1042
        %1044 = vdwg.mxu0
        %v1045 = vmul.f32 %v1043, 0.1
        %v1046 = vadd.f32 %v892, %v1045
        %v1047 = vmul.f32 %v1046, %v1046
        %v1048 = vsel %vm143, %v1047, 0.0
        %1049 = vadd.xlane.f32.xlu0 %v1048
        %v1050 = vpop.xlane.xlu0 %1049
        %v1051 = vrsqrt.pop %v1050
        %v1052 = vmul.f32 %v1051, %v1050
        %v1053 = vmul.f32 %v1052, %v1051
        %v1054 = vmul.f32 0.5, %v1053
        %v1055 = vsub.f32 1.5, %v1054
        %v1056 = vmul.f32 %v1051, %v1055
        %v1057 = vmul.f32 %v1050, %v1056
        %vm1058 = vcmp.eq.f32.partialorder %v1050, inf
        %v1059 = vsel %vm1058, %v1050, %v1057
        %vm1060 = vcmp.eq.f32.partialorder %v1050, 0.0
        %v1061 = vand.u32 %v1050, 2147483648
        %v1062 = vsel %vm1060, %v1061, %v1059
        %v1063 = vadd.f32 %v1062, 1e-08
        %v1064 = vrcp.pop %v1063
        %v1065 = vmul.f32 %v1063, %v1064
        %v1066 = vsub.f32 1.0, %v1065
        %v1067 = vmul.f32 %v1064, %v1066
        %v1068 = vadd.f32 %v1064, %v1067
        %vm1069 = vweird.f32 %v1063
        %vm1070 = vweird.f32 %v1064
        %vm1071 = vmor %vm1069, %vm1070
        %v1072 = vsel %vm1071, %v1064, %v1068
        %v1073 = vand.u32 2147483647, %v1063
        %vm1074 = vcmp.eq.f32.partialorder %v1073, 8.507059e+37
        %v1075 = vand.u32 %v1063, 2147483648
        %v1076 = vor.u32 1.1754944e-38, %v1075
        %v1077 = vsel %vm1074, %v1076, %v1072
        %v1078 = vmul.f32 1.0, %v1077
        %v1079 = vmul.f32 %v1046, %v1078
        %v1081 = vsel %vm143, %v1079, 0
        %1083 = vmatpush.xpose.msra.mxu0 0.0
        %1084 = vmatpush.xpose.msra.mxu0 0.0
        %1085 = vmatpush.xpose.msra.mxu0 0.0
        %1086 = vmatpush.xpose.msra.mxu0 0.0
        %1087 = vmatpush.xpose.msra.mxu0 0.0
        %1088 = vmatpush.xpose.msra.mxu0 0.0
        %1089 = vmatpush.xpose.msra.mxu0 0.0
        %1090 = vmatpush.xpose.msra.mxu0 0.0
        %1091 = vmatpush.xpose.msra.mxu0 0.0
        %1092 = vmatpush.xpose.msra.mxu0 0.0
        %1093 = vmatpush.xpose.msra.mxu0 0.0
        %1094 = vmatpush.xpose.msra.mxu0 0.0
        %1095 = vmatpush.xpose.msra.mxu0 0.0
        %1096 = vmatpush.xpose.msra.mxu0 0.0
        %1097 = vmatpush.xpose.msra.mxu0 0.0
        %1098 = vmatpush.xpose.msra.mxu0 %v1081
        %1099 = vmatmul.f32.gmra.mxu0 %v1081
        %v1100 = vpop.f32.mrf.mxu0
        %v1101 = vadd.f32 0.0, %v1100
        %1102 = vdwg.mxu0
        %v1103 = vmul.f32 %v1101, %v142
        %v1104 = vsel %vm168, %v1103, 0.0
        %1105 = vadd.xlane.f32.xlu0 %v1104
        %v1106 = vpop.xlane.xlu0 %1105
        %v1107 = vrot.slane %v1104, 4
        %v1108 = vadd.f32 %v1104, %v1107
        %v1109 = vrot.slane %v1108, 2
        %v1110 = vadd.f32 %v1108, %v1109
        %v1111 = vrot.slane %v1110, 1
        %v1112 = vadd.f32 %v1110, %v1111
        %v1113 = vadd.f32 %v1106, %v1112
        %v1114 = vmul.f32 %v1101, 2.0
        %v1115 = vsub.f32 %v1113, %v1114
        %v1116 = vmax.f32 %v1115, 0.0
        %v1117 = vrsqrt.pop %v1116
        %v1118 = vmul.f32 %v1117, %v1116
        %v1119 = vmul.f32 %v1118, %v1117
        %v1120 = vmul.f32 0.5, %v1119
        %v1121 = vsub.f32 1.5, %v1120
        %v1122 = vmul.f32 %v1117, %v1121
        %v1123 = vmul.f32 %v1116, %v1122
        %vm1124 = vcmp.eq.f32.partialorder %v1116, inf
        %v1125 = vsel %vm1124, %v1116, %v1123
        %vm1126 = vcmp.eq.f32.partialorder %v1116, 0.0
        %v1127 = vand.u32 %v1116, 2147483648
        %v1128 = vsel %vm1126, %v1127, %v1125
        %v1129 = vadd.f32 %v1128, 1e-08
        %v1130 = vrcp.pop %v1129
        %v1131 = vmul.f32 %v140, %v1130
        %v1133 = vsel %vm168, %v1131, 0
        %1135 = vmatpush.msra.mxu0 0.0
        %1136 = vmatpush.msra.mxu0 0.0
        %1137 = vmatpush.msra.mxu0 0.0
        %1138 = vmatpush.msra.mxu0 0.0
        %1139 = vmatpush.msra.mxu0 0.0
        %1140 = vmatpush.msra.mxu0 0.0
        %1141 = vmatpush.msra.mxu0 0.0
        %1142 = vmatpush.msra.mxu0 0.0
        %1143 = vmatpush.msra.mxu0 0.0
        %1144 = vmatpush.msra.mxu0 0.0
        %1145 = vmatpush.msra.mxu0 0.0
        %1146 = vmatpush.msra.mxu0 0.0
        %1147 = vmatpush.msra.mxu0 0.0
        %1148 = vmatpush.msra.mxu0 0.0
        %1149 = vmatpush.msra.mxu0 0.0
        %1150 = vmatpush.msra.mxu0 %v1079
        %1151 = vmatmul.f32.gmra.mxu0 %v1133
        %v1152 = vpop.f32.mrf.mxu0
        %v1153 = vadd.f32 0.0, %v1152
        %1154 = vdwg.mxu0
        %v1155 = vmul.f32 %v1153, 0.05
        %v1156 = vadd.f32 %v1079, %v1155
        %v1158 = vsel %vm143, %v1156, 0
        %1160 = vmatpush.xpose.msra.mxu0 0.0
        %1161 = vmatpush.xpose.msra.mxu0 0.0
        %1162 = vmatpush.xpose.msra.mxu0 0.0
        %1163 = vmatpush.xpose.msra.mxu0 0.0
        %1164 = vmatpush.xpose.msra.mxu0 0.0
        %1165 = vmatpush.xpose.msra.mxu0 0.0
        %1166 = vmatpush.xpose.msra.mxu0 0.0
        %1167 = vmatpush.xpose.msra.mxu0 0.0
        %1168 = vmatpush.xpose.msra.mxu0 0.0
        %1169 = vmatpush.xpose.msra.mxu0 0.0
        %1170 = vmatpush.xpose.msra.mxu0 0.0
        %1171 = vmatpush.xpose.msra.mxu0 0.0
        %1172 = vmatpush.xpose.msra.mxu0 0.0
        %1173 = vmatpush.xpose.msra.mxu0 0.0
        %1174 = vmatpush.xpose.msra.mxu0 0.0
        %1175 = vmatpush.xpose.msra.mxu0 %v1158
        %1176 = vmatmul.f32.gmra.mxu0 %v1158
        %v1177 = vpop.f32.mrf.mxu0
        %v1178 = vadd.f32 0.0, %v1177
        %1179 = vdwg.mxu0
        %v1180 = vmul.f32 %v1178, %v142
        %v1181 = vsel %vm168, %v1180, 0.0
        %1182 = vadd.xlane.f32.xlu0 %v1181
        %v1183 = vpop.xlane.xlu0 %1182
        %v1184 = vrot.slane %v1181, 4
        %v1185 = vadd.f32 %v1181, %v1184
        %v1186 = vrot.slane %v1185, 2
        %v1187 = vadd.f32 %v1185, %v1186
        %v1188 = vrot.slane %v1187, 1
        %v1189 = vadd.f32 %v1187, %v1188
        %v1190 = vadd.f32 %v1183, %v1189
        %v1191 = vmul.f32 %v1178, 2.0
        %v1192 = vsub.f32 %v1190, %v1191
        %v1193 = vmax.f32 %v1192, 0.0
        %v1194 = vrsqrt.pop %v1193
        %v1195 = vmul.f32 %v1194, %v1193
        %v1196 = vmul.f32 %v1195, %v1194
        %v1197 = vmul.f32 0.5, %v1196
        %v1198 = vsub.f32 1.5, %v1197
        %v1199 = vmul.f32 %v1194, %v1198
        %v1200 = vmul.f32 %v1193, %v1199
        %vm1201 = vcmp.eq.f32.partialorder %v1193, inf
        %v1202 = vsel %vm1201, %v1193, %v1200
        %vm1203 = vcmp.eq.f32.partialorder %v1193, 0.0
        %v1204 = vand.u32 %v1193, 2147483648
        %v1205 = vsel %vm1203, %v1204, %v1202
        %v1206 = vadd.f32 %v1205, 1e-08
        %v1207 = vrcp.pop %v1206
        %v1208 = vmul.f32 %v140, %v1207
        %v1210 = vsel %vm168, %v1208, 0
        %1212 = vmatpush.msra.mxu0 0.0
        %1213 = vmatpush.msra.mxu0 0.0
        %1214 = vmatpush.msra.mxu0 0.0
        %1215 = vmatpush.msra.mxu0 0.0
        %1216 = vmatpush.msra.mxu0 0.0
        %1217 = vmatpush.msra.mxu0 0.0
        %1218 = vmatpush.msra.mxu0 0.0
        %1219 = vmatpush.msra.mxu0 0.0
        %1220 = vmatpush.msra.mxu0 0.0
        %1221 = vmatpush.msra.mxu0 0.0
        %1222 = vmatpush.msra.mxu0 0.0
        %1223 = vmatpush.msra.mxu0 0.0
        %1224 = vmatpush.msra.mxu0 0.0
        %1225 = vmatpush.msra.mxu0 0.0
        %1226 = vmatpush.msra.mxu0 0.0
        %1227 = vmatpush.msra.mxu0 %v1156
        %1228 = vmatmul.f32.gmra.mxu0 %v1210
        %v1229 = vpop.f32.mrf.mxu0
        %v1230 = vadd.f32 0.0, %v1229
        %1231 = vdwg.mxu0
        %v1232 = vmul.f32 %v1230, 0.1
        %v1233 = vadd.f32 %v1079, %v1232
        %v1234 = vmul.f32 %v1233, %v1233
        %v1235 = vsel %vm143, %v1234, 0.0
        %1236 = vadd.xlane.f32.xlu0 %v1235
        %v1237 = vpop.xlane.xlu0 %1236
        %v1238 = vrsqrt.pop %v1237
        %v1239 = vmul.f32 %v1238, %v1237
        %v1240 = vmul.f32 %v1239, %v1238
        %v1241 = vmul.f32 0.5, %v1240
        %v1242 = vsub.f32 1.5, %v1241
        %v1243 = vmul.f32 %v1238, %v1242
        %v1244 = vmul.f32 %v1237, %v1243
        %vm1245 = vcmp.eq.f32.partialorder %v1237, inf
        %v1246 = vsel %vm1245, %v1237, %v1244
        %vm1247 = vcmp.eq.f32.partialorder %v1237, 0.0
        %v1248 = vand.u32 %v1237, 2147483648
        %v1249 = vsel %vm1247, %v1248, %v1246
        %v1250 = vadd.f32 %v1249, 1e-08
        %v1251 = vrcp.pop %v1250
        %v1252 = vmul.f32 %v1250, %v1251
        %v1253 = vsub.f32 1.0, %v1252
        %v1254 = vmul.f32 %v1251, %v1253
        %v1255 = vadd.f32 %v1251, %v1254
        %vm1256 = vweird.f32 %v1250
        %vm1257 = vweird.f32 %v1251
        %vm1258 = vmor %vm1256, %vm1257
        %v1259 = vsel %vm1258, %v1251, %v1255
        %v1260 = vand.u32 2147483647, %v1250
        %vm1261 = vcmp.eq.f32.partialorder %v1260, 8.507059e+37
        %v1262 = vand.u32 %v1250, 2147483648
        %v1263 = vor.u32 1.1754944e-38, %v1262
        %v1264 = vsel %vm1261, %v1263, %v1259
        %v1265 = vmul.f32 1.0, %v1264
        %v1266 = vmul.f32 %v1233, %v1265
        %v1268 = vsel %vm143, %v1266, 0
        %1270 = vmatpush.xpose.msra.mxu0 0.0
        %1271 = vmatpush.xpose.msra.mxu0 0.0
        %1272 = vmatpush.xpose.msra.mxu0 0.0
        %1273 = vmatpush.xpose.msra.mxu0 0.0
        %1274 = vmatpush.xpose.msra.mxu0 0.0
        %1275 = vmatpush.xpose.msra.mxu0 0.0
        %1276 = vmatpush.xpose.msra.mxu0 0.0
        %1277 = vmatpush.xpose.msra.mxu0 0.0
        %1278 = vmatpush.xpose.msra.mxu0 0.0
        %1279 = vmatpush.xpose.msra.mxu0 0.0
        %1280 = vmatpush.xpose.msra.mxu0 0.0
        %1281 = vmatpush.xpose.msra.mxu0 0.0
        %1282 = vmatpush.xpose.msra.mxu0 0.0
        %1283 = vmatpush.xpose.msra.mxu0 0.0
        %1284 = vmatpush.xpose.msra.mxu0 0.0
        %1285 = vmatpush.xpose.msra.mxu0 %v1268
        %1286 = vmatmul.f32.gmra.mxu0 %v1268
        %v1287 = vpop.f32.mrf.mxu0
        %v1288 = vadd.f32 0.0, %v1287
        %1289 = vdwg.mxu0
        %v1290 = vmul.f32 %v1288, %v142
        %v1291 = vsel %vm168, %v1290, 0.0
        %1292 = vadd.xlane.f32.xlu0 %v1291
        %v1293 = vpop.xlane.xlu0 %1292
        %v1294 = vrot.slane %v1291, 4
        %v1295 = vadd.f32 %v1291, %v1294
        %v1296 = vrot.slane %v1295, 2
        %v1297 = vadd.f32 %v1295, %v1296
        %v1298 = vrot.slane %v1297, 1
        %v1299 = vadd.f32 %v1297, %v1298
        %v1300 = vadd.f32 %v1293, %v1299
        %v1301 = vmul.f32 %v1288, 2.0
        %v1302 = vsub.f32 %v1300, %v1301
        %v1303 = vmax.f32 %v1302, 0.0
        %v1304 = vrsqrt.pop %v1303
        %v1305 = vmul.f32 %v1304, %v1303
        %v1306 = vmul.f32 %v1305, %v1304
        %v1307 = vmul.f32 0.5, %v1306
        %v1308 = vsub.f32 1.5, %v1307
        %v1309 = vmul.f32 %v1304, %v1308
        %v1310 = vmul.f32 %v1303, %v1309
        %vm1311 = vcmp.eq.f32.partialorder %v1303, inf
        %v1312 = vsel %vm1311, %v1303, %v1310
        %vm1313 = vcmp.eq.f32.partialorder %v1303, 0.0
        %v1314 = vand.u32 %v1303, 2147483648
        %v1315 = vsel %vm1313, %v1314, %v1312
        %v1316 = vadd.f32 %v1315, 1e-08
        %v1317 = vrcp.pop %v1316
        %v1318 = vmul.f32 %v140, %v1317
        %v1320 = vsel %vm168, %v1318, 0
        %1322 = vmatpush.msra.mxu0 0.0
        %1323 = vmatpush.msra.mxu0 0.0
        %1324 = vmatpush.msra.mxu0 0.0
        %1325 = vmatpush.msra.mxu0 0.0
        %1326 = vmatpush.msra.mxu0 0.0
        %1327 = vmatpush.msra.mxu0 0.0
        %1328 = vmatpush.msra.mxu0 0.0
        %1329 = vmatpush.msra.mxu0 0.0
        %1330 = vmatpush.msra.mxu0 0.0
        %1331 = vmatpush.msra.mxu0 0.0
        %1332 = vmatpush.msra.mxu0 0.0
        %1333 = vmatpush.msra.mxu0 0.0
        %1334 = vmatpush.msra.mxu0 0.0
        %1335 = vmatpush.msra.mxu0 0.0
        %1336 = vmatpush.msra.mxu0 0.0
        %1337 = vmatpush.msra.mxu0 %v1266
        %1338 = vmatmul.f32.gmra.mxu0 %v1320
        %v1339 = vpop.f32.mrf.mxu0
        %v1340 = vadd.f32 0.0, %v1339
        %1341 = vdwg.mxu0
        %v1342 = vmul.f32 %v1340, 0.05
        %v1343 = vadd.f32 %v1266, %v1342
        %v1345 = vsel %vm143, %v1343, 0
        %1347 = vmatpush.xpose.msra.mxu0 0.0
        %1348 = vmatpush.xpose.msra.mxu0 0.0
        %1349 = vmatpush.xpose.msra.mxu0 0.0
        %1350 = vmatpush.xpose.msra.mxu0 0.0
        %1351 = vmatpush.xpose.msra.mxu0 0.0
        %1352 = vmatpush.xpose.msra.mxu0 0.0
        %1353 = vmatpush.xpose.msra.mxu0 0.0
        %1354 = vmatpush.xpose.msra.mxu0 0.0
        %1355 = vmatpush.xpose.msra.mxu0 0.0
        %1356 = vmatpush.xpose.msra.mxu0 0.0
        %1357 = vmatpush.xpose.msra.mxu0 0.0
        %1358 = vmatpush.xpose.msra.mxu0 0.0
        %1359 = vmatpush.xpose.msra.mxu0 0.0
        %1360 = vmatpush.xpose.msra.mxu0 0.0
        %1361 = vmatpush.xpose.msra.mxu0 0.0
        %1362 = vmatpush.xpose.msra.mxu0 %v1345
        %1363 = vmatmul.f32.gmra.mxu0 %v1345
        %v1364 = vpop.f32.mrf.mxu0
        %v1365 = vadd.f32 0.0, %v1364
        %1366 = vdwg.mxu0
        %v1367 = vmul.f32 %v1365, %v142
        %v1368 = vsel %vm168, %v1367, 0.0
        %1369 = vadd.xlane.f32.xlu0 %v1368
        %v1370 = vpop.xlane.xlu0 %1369
        %v1371 = vrot.slane %v1368, 4
        %v1372 = vadd.f32 %v1368, %v1371
        %v1373 = vrot.slane %v1372, 2
        %v1374 = vadd.f32 %v1372, %v1373
        %v1375 = vrot.slane %v1374, 1
        %v1376 = vadd.f32 %v1374, %v1375
        %v1377 = vadd.f32 %v1370, %v1376
        %v1378 = vmul.f32 %v1365, 2.0
        %v1379 = vsub.f32 %v1377, %v1378
        %v1380 = vmax.f32 %v1379, 0.0
        %v1381 = vrsqrt.pop %v1380
        %v1382 = vmul.f32 %v1381, %v1380
        %v1383 = vmul.f32 %v1382, %v1381
        %v1384 = vmul.f32 0.5, %v1383
        %v1385 = vsub.f32 1.5, %v1384
        %v1386 = vmul.f32 %v1381, %v1385
        %v1387 = vmul.f32 %v1380, %v1386
        %vm1388 = vcmp.eq.f32.partialorder %v1380, inf
        %v1389 = vsel %vm1388, %v1380, %v1387
        %vm1390 = vcmp.eq.f32.partialorder %v1380, 0.0
        %v1391 = vand.u32 %v1380, 2147483648
        %v1392 = vsel %vm1390, %v1391, %v1389
        %v1393 = vadd.f32 %v1392, 1e-08
        %v1394 = vrcp.pop %v1393
        %v1395 = vmul.f32 %v140, %v1394
        %v1397 = vsel %vm168, %v1395, 0
        %1399 = vmatpush.msra.mxu0 0.0
        %1400 = vmatpush.msra.mxu0 0.0
        %1401 = vmatpush.msra.mxu0 0.0
        %1402 = vmatpush.msra.mxu0 0.0
        %1403 = vmatpush.msra.mxu0 0.0
        %1404 = vmatpush.msra.mxu0 0.0
        %1405 = vmatpush.msra.mxu0 0.0
        %1406 = vmatpush.msra.mxu0 0.0
        %1407 = vmatpush.msra.mxu0 0.0
        %1408 = vmatpush.msra.mxu0 0.0
        %1409 = vmatpush.msra.mxu0 0.0
        %1410 = vmatpush.msra.mxu0 0.0
        %1411 = vmatpush.msra.mxu0 0.0
        %1412 = vmatpush.msra.mxu0 0.0
        %1413 = vmatpush.msra.mxu0 0.0
        %1414 = vmatpush.msra.mxu0 %v1343
        %1415 = vmatmul.f32.gmra.mxu0 %v1397
        %v1416 = vpop.f32.mrf.mxu0
        %v1417 = vadd.f32 0.0, %v1416
        %1418 = vdwg.mxu0
        %v1419 = vmul.f32 %v1417, 0.1
        %v1420 = vadd.f32 %v1266, %v1419
        %v1421 = vmul.f32 %v1420, %v1420
        %v1422 = vsel %vm143, %v1421, 0.0
        %1423 = vadd.xlane.f32.xlu0 %v1422
        %v1424 = vpop.xlane.xlu0 %1423
        %v1425 = vrsqrt.pop %v1424
        %v1426 = vmul.f32 %v1425, %v1424
        %v1427 = vmul.f32 %v1426, %v1425
        %v1428 = vmul.f32 0.5, %v1427
        %v1429 = vsub.f32 1.5, %v1428
        %v1430 = vmul.f32 %v1425, %v1429
        %v1431 = vmul.f32 %v1424, %v1430
        %vm1432 = vcmp.eq.f32.partialorder %v1424, inf
        %v1433 = vsel %vm1432, %v1424, %v1431
        %vm1434 = vcmp.eq.f32.partialorder %v1424, 0.0
        %v1435 = vand.u32 %v1424, 2147483648
        %v1436 = vsel %vm1434, %v1435, %v1433
        %v1437 = vadd.f32 %v1436, 1e-08
        %v1438 = vrcp.pop %v1437
        %v1439 = vmul.f32 %v1437, %v1438
        %v1440 = vsub.f32 1.0, %v1439
        %v1441 = vmul.f32 %v1438, %v1440
        %v1442 = vadd.f32 %v1438, %v1441
        %vm1443 = vweird.f32 %v1437
        %vm1444 = vweird.f32 %v1438
        %vm1445 = vmor %vm1443, %vm1444
        %v1446 = vsel %vm1445, %v1438, %v1442
        %v1447 = vand.u32 2147483647, %v1437
        %vm1448 = vcmp.eq.f32.partialorder %v1447, 8.507059e+37
        %v1449 = vand.u32 %v1437, 2147483648
        %v1450 = vor.u32 1.1754944e-38, %v1449
        %v1451 = vsel %vm1448, %v1450, %v1446
        %v1452 = vmul.f32 1.0, %v1451
        %v1453 = vmul.f32 %v1420, %v1452
        %v1455 = vsel %vm143, %v1453, 0
        %1457 = vmatpush.xpose.msra.mxu0 0.0
        %1458 = vmatpush.xpose.msra.mxu0 0.0
        %1459 = vmatpush.xpose.msra.mxu0 0.0
        %1460 = vmatpush.xpose.msra.mxu0 0.0
        %1461 = vmatpush.xpose.msra.mxu0 0.0
        %1462 = vmatpush.xpose.msra.mxu0 0.0
        %1463 = vmatpush.xpose.msra.mxu0 0.0
        %1464 = vmatpush.xpose.msra.mxu0 0.0
        %1465 = vmatpush.xpose.msra.mxu0 0.0
        %1466 = vmatpush.xpose.msra.mxu0 0.0
        %1467 = vmatpush.xpose.msra.mxu0 0.0
        %1468 = vmatpush.xpose.msra.mxu0 0.0
        %1469 = vmatpush.xpose.msra.mxu0 0.0
        %1470 = vmatpush.xpose.msra.mxu0 0.0
        %1471 = vmatpush.xpose.msra.mxu0 0.0
        %1472 = vmatpush.xpose.msra.mxu0 %v1455
        %1473 = vmatmul.f32.gmra.mxu0 %v1455
        %v1474 = vpop.f32.mrf.mxu0
        %v1475 = vadd.f32 0.0, %v1474
        %1476 = vdwg.mxu0
        %v1477 = vmul.f32 %v1475, %v142
        %v1478 = vsel %vm168, %v1477, 0.0
        %1479 = vadd.xlane.f32.xlu0 %v1478
        %v1480 = vpop.xlane.xlu0 %1479
        %v1481 = vrot.slane %v1478, 4
        %v1482 = vadd.f32 %v1478, %v1481
        %v1483 = vrot.slane %v1482, 2
        %v1484 = vadd.f32 %v1482, %v1483
        %v1485 = vrot.slane %v1484, 1
        %v1486 = vadd.f32 %v1484, %v1485
        %v1487 = vadd.f32 %v1480, %v1486
        %v1488 = vmul.f32 %v1475, 2.0
        %v1489 = vsub.f32 %v1487, %v1488
        %v1490 = vmax.f32 %v1489, 0.0
        %v1491 = vrsqrt.pop %v1490
        %v1492 = vmul.f32 %v1491, %v1490
        %v1493 = vmul.f32 %v1492, %v1491
        %v1494 = vmul.f32 0.5, %v1493
        %v1495 = vsub.f32 1.5, %v1494
        %v1496 = vmul.f32 %v1491, %v1495
        %v1497 = vmul.f32 %v1490, %v1496
        %vm1498 = vcmp.eq.f32.partialorder %v1490, inf
        %v1499 = vsel %vm1498, %v1490, %v1497
        %vm1500 = vcmp.eq.f32.partialorder %v1490, 0.0
        %v1501 = vand.u32 %v1490, 2147483648
        %v1502 = vsel %vm1500, %v1501, %v1499
        %v1503 = vadd.f32 %v1502, 1e-08
        %v1504 = vrcp.pop %v1503
        %v1505 = vmul.f32 %v140, %v1504
        %v1507 = vsel %vm168, %v1505, 0
        %1509 = vmatpush.msra.mxu0 0.0
        %1510 = vmatpush.msra.mxu0 0.0
        %1511 = vmatpush.msra.mxu0 0.0
        %1512 = vmatpush.msra.mxu0 0.0
        %1513 = vmatpush.msra.mxu0 0.0
        %1514 = vmatpush.msra.mxu0 0.0
        %1515 = vmatpush.msra.mxu0 0.0
        %1516 = vmatpush.msra.mxu0 0.0
        %1517 = vmatpush.msra.mxu0 0.0
        %1518 = vmatpush.msra.mxu0 0.0
        %1519 = vmatpush.msra.mxu0 0.0
        %1520 = vmatpush.msra.mxu0 0.0
        %1521 = vmatpush.msra.mxu0 0.0
        %1522 = vmatpush.msra.mxu0 0.0
        %1523 = vmatpush.msra.mxu0 0.0
        %1524 = vmatpush.msra.mxu0 %v1453
        %1525 = vmatmul.f32.gmra.mxu0 %v1507
        %v1526 = vpop.f32.mrf.mxu0
        %v1527 = vadd.f32 0.0, %v1526
        %1528 = vdwg.mxu0
        %v1529 = vmul.f32 %v1527, 0.05
        %v1530 = vadd.f32 %v1453, %v1529
        %v1532 = vsel %vm143, %v1530, 0
        %1534 = vmatpush.xpose.msra.mxu0 0.0
        %1535 = vmatpush.xpose.msra.mxu0 0.0
        %1536 = vmatpush.xpose.msra.mxu0 0.0
        %1537 = vmatpush.xpose.msra.mxu0 0.0
        %1538 = vmatpush.xpose.msra.mxu0 0.0
        %1539 = vmatpush.xpose.msra.mxu0 0.0
        %1540 = vmatpush.xpose.msra.mxu0 0.0
        %1541 = vmatpush.xpose.msra.mxu0 0.0
        %1542 = vmatpush.xpose.msra.mxu0 0.0
        %1543 = vmatpush.xpose.msra.mxu0 0.0
        %1544 = vmatpush.xpose.msra.mxu0 0.0
        %1545 = vmatpush.xpose.msra.mxu0 0.0
        %1546 = vmatpush.xpose.msra.mxu0 0.0
        %1547 = vmatpush.xpose.msra.mxu0 0.0
        %1548 = vmatpush.xpose.msra.mxu0 0.0
        %1549 = vmatpush.xpose.msra.mxu0 %v1532
        %1550 = vmatmul.f32.gmra.mxu0 %v1532
        %v1551 = vpop.f32.mrf.mxu0
        %v1552 = vadd.f32 0.0, %v1551
        %1553 = vdwg.mxu0
        %v1554 = vmul.f32 %v1552, %v142
        %v1555 = vsel %vm168, %v1554, 0.0
        %1556 = vadd.xlane.f32.xlu0 %v1555
        %v1557 = vpop.xlane.xlu0 %1556
        %v1558 = vrot.slane %v1555, 4
        %v1559 = vadd.f32 %v1555, %v1558
        %v1560 = vrot.slane %v1559, 2
        %v1561 = vadd.f32 %v1559, %v1560
        %v1562 = vrot.slane %v1561, 1
        %v1563 = vadd.f32 %v1561, %v1562
        %v1564 = vadd.f32 %v1557, %v1563
        %v1565 = vmul.f32 %v1552, 2.0
        %v1566 = vsub.f32 %v1564, %v1565
        %v1567 = vmax.f32 %v1566, 0.0
        %v1568 = vrsqrt.pop %v1567
        %v1569 = vmul.f32 %v1568, %v1567
        %v1570 = vmul.f32 %v1569, %v1568
        %v1571 = vmul.f32 0.5, %v1570
        %v1572 = vsub.f32 1.5, %v1571
        %v1573 = vmul.f32 %v1568, %v1572
        %v1574 = vmul.f32 %v1567, %v1573
        %vm1575 = vcmp.eq.f32.partialorder %v1567, inf
        %v1576 = vsel %vm1575, %v1567, %v1574
        %vm1577 = vcmp.eq.f32.partialorder %v1567, 0.0
        %v1578 = vand.u32 %v1567, 2147483648
        %v1579 = vsel %vm1577, %v1578, %v1576
        %v1580 = vadd.f32 %v1579, 1e-08
        %v1581 = vrcp.pop %v1580
        %v1582 = vmul.f32 %v140, %v1581
        %v1584 = vsel %vm168, %v1582, 0
        %1586 = vmatpush.msra.mxu0 0.0
        %1587 = vmatpush.msra.mxu0 0.0
        %1588 = vmatpush.msra.mxu0 0.0
        %1589 = vmatpush.msra.mxu0 0.0
        %1590 = vmatpush.msra.mxu0 0.0
        %1591 = vmatpush.msra.mxu0 0.0
        %1592 = vmatpush.msra.mxu0 0.0
        %1593 = vmatpush.msra.mxu0 0.0
        %1594 = vmatpush.msra.mxu0 0.0
        %1595 = vmatpush.msra.mxu0 0.0
        %1596 = vmatpush.msra.mxu0 0.0
        %1597 = vmatpush.msra.mxu0 0.0
        %1598 = vmatpush.msra.mxu0 0.0
        %1599 = vmatpush.msra.mxu0 0.0
        %1600 = vmatpush.msra.mxu0 0.0
        %1601 = vmatpush.msra.mxu0 %v1530
        %1602 = vmatmul.f32.gmra.mxu0 %v1584
        %v1603 = vpop.f32.mrf.mxu0
        %v1604 = vadd.f32 0.0, %v1603
        %1605 = vdwg.mxu0
        %v1606 = vmul.f32 %v1604, 0.1
        %v1607 = vadd.f32 %v1453, %v1606
        %v1608 = vmul.f32 %v1607, %v1607
        %v1609 = vsel %vm143, %v1608, 0.0
        %1610 = vadd.xlane.f32.xlu0 %v1609
        %v1611 = vpop.xlane.xlu0 %1610
        %v1612 = vrsqrt.pop %v1611
        %v1613 = vmul.f32 %v1612, %v1611
        %v1614 = vmul.f32 %v1613, %v1612
        %v1615 = vmul.f32 0.5, %v1614
        %v1616 = vsub.f32 1.5, %v1615
        %v1617 = vmul.f32 %v1612, %v1616
        %v1618 = vmul.f32 %v1611, %v1617
        %vm1619 = vcmp.eq.f32.partialorder %v1611, inf
        %v1620 = vsel %vm1619, %v1611, %v1618
        %vm1621 = vcmp.eq.f32.partialorder %v1611, 0.0
        %v1622 = vand.u32 %v1611, 2147483648
        %v1623 = vsel %vm1621, %v1622, %v1620
        %v1624 = vadd.f32 %v1623, 1e-08
        %v1625 = vrcp.pop %v1624
        %v1626 = vmul.f32 %v1624, %v1625
        %v1627 = vsub.f32 1.0, %v1626
        %v1628 = vmul.f32 %v1625, %v1627
        %v1629 = vadd.f32 %v1625, %v1628
        %vm1630 = vweird.f32 %v1624
        %vm1631 = vweird.f32 %v1625
        %vm1632 = vmor %vm1630, %vm1631
        %v1633 = vsel %vm1632, %v1625, %v1629
        %v1634 = vand.u32 2147483647, %v1624
        %vm1635 = vcmp.eq.f32.partialorder %v1634, 8.507059e+37
        %v1636 = vand.u32 %v1624, 2147483648
        %v1637 = vor.u32 1.1754944e-38, %v1636
        %v1638 = vsel %vm1635, %v1637, %v1633
        %v1639 = vmul.f32 1.0, %v1638
        %v1640 = vmul.f32 %v1607, %v1639
        %v1642 = vsel %vm143, %v1640, 0
        %1644 = vmatpush.xpose.msra.mxu0 0.0
        %1645 = vmatpush.xpose.msra.mxu0 0.0
        %1646 = vmatpush.xpose.msra.mxu0 0.0
        %1647 = vmatpush.xpose.msra.mxu0 0.0
        %1648 = vmatpush.xpose.msra.mxu0 0.0
        %1649 = vmatpush.xpose.msra.mxu0 0.0
        %1650 = vmatpush.xpose.msra.mxu0 0.0
        %1651 = vmatpush.xpose.msra.mxu0 0.0
        %1652 = vmatpush.xpose.msra.mxu0 0.0
        %1653 = vmatpush.xpose.msra.mxu0 0.0
        %1654 = vmatpush.xpose.msra.mxu0 0.0
        %1655 = vmatpush.xpose.msra.mxu0 0.0
        %1656 = vmatpush.xpose.msra.mxu0 0.0
        %1657 = vmatpush.xpose.msra.mxu0 0.0
        %1658 = vmatpush.xpose.msra.mxu0 0.0
        %1659 = vmatpush.xpose.msra.mxu0 %v1642
        %1660 = vmatmul.f32.gmra.mxu0 %v1642
        %v1661 = vpop.f32.mrf.mxu0
        %v1662 = vadd.f32 0.0, %v1661
        %1663 = vdwg.mxu0
        %v1664 = vmul.f32 %v1662, %v142
        %v1665 = vsel %vm168, %v1664, 0.0
        %1666 = vadd.xlane.f32.xlu0 %v1665
        %v1667 = vpop.xlane.xlu0 %1666
        %v1668 = vrot.slane %v1665, 4
        %v1669 = vadd.f32 %v1665, %v1668
        %v1670 = vrot.slane %v1669, 2
        %v1671 = vadd.f32 %v1669, %v1670
        %v1672 = vrot.slane %v1671, 1
        %v1673 = vadd.f32 %v1671, %v1672
        %v1674 = vadd.f32 %v1667, %v1673
        %v1675 = vmul.f32 %v1662, 2.0
        %v1676 = vsub.f32 %v1674, %v1675
        %v1677 = vmax.f32 %v1676, 0.0
        %v1678 = vrsqrt.pop %v1677
        %v1679 = vmul.f32 %v1678, %v1677
        %v1680 = vmul.f32 %v1679, %v1678
        %v1681 = vmul.f32 0.5, %v1680
        %v1682 = vsub.f32 1.5, %v1681
        %v1683 = vmul.f32 %v1678, %v1682
        %v1684 = vmul.f32 %v1677, %v1683
        %vm1685 = vcmp.eq.f32.partialorder %v1677, inf
        %v1686 = vsel %vm1685, %v1677, %v1684
        %vm1687 = vcmp.eq.f32.partialorder %v1677, 0.0
        %v1688 = vand.u32 %v1677, 2147483648
        %v1689 = vsel %vm1687, %v1688, %v1686
        %v1690 = vadd.f32 %v1689, 1e-08
        %v1691 = vrcp.pop %v1690
        %v1692 = vmul.f32 %v140, %v1691
        %v1694 = vsel %vm168, %v1692, 0
        %1696 = vmatpush.msra.mxu0 0.0
        %1697 = vmatpush.msra.mxu0 0.0
        %1698 = vmatpush.msra.mxu0 0.0
        %1699 = vmatpush.msra.mxu0 0.0
        %1700 = vmatpush.msra.mxu0 0.0
        %1701 = vmatpush.msra.mxu0 0.0
        %1702 = vmatpush.msra.mxu0 0.0
        %1703 = vmatpush.msra.mxu0 0.0
        %1704 = vmatpush.msra.mxu0 0.0
        %1705 = vmatpush.msra.mxu0 0.0
        %1706 = vmatpush.msra.mxu0 0.0
        %1707 = vmatpush.msra.mxu0 0.0
        %1708 = vmatpush.msra.mxu0 0.0
        %1709 = vmatpush.msra.mxu0 0.0
        %1710 = vmatpush.msra.mxu0 0.0
        %1711 = vmatpush.msra.mxu0 %v1640
        %1712 = vmatmul.f32.gmra.mxu0 %v1694
        %v1713 = vpop.f32.mrf.mxu0
        %v1714 = vadd.f32 0.0, %v1713
        %1715 = vdwg.mxu0
        %v1716 = vmul.f32 %v1714, 0.05
        %v1717 = vadd.f32 %v1640, %v1716
        %v1719 = vsel %vm143, %v1717, 0
        %1721 = vmatpush.xpose.msra.mxu0 0.0
        %1722 = vmatpush.xpose.msra.mxu0 0.0
        %1723 = vmatpush.xpose.msra.mxu0 0.0
        %1724 = vmatpush.xpose.msra.mxu0 0.0
        %1725 = vmatpush.xpose.msra.mxu0 0.0
        %1726 = vmatpush.xpose.msra.mxu0 0.0
        %1727 = vmatpush.xpose.msra.mxu0 0.0
        %1728 = vmatpush.xpose.msra.mxu0 0.0
        %1729 = vmatpush.xpose.msra.mxu0 0.0
        %1730 = vmatpush.xpose.msra.mxu0 0.0
        %1731 = vmatpush.xpose.msra.mxu0 0.0
        %1732 = vmatpush.xpose.msra.mxu0 0.0
        %1733 = vmatpush.xpose.msra.mxu0 0.0
        %1734 = vmatpush.xpose.msra.mxu0 0.0
        %1735 = vmatpush.xpose.msra.mxu0 0.0
        %1736 = vmatpush.xpose.msra.mxu0 %v1719
        %1737 = vmatmul.f32.gmra.mxu0 %v1719
        %v1738 = vpop.f32.mrf.mxu0
        %v1739 = vadd.f32 0.0, %v1738
        %1740 = vdwg.mxu0
        %v1741 = vmul.f32 %v1739, %v142
        %v1742 = vsel %vm168, %v1741, 0.0
        %1743 = vadd.xlane.f32.xlu0 %v1742
        %v1744 = vpop.xlane.xlu0 %1743
        %v1745 = vrot.slane %v1742, 4
        %v1746 = vadd.f32 %v1742, %v1745
        %v1747 = vrot.slane %v1746, 2
        %v1748 = vadd.f32 %v1746, %v1747
        %v1749 = vrot.slane %v1748, 1
        %v1750 = vadd.f32 %v1748, %v1749
        %v1751 = vadd.f32 %v1744, %v1750
        %v1752 = vmul.f32 %v1739, 2.0
        %v1753 = vsub.f32 %v1751, %v1752
        %v1754 = vmax.f32 %v1753, 0.0
        %v1755 = vrsqrt.pop %v1754
        %v1756 = vmul.f32 %v1755, %v1754
        %v1757 = vmul.f32 %v1756, %v1755
        %v1758 = vmul.f32 0.5, %v1757
        %v1759 = vsub.f32 1.5, %v1758
        %v1760 = vmul.f32 %v1755, %v1759
        %v1761 = vmul.f32 %v1754, %v1760
        %vm1762 = vcmp.eq.f32.partialorder %v1754, inf
        %v1763 = vsel %vm1762, %v1754, %v1761
        %vm1764 = vcmp.eq.f32.partialorder %v1754, 0.0
        %v1765 = vand.u32 %v1754, 2147483648
        %v1766 = vsel %vm1764, %v1765, %v1763
        %v1767 = vadd.f32 %v1766, 1e-08
        %v1768 = vrcp.pop %v1767
        %v1769 = vmul.f32 %v140, %v1768
        %v1771 = vsel %vm168, %v1769, 0
        %1773 = vmatpush.msra.mxu0 0.0
        %1774 = vmatpush.msra.mxu0 0.0
        %1775 = vmatpush.msra.mxu0 0.0
        %1776 = vmatpush.msra.mxu0 0.0
        %1777 = vmatpush.msra.mxu0 0.0
        %1778 = vmatpush.msra.mxu0 0.0
        %1779 = vmatpush.msra.mxu0 0.0
        %1780 = vmatpush.msra.mxu0 0.0
        %1781 = vmatpush.msra.mxu0 0.0
        %1782 = vmatpush.msra.mxu0 0.0
        %1783 = vmatpush.msra.mxu0 0.0
        %1784 = vmatpush.msra.mxu0 0.0
        %1785 = vmatpush.msra.mxu0 0.0
        %1786 = vmatpush.msra.mxu0 0.0
        %1787 = vmatpush.msra.mxu0 0.0
        %1788 = vmatpush.msra.mxu0 %v1717
        %1789 = vmatmul.f32.gmra.mxu0 %v1771
        %v1790 = vpop.f32.mrf.mxu0
        %v1791 = vadd.f32 0.0, %v1790
        %1792 = vdwg.mxu0
        %v1793 = vmul.f32 %v1791, 0.1
        %v1794 = vadd.f32 %v1640, %v1793
        %v1795 = vmul.f32 %v1794, %v1794
        %v1796 = vsel %vm143, %v1795, 0.0
        %1797 = vadd.xlane.f32.xlu0 %v1796
        %v1798 = vpop.xlane.xlu0 %1797
        %v1799 = vrsqrt.pop %v1798
        %v1800 = vmul.f32 %v1799, %v1798
        %v1801 = vmul.f32 %v1800, %v1799
        %v1802 = vmul.f32 0.5, %v1801
        %v1803 = vsub.f32 1.5, %v1802
        %v1804 = vmul.f32 %v1799, %v1803
        %v1805 = vmul.f32 %v1798, %v1804
        %vm1806 = vcmp.eq.f32.partialorder %v1798, inf
        %v1807 = vsel %vm1806, %v1798, %v1805
        %vm1808 = vcmp.eq.f32.partialorder %v1798, 0.0
        %v1809 = vand.u32 %v1798, 2147483648
        %v1810 = vsel %vm1808, %v1809, %v1807
        %v1811 = vadd.f32 %v1810, 1e-08
        %v1812 = vrcp.pop %v1811
        %v1813 = vmul.f32 %v1811, %v1812
        %v1814 = vsub.f32 1.0, %v1813
        %v1815 = vmul.f32 %v1812, %v1814
        %v1816 = vadd.f32 %v1812, %v1815
        %vm1817 = vweird.f32 %v1811
        %vm1818 = vweird.f32 %v1812
        %vm1819 = vmor %vm1817, %vm1818
        %v1820 = vsel %vm1819, %v1812, %v1816
        %v1821 = vand.u32 2147483647, %v1811
        %vm1822 = vcmp.eq.f32.partialorder %v1821, 8.507059e+37
        %v1823 = vand.u32 %v1811, 2147483648
        %v1824 = vor.u32 1.1754944e-38, %v1823
        %v1825 = vsel %vm1822, %v1824, %v1820
        %v1826 = vmul.f32 1.0, %v1825
        %v1827 = vmul.f32 %v1794, %v1826
        %v1829 = vsel %vm143, %v1827, 0
        %1831 = vmatpush.xpose.msra.mxu0 0.0
        %1832 = vmatpush.xpose.msra.mxu0 0.0
        %1833 = vmatpush.xpose.msra.mxu0 0.0
        %1834 = vmatpush.xpose.msra.mxu0 0.0
        %1835 = vmatpush.xpose.msra.mxu0 0.0
        %1836 = vmatpush.xpose.msra.mxu0 0.0
        %1837 = vmatpush.xpose.msra.mxu0 0.0
        %1838 = vmatpush.xpose.msra.mxu0 0.0
        %1839 = vmatpush.xpose.msra.mxu0 0.0
        %1840 = vmatpush.xpose.msra.mxu0 0.0
        %1841 = vmatpush.xpose.msra.mxu0 0.0
        %1842 = vmatpush.xpose.msra.mxu0 0.0
        %1843 = vmatpush.xpose.msra.mxu0 0.0
        %1844 = vmatpush.xpose.msra.mxu0 0.0
        %1845 = vmatpush.xpose.msra.mxu0 0.0
        %1846 = vmatpush.xpose.msra.mxu0 %v1829
        %1847 = vmatmul.f32.gmra.mxu0 %v1829
        %v1848 = vpop.f32.mrf.mxu0
        %v1849 = vadd.f32 0.0, %v1848
        %1850 = vdwg.mxu0
        %v1851 = vmul.f32 %v1849, %v142
        %v1852 = vsel %vm168, %v1851, 0.0
        %1853 = vadd.xlane.f32.xlu0 %v1852
        %v1854 = vpop.xlane.xlu0 %1853
        %v1855 = vrot.slane %v1852, 4
        %v1856 = vadd.f32 %v1852, %v1855
        %v1857 = vrot.slane %v1856, 2
        %v1858 = vadd.f32 %v1856, %v1857
        %v1859 = vrot.slane %v1858, 1
        %v1860 = vadd.f32 %v1858, %v1859
        %v1861 = vadd.f32 %v1854, %v1860
        %v1862 = vmul.f32 %v1849, 2.0
        %v1863 = vsub.f32 %v1861, %v1862
        %v1864 = vmax.f32 %v1863, 0.0
        %v1865 = vrsqrt.pop %v1864
        %v1866 = vmul.f32 %v1865, %v1864
        %v1867 = vmul.f32 %v1866, %v1865
        %v1868 = vmul.f32 0.5, %v1867
        %v1869 = vsub.f32 1.5, %v1868
        %v1870 = vmul.f32 %v1865, %v1869
        %v1871 = vmul.f32 %v1864, %v1870
        %vm1872 = vcmp.eq.f32.partialorder %v1864, inf
        %v1873 = vsel %vm1872, %v1864, %v1871
        %vm1874 = vcmp.eq.f32.partialorder %v1864, 0.0
        %v1875 = vand.u32 %v1864, 2147483648
        %v1876 = vsel %vm1874, %v1875, %v1873
        %v1877 = vadd.f32 %v1876, 1e-08
        %v1878 = vrcp.pop %v1877
        %v1879 = vmul.f32 %v140, %v1878
        %v1881 = vsel %vm168, %v1879, 0
        %1883 = vmatpush.msra.mxu0 0.0
        %1884 = vmatpush.msra.mxu0 0.0
        %1885 = vmatpush.msra.mxu0 0.0
        %1886 = vmatpush.msra.mxu0 0.0
        %1887 = vmatpush.msra.mxu0 0.0
        %1888 = vmatpush.msra.mxu0 0.0
        %1889 = vmatpush.msra.mxu0 0.0
        %1890 = vmatpush.msra.mxu0 0.0
        %1891 = vmatpush.msra.mxu0 0.0
        %1892 = vmatpush.msra.mxu0 0.0
        %1893 = vmatpush.msra.mxu0 0.0
        %1894 = vmatpush.msra.mxu0 0.0
        %1895 = vmatpush.msra.mxu0 0.0
        %1896 = vmatpush.msra.mxu0 0.0
        %1897 = vmatpush.msra.mxu0 0.0
        %1898 = vmatpush.msra.mxu0 %v1827
        %1899 = vmatmul.f32.gmra.mxu0 %v1881
        %v1900 = vpop.f32.mrf.mxu0
        %v1901 = vadd.f32 0.0, %v1900
        %1902 = vdwg.mxu0
        %v1903 = vmul.f32 %v1901, 0.05
        %v1904 = vadd.f32 %v1827, %v1903
        %v1906 = vsel %vm143, %v1904, 0
        %1908 = vmatpush.xpose.msra.mxu0 0.0
        %1909 = vmatpush.xpose.msra.mxu0 0.0
        %1910 = vmatpush.xpose.msra.mxu0 0.0
        %1911 = vmatpush.xpose.msra.mxu0 0.0
        %1912 = vmatpush.xpose.msra.mxu0 0.0
        %1913 = vmatpush.xpose.msra.mxu0 0.0
        %1914 = vmatpush.xpose.msra.mxu0 0.0
        %1915 = vmatpush.xpose.msra.mxu0 0.0
        %1916 = vmatpush.xpose.msra.mxu0 0.0
        %1917 = vmatpush.xpose.msra.mxu0 0.0
        %1918 = vmatpush.xpose.msra.mxu0 0.0
        %1919 = vmatpush.xpose.msra.mxu0 0.0
        %1920 = vmatpush.xpose.msra.mxu0 0.0
        %1921 = vmatpush.xpose.msra.mxu0 0.0
        %1922 = vmatpush.xpose.msra.mxu0 0.0
        %1923 = vmatpush.xpose.msra.mxu0 %v1906
        %1924 = vmatmul.f32.gmra.mxu0 %v1906
        %v1925 = vpop.f32.mrf.mxu0
        %v1926 = vadd.f32 0.0, %v1925
        %1927 = vdwg.mxu0
        %v1928 = vmul.f32 %v1926, %v142
        %v1929 = vsel %vm168, %v1928, 0.0
        %1930 = vadd.xlane.f32.xlu0 %v1929
        %v1931 = vpop.xlane.xlu0 %1930
        %v1932 = vrot.slane %v1929, 4
        %v1933 = vadd.f32 %v1929, %v1932
        %v1934 = vrot.slane %v1933, 2
        %v1935 = vadd.f32 %v1933, %v1934
        %v1936 = vrot.slane %v1935, 1
        %v1937 = vadd.f32 %v1935, %v1936
        %v1938 = vadd.f32 %v1931, %v1937
        %v1939 = vmul.f32 %v1926, 2.0
        %v1940 = vsub.f32 %v1938, %v1939
        %v1941 = vmax.f32 %v1940, 0.0
        %v1942 = vrsqrt.pop %v1941
        %v1943 = vmul.f32 %v1942, %v1941
        %v1944 = vmul.f32 %v1943, %v1942
        %v1945 = vmul.f32 0.5, %v1944
        %v1946 = vsub.f32 1.5, %v1945
        %v1947 = vmul.f32 %v1942, %v1946
        %v1948 = vmul.f32 %v1941, %v1947
        %vm1949 = vcmp.eq.f32.partialorder %v1941, inf
        %v1950 = vsel %vm1949, %v1941, %v1948
        %vm1951 = vcmp.eq.f32.partialorder %v1941, 0.0
        %v1952 = vand.u32 %v1941, 2147483648
        %v1953 = vsel %vm1951, %v1952, %v1950
        %v1954 = vadd.f32 %v1953, 1e-08
        %v1955 = vrcp.pop %v1954
        %v1956 = vmul.f32 %v140, %v1955
        %v1958 = vsel %vm168, %v1956, 0
        %1960 = vmatpush.msra.mxu0 0.0
        %1961 = vmatpush.msra.mxu0 0.0
        %1962 = vmatpush.msra.mxu0 0.0
        %1963 = vmatpush.msra.mxu0 0.0
        %1964 = vmatpush.msra.mxu0 0.0
        %1965 = vmatpush.msra.mxu0 0.0
        %1966 = vmatpush.msra.mxu0 0.0
        %1967 = vmatpush.msra.mxu0 0.0
        %1968 = vmatpush.msra.mxu0 0.0
        %1969 = vmatpush.msra.mxu0 0.0
        %1970 = vmatpush.msra.mxu0 0.0
        %1971 = vmatpush.msra.mxu0 0.0
        %1972 = vmatpush.msra.mxu0 0.0
        %1973 = vmatpush.msra.mxu0 0.0
        %1974 = vmatpush.msra.mxu0 0.0
        %1975 = vmatpush.msra.mxu0 %v1904
        %1976 = vmatmul.f32.gmra.mxu0 %v1958
        %v1977 = vpop.f32.mrf.mxu0
        %v1978 = vadd.f32 0.0, %v1977
        %1979 = vdwg.mxu0
        %v1980 = vmul.f32 %v1978, 0.1
        %v1981 = vadd.f32 %v1827, %v1980
        %v1982 = vmul.f32 %v1981, %v1981
        %v1983 = vsel %vm143, %v1982, 0.0
        %1984 = vadd.xlane.f32.xlu0 %v1983
        %v1985 = vpop.xlane.xlu0 %1984
        %v1986 = vrsqrt.pop %v1985
        %v1987 = vmul.f32 %v1986, %v1985
        %v1988 = vmul.f32 %v1987, %v1986
        %v1989 = vmul.f32 0.5, %v1988
        %v1990 = vsub.f32 1.5, %v1989
        %v1991 = vmul.f32 %v1986, %v1990
        %v1992 = vmul.f32 %v1985, %v1991
        %vm1993 = vcmp.eq.f32.partialorder %v1985, inf
        %v1994 = vsel %vm1993, %v1985, %v1992
        %vm1995 = vcmp.eq.f32.partialorder %v1985, 0.0
        %v1996 = vand.u32 %v1985, 2147483648
        %v1997 = vsel %vm1995, %v1996, %v1994
        %v1998 = vadd.f32 %v1997, 1e-08
        %v1999 = vrcp.pop %v1998
        %v2000 = vmul.f32 %v1998, %v1999
        %v2001 = vsub.f32 1.0, %v2000
        %v2002 = vmul.f32 %v1999, %v2001
        %v2003 = vadd.f32 %v1999, %v2002
        %vm2004 = vweird.f32 %v1998
        %vm2005 = vweird.f32 %v1999
        %vm2006 = vmor %vm2004, %vm2005
        %v2007 = vsel %vm2006, %v1999, %v2003
        %v2008 = vand.u32 2147483647, %v1998
        %vm2009 = vcmp.eq.f32.partialorder %v2008, 8.507059e+37
        %v2010 = vand.u32 %v1998, 2147483648
        %v2011 = vor.u32 1.1754944e-38, %v2010
        %v2012 = vsel %vm2009, %v2011, %v2007
        %v2013 = vmul.f32 1.0, %v2012
        %v2014 = vmul.f32 %v1981, %v2013
        %2015 = vst.msk [vmem:[%s133] sm:$0xff] %vm143, %v2014
        %s2016 = sand.u32 %s52, 1
        %s2017 = scalar_lea.sflag [#allocation4], %s2016
        %s2018 = sand.u32 %s52, 1
        %s2019 = smul.addr %s2018, 8
        %s2020 = scalar_lea.vmem [#allocation5], %s2019
        // Predicated region
        $region29: #{tpu_custom_call.1} parent=23 // pred_check
          %p2021 = pneg %p62
        $region30: #{tpu_custom_call.1} parent=23 // pred_check_branch
          %2023 = sbr.rel (%p2021) target = $region32
        $region31: #{tpu_custom_call.1} parent=23 // pred_region
          %2025 = vsyncadd %s2017, 0
          %s2026 = smul.addr %s18, 8
          %s2027 = scalar_lea.hbm %s1, %s2026
          %s2029 = sshll.u32 %s2020, 4
          %s2030 = int_to_ptr.vmem [resolvable:$true] %s2029
          %s2031 = sshll.u32 %s2027, 4
          %s2032 = int_to_ptr.hbm [resolvable:$true] %s2031
          %2034 = dma.vmem_to_hbm [thread:$0]  %s2030, 128, %s2032, %s2017
        $region32: #{tpu_custom_call.1} parent=23 // pred_fallthru
          _
      $region24: #{tpu_custom_call.1} parent=5 // pred_fallthru
        _
      %p2035 = scmp.le.s32.totalorder 2, %s13
      // Predicated region
      $region33: #{tpu_custom_call.1} parent=5 // pred_check
        %p2036 = pneg %p2035
      $region34: #{tpu_custom_call.1} parent=5 // pred_check_branch
        %2038 = sbr.rel (%p2036) target = $region36
      $region35: #{tpu_custom_call.1} parent=5 // pred_region
        %s2039 = ssub.s32 %s13, 2
        // Predicated region
        $region37: #{tpu_custom_call.1} parent=35 // pred_check
          %p2040 = pneg %p68
        $region38: #{tpu_custom_call.1} parent=35 // pred_check_branch
          %2042 = sbr.rel (%p2040) target = $region40
        $region39: #{tpu_custom_call.1} parent=35 // pred_region
          %s2043 = sand.u32 %s53, 1
          %s2044 = scalar_lea.sflag [#allocation4], %s2043
          %s2045 = sand.u32 %s53, 1
          %s2046 = smul.addr %s2045, 8
          %s2047 = scalar_lea.vmem [#allocation5], %s2046
          %2049 = dma.done %s2044, 128
        $region40: #{tpu_custom_call.1} parent=35 // pred_fallthru
          _
      $region36: #{tpu_custom_call.1} parent=5 // pred_fallthru
        _
    $region6: #{tpu_custom_call.1} parent=1 // loop_footer
      %s17 = sadd.s32 1, %s13
    $region7: #{tpu_custom_call.1} parent=1 // loop_footer_branch
      %12 = sbr.rel target = $region3
    $region8: #{tpu_custom_call.1} parent=1 // loop_exit
      _
    %2050 = vsyncpa [#allocation3], 1
    %s2051 = scalar_lea.sflag [#allocation3], 1
    %2052 = vsyncpa %s2051, 1
    %2053 = vsyncpa [#allocation4], 1
    %s2054 = scalar_lea.sflag [#allocation4], 1
    %2055 = vsyncpa %s2054, 1

</llo_original>
